<compile_context>
chip_gen: v7x
topology: tpu7x:2x2x1
jax: 0.10.0
libtpu: 0.0.40
codegen_flags: <defaults>
</compile_context>

<pallas_src>
import numpy as np
import jax
import jax.numpy as jnp
from jax.experimental import pallas as pl
from jax.experimental.pallas import tpu as pltpu

# ---- static config (TemporalGATLayer(in_dim, out_dim, time_dim, num_heads)) ----
N = 8                        # nodes per graph
IN_DIM = 16                  # in_dim
OUT_DIM = 16                 # out_dim (= num_heads * out_feats)
TIME_DIM = 8                 # time_dim
NUM_HEADS = 4                # num_heads
FPH = OUT_DIM // NUM_HEADS   # out_feats per head
DH = IN_DIM + TIME_DIM       # GATConv input dim
TN = TIME_DIM * N            # width of the lane-dense time-encoding block (64)

GB = 8                       # graphs per grid step
R = GB * N                   # row-stacked nodes per step (64)
OUTW = GB * OUT_DIM          # lane-dense output width per step (128)
XLANES = 256                 # packed per-step data-slab lane count

# ---- packed data slab lane offsets ([R, XLANES] per step) ----
C_ADJBD = 0                  # [R, R]       block-diagonal adjacency (dst, src)
C_H = R                      # [R, IN_DIM]  node features
C_TW = 128                   # [R, TN]      edge times, lane-replicated TIME_DIM times
C_AW = C_TW + TN             # [R, TN]      adjacency,  lane-replicated TIME_DIM times

# ---- packed parameter slab layout (single [SLAB_ROWS, 128] f32 input) ----
R_WBIG = 0                   # [TN, 2*OUT_DIM]  time-rows of [Wfc|Wres], each repeated N times
R_WH = TN                    # [IN_DIM, 2*OUT_DIM]  feature-rows of [Wfc|Wres]
R_AC = R_WH + IN_DIM         # [OUT_DIM, 2*NUM_HEADS]  block-diag attn vectors (attn_l | attn_r)
R_WT = R_AC + OUT_DIM        # [1, TN]   time-enc weight, each w[k] repeated N times
R_BT = R_WT + 1              # [1, TN]   time-enc bias,   each b[k] repeated N times
R_BG = R_BT + 1              # [1, OUT_DIM]  GATConv bias
R_CM = R_BG + 1              # [NUM_HEADS, OUT_DIM]  per-head output-column masks
SLAB_ROWS = ((R_CM + NUM_HEADS + 7) // 8) * 8            # 104
SLAB_LANES = 128

NEG_INF = -1e30


def tgat_kernel(x_ref, slab_ref, out_ref):
    slab = slab_ref[...]                                          # [SLAB_ROWS, 128]

    adj_bd = x_ref[:, C_ADJBD:C_ADJBD + R]                        # [R, R]  block-diag adjacency
    h = x_ref[:, C_H:C_H + IN_DIM]                                # [R, IN]
    tmat_w = x_ref[:, C_TW:C_TW + TN]                             # [R, TN]
    adj_w = x_ref[:, C_AW:C_AW + TN]                              # [R, TN]

    w_big = slab[R_WBIG:R_WBIG + TN, 0:2 * OUT_DIM]               # [TN, 2*OUT]
    w_h = slab[R_WH:R_WH + IN_DIM, 0:2 * OUT_DIM]                 # [IN, 2*OUT]
    a_cat = slab[R_AC:R_AC + OUT_DIM, 0:2 * NUM_HEADS]            # [OUT, 2H]  (attn_l | attn_r)
    wt_w = slab[R_WT:R_WT + 1, 0:TN]                              # [1, TN]
    bt_w = slab[R_BT:R_BT + 1, 0:TN]                              # [1, TN]
    bg = slab[R_BG:R_BG + 1, 0:OUT_DIM]                           # [1, OUT]
    cmask = slab[R_CM:R_CM + NUM_HEADS, 0:OUT_DIM]                # [H, OUT]

    # in-degree mean normalizer (EUP approx reciprocal -> off the VPU critical path)
    deg = jnp.sum(adj_w[:, 0:N], axis=1, keepdims=True)           # [R, 1]
    inv_deg = pl.reciprocal(jnp.maximum(deg, 1.0), approx=True)

    # temporal encoding, lane-dense: te[r, k*N+s] = adj[r,s] * cos(tmat[r,s]*wt[k] + bt[k])
    te = jnp.cos(tmat_w * wt_w + bt_w) * adj_w                    # [R, TN]

    # h_time @ [Wfc | Wres] == inv_deg * ( (adj_bd @ h) @ W_top + te @ W_big )
    h_sum = jnp.dot(adj_bd, h, preferred_element_type=jnp.float32)                 # [R, IN]
    proj = (jnp.dot(h_sum, w_h, preferred_element_type=jnp.float32)
            + jnp.dot(te, w_big, preferred_element_type=jnp.float32)) * inv_deg    # [R, 2*OUT]
    feat = proj[:, 0:OUT_DIM]                  # fc(h_time), head-major [R, H*F]
    res = proj[:, OUT_DIM:2 * OUT_DIM]         # res_fc(h_time)

    # ---- GATConv attention, all heads and all GB graphs batched ----
    scores = jnp.dot(feat, a_cat, preferred_element_type=jnp.float32)              # [R, 2H]
    er = scores[:, NUM_HEADS:2 * NUM_HEADS]    # per-dst attention term             [R, H]
    scores_t = scores.T                        # one transpose: rows 0:H are el^T   [2H, R]

    # H per-head [R, R] score maps stacked along sublanes -> one softmax pass
    blks = []
    for hd in range(NUM_HEADS):
        e_b = er[:, hd:hd + 1] + scores_t[hd:hd + 1, :]           # [R, R] broadcast add
        e_b = jnp.where(e_b > 0, e_b, 0.2 * e_b)                  # leaky_relu(0.2)
        blks.append(jnp.where(adj_bd > 0, e_b, NEG_INF))          # mask non-edges / cross-graph
    e_full = jnp.concatenate(blks, axis=0)                        # [H*R, R]

    emax = jnp.max(e_full, axis=1, keepdims=True)
    p = jnp.where(e_full > 0.5 * NEG_INF, jnp.exp(e_full - emax), 0.0)
    denom = jnp.sum(p, axis=1, keepdims=True)
    alpha = p * pl.reciprocal(jnp.maximum(denom, 1.0), approx=True)   # edge-softmax, attn_drop=id

    # single MXU contraction for all heads / graphs, then keep each head's own columns
    prod = jnp.dot(alpha, feat, preferred_element_type=jnp.float32)   # [H*R, OUT]
    out = res + bg
    for hd in range(NUM_HEADS):
        out = out + prod[hd * R:(hd + 1) * R, :] * cmask[hd:hd + 1, :]
    out = jnp.where(out > 0, out, jnp.exp(jnp.minimum(out, 0.0)) - 1.0)   # ELU

    # lane-dense store: graph g of this step lands at lanes g*OUT_DIM:(g+1)*OUT_DIM
    for g in range(GB):
        out_ref[:, g * OUT_DIM:(g + 1) * OUT_DIM] = out[g * N:(g + 1) * N, :]


def pack_params(params):
    """Pack all TemporalGATLayer parameters into one [SLAB_ROWS, 128] f32 slab."""
    wfc = np.asarray(params["wfc"], np.float32)          # [DH, OUT]
    wres = np.asarray(params["wres"], np.float32)        # [DH, OUT]
    wt = np.asarray(params["wt"], np.float32)[0]         # [TIME_DIM]
    bt = np.asarray(params["bt"], np.float32)[0]         # [TIME_DIM]
    al = np.asarray(params["al"], np.float32)            # [H, F]
    ar = np.asarray(params["ar"], np.float32)            # [H, F]
    bg = np.asarray(params["bg"], np.float32)[0]         # [OUT]

    w_fused = np.concatenate([wfc, wres], axis=1)        # [DH, 2*OUT]  (fc | res_fc)
    w_top = w_fused[:IN_DIM]                             # rows hit by mean(h[src])
    w_time = w_fused[IN_DIM:]                            # rows hit by mean(time_emb)
    w_big = np.repeat(w_time, N, axis=0)                 # [TN, 2*OUT]: row k*N+s = w_time[k]

    a_cat = np.zeros((OUT_DIM, 2 * NUM_HEADS), np.float32)   # block-diag (attn_l | attn_r)
    cmask = np.zeros((NUM_HEADS, OUT_DIM), np.float32)
    for hd in range(NUM_HEADS):
        a_cat[hd * FPH:(hd + 1) * FPH, hd] = al[hd]
        a_cat[hd * FPH:(hd + 1) * FPH, NUM_HEADS + hd] = ar[hd]
        cmask[hd, hd * FPH:(hd + 1) * FPH] = 1.0

    slab = np.zeros((SLAB_ROWS, SLAB_LANES), np.float32)
    slab[R_WBIG:R_WBIG + TN, 0:2 * OUT_DIM] = w_big
    slab[R_WH:R_WH + IN_DIM, 0:2 * OUT_DIM] = w_top
    slab[R_AC:R_AC + OUT_DIM, 0:2 * NUM_HEADS] = a_cat
    slab[R_WT, 0:TN] = np.repeat(wt, N)                  # wt[k] at lanes k*N .. k*N+N-1
    slab[R_BT, 0:TN] = np.repeat(bt, N)
    slab[R_BG, 0:OUT_DIM] = bg
    slab[R_CM:R_CM + NUM_HEADS, 0:OUT_DIM] = cmask
    return jnp.asarray(slab)


def pack_inputs(adj, tmat, h):
    """Pack GB graphs per step into one lane-dense [S, R, 256] slab (pure layout, no compute)."""
    B = adj.shape[0]
    assert B % GB == 0, "batch must be a multiple of GB=%d" % GB
    S = B // GB
    adj = adj.astype(jnp.float32)
    tmat = tmat.astype(jnp.float32)
    h = h.astype(jnp.float32)

    adj_g = adj.reshape(S, GB, N, N)
    adj_bd = jnp.einsum("sgde,gk->sgdke", adj_g, jnp.eye(GB, dtype=jnp.float32))
    adj_bd = adj_bd.reshape(S, R, R)                                   # block-diag [dst, src]

    pad = jnp.zeros((S, R, C_TW - (C_H + IN_DIM)), jnp.float32)
    x = jnp.concatenate(
        [adj_bd,                                                       # lanes   0: 64
         h.reshape(S, R, IN_DIM),                                      # lanes  64: 80
         pad,                                                          # lanes  80:128
         jnp.tile(tmat.reshape(S, R, N), (1, 1, TIME_DIM)),            # lanes 128:192
         jnp.tile(adj.reshape(S, R, N), (1, 1, TIME_DIM))],            # lanes 192:256
        axis=2)
    return x


@jax.jit
def temporal_gat_forward(adj, tmat, h, slab):
    """adj, tmat: [B, N, N]; h: [B, N, IN_DIM]; slab: packed params.  Returns [B, N, OUT_DIM]."""
    B = adj.shape[0]
    S = B // GB
    x = pack_inputs(adj, tmat, h)
    out = pl.pallas_call(
        tgat_kernel,
        grid=(S,),
        in_specs=[
            pl.BlockSpec((None, R, XLANES), lambda s: (s, 0, 0)),
            pl.BlockSpec((SLAB_ROWS, SLAB_LANES), lambda s: (0, 0)),
        ],
        out_specs=pl.BlockSpec((None, N, OUTW), lambda s: (s, 0, 0)),
        out_shape=jax.ShapeDtypeStruct((S, N, OUTW), jnp.float32),
        compiler_params=pltpu.CompilerParams(dimension_semantics=("parallel",)),
    )(x, slab)
    # un-interleave the lane-dense layout: [S, N, GB*OUT] -> [B, N, OUT]   (layout plumbing only)
    return out.reshape(S, N, GB, OUT_DIM).transpose(0, 2, 1, 3).reshape(B, N, OUT_DIM)


def reference(adj, tmat, h, p):
    """Edge-list (DGL-style) reference in plain JAX for ONE graph."""
    adj_np = np.array(adj)
    dst_idx, src_idx = np.nonzero(adj_np)
    dst_idx = jnp.asarray(dst_idx)
    src_idx = jnp.asarray(src_idx)
    t_e = tmat[dst_idx, src_idx]                                   # [E]
    time_emb = jnp.cos(t_e[:, None] * p["wt"][0][None, :] + p["bt"][0][None, :])
    m = jnp.concatenate([h[src_idx], time_emb], axis=1)            # [E, DH]
    deg = jnp.zeros((N,)).at[dst_idx].add(1.0)
    sum_m = jnp.zeros((N, DH)).at[dst_idx].add(m)
    h_time = jnp.where(deg[:, None] > 0, sum_m / jnp.maximum(deg[:, None], 1.0), 0.0)

    feat = h_time @ p["wfc"]
    featr = feat.reshape(N, NUM_HEADS, FPH)
    el = (featr * p["al"][None]).sum(-1)                           # [N, H]
    er = (featr * p["ar"][None]).sum(-1)
    e = jax.nn.leaky_relu(el[src_idx] + er[dst_idx], 0.2)          # [E, H]
    emax = jnp.full((N, NUM_HEADS), -jnp.inf).at[dst_idx].max(e)
    pexp = jnp.exp(e - emax[dst_idx])
    den = jnp.zeros((N, NUM_HEADS)).at[dst_idx].add(pexp)
    alpha = pexp / den[dst_idx]
    rst = jnp.zeros((N, NUM_HEADS, FPH)).at[dst_idx].add(alpha[:, :, None] * featr[src_idx])
    resv = (h_time @ p["wres"]).reshape(N, NUM_HEADS, FPH)
    out = jax.nn.elu(rst + resv + p["bg"].reshape(1, NUM_HEADS, FPH))
    return out.reshape(N, NUM_HEADS * FPH)


if __name__ == "__main__":
    key = jax.random.PRNGKey(0)
    ks = jax.random.split(key, 8)

    # deterministic synthetic parameters (shapes from TemporalGATLayer.__init__)
    params = {
        "wt": jax.random.normal(ks[0], (1, TIME_DIM), jnp.float32) * 0.5,   # TimeEncoding.w.weight
        "bt": jnp.zeros((1, TIME_DIM), jnp.float32),                        # TimeEncoding.w.bias
        "wfc": jax.random.normal(ks[1], (DH, OUT_DIM), jnp.float32) * (2.0 / (DH + OUT_DIM)) ** 0.5,
        "al": jax.random.normal(ks[2], (NUM_HEADS, FPH), jnp.float32) * 0.3,
        "ar": jax.random.normal(ks[3], (NUM_HEADS, FPH), jnp.float32) * 0.3,
        "wres": jax.random.normal(ks[4], (DH, OUT_DIM), jnp.float32) * (2.0 / (DH + OUT_DIM)) ** 0.5,
        "bg": jnp.zeros((1, OUT_DIM), jnp.float32),                         # GATConv bias
    }

    # deterministic synthetic batch of B graphs
    B = 16
    h = jax.random.normal(ks[5], (B, N, IN_DIM), jnp.float32)
    adj = (jax.random.uniform(ks[6], (B, N, N)) < 0.5).astype(jnp.float32)  # adj[b, dst, src]
    tmat = jax.random.uniform(ks[7], (B, N, N), jnp.float32, minval=0.0, maxval=5.0)

    slab = pack_params(params)
    out = temporal_gat_forward(adj, tmat, h, slab)
    out = jax.block_until_ready(out)
    assert out.shape == (B, N, OUT_DIM)

    # validate every graph against the edge-list reference
    for b in range(B):
        ref_b = np.array(reference(adj[b], tmat[b], h[b], params))
        got_b = np.array(out[b])
        assert np.allclose(got_b, ref_b, rtol=5e-2, atol=5e-2), (
            "graph %d: max abs diff %g" % (b, float(np.max(np.abs(got_b - ref_b)))))

    print("KERNEL_OK")
</pallas_src>

<mosaic_0001>
module attributes {stable_mosaic.version = 11 : i64} {
  func.func @tgat_kernel(%arg0: i32, %arg1: memref<1x64x256xf32, #tpu.memory_space<vmem>>, %arg2: memref<104x128xf32, #tpu.memory_space<vmem>>, %arg3: memref<1x8x128xf32, #tpu.memory_space<vmem>>) attributes {dimension_semantics = [#tpu.dimension_semantics<parallel>], iteration_bounds = array<i64: 2>, scalar_prefetch = 0 : i64, scratch_operands = 0 : i64, tpu.core_type = #tpu.core_type<tc>, window_params = [{transform_indices = @transform_0, window_bounds = array<i64: 1, 64, 256>}, {pipeline_mode = #tpu.pipeline_mode<synchronous>, transform_indices = @transform_1, window_bounds = array<i64: 104, 128>}, {transform_indices = @transform_2, window_bounds = array<i64: 1, 8, 128>}]} {
    %c0 = arith.constant 0 : index
    %c0_0 = arith.constant 0 : index
    %0 = vector.load %arg2[%c0, %c0_0] : memref<104x128xf32, #tpu.memory_space<vmem>>, vector<104x128xf32>
    %c0_1 = arith.constant 0 : index
    %c0_2 = arith.constant 0 : index
    %c0_3 = arith.constant 0 : index
    %1 = vector.load %arg1[%c0_1, %c0_2, %c0_3] : memref<1x64x256xf32, #tpu.memory_space<vmem>>, vector<1x64x64xf32>
    %2 = vector.shape_cast %1 : vector<1x64x64xf32> to vector<64x64xf32>
    %c0_4 = arith.constant 0 : index
    %c0_5 = arith.constant 0 : index
    %c64 = arith.constant 64 : index
    %3 = vector.load %arg1[%c0_4, %c0_5, %c64] : memref<1x64x256xf32, #tpu.memory_space<vmem>>, vector<1x64x16xf32>
    %4 = vector.shape_cast %3 : vector<1x64x16xf32> to vector<64x16xf32>
    %c0_6 = arith.constant 0 : index
    %c0_7 = arith.constant 0 : index
    %c128 = arith.constant 128 : index
    %5 = vector.load %arg1[%c0_6, %c0_7, %c128] : memref<1x64x256xf32, #tpu.memory_space<vmem>>, vector<1x64x64xf32>
    %6 = vector.shape_cast %5 : vector<1x64x64xf32> to vector<64x64xf32>
    %c0_8 = arith.constant 0 : index
    %c0_9 = arith.constant 0 : index
    %c192 = arith.constant 192 : index
    %7 = vector.load %arg1[%c0_8, %c0_9, %c192] : memref<1x64x256xf32, #tpu.memory_space<vmem>>, vector<1x64x64xf32>
    %8 = vector.shape_cast %7 : vector<1x64x64xf32> to vector<64x64xf32>
    %9 = vector.extract_strided_slice %0 {offsets = [0, 0], sizes = [64, 32], strides = [1, 1]} : vector<104x128xf32> to vector<64x32xf32>
    %10 = vector.extract_strided_slice %0 {offsets = [64, 0], sizes = [16, 32], strides = [1, 1]} : vector<104x128xf32> to vector<16x32xf32>
    %11 = vector.extract_strided_slice %0 {offsets = [80, 0], sizes = [16, 8], strides = [1, 1]} : vector<104x128xf32> to vector<16x8xf32>
    %12 = vector.extract_strided_slice %0 {offsets = [96, 0], sizes = [1, 64], strides = [1, 1]} : vector<104x128xf32> to vector<1x64xf32>
    %13 = vector.extract_strided_slice %0 {offsets = [97, 0], sizes = [1, 64], strides = [1, 1]} : vector<104x128xf32> to vector<1x64xf32>
    %14 = vector.extract_strided_slice %0 {offsets = [98, 0], sizes = [1, 16], strides = [1, 1]} : vector<104x128xf32> to vector<1x16xf32>
    %15 = vector.extract_strided_slice %0 {offsets = [99, 0], sizes = [4, 16], strides = [1, 1]} : vector<104x128xf32> to vector<4x16xf32>
    %16 = vector.extract_strided_slice %8 {offsets = [0, 0], sizes = [64, 8], strides = [1, 1]} : vector<64x64xf32> to vector<64x8xf32>
    %cst = arith.constant dense<0.000000e+00> : vector<64xf32>
    %17 = vector.multi_reduction <add>, %16, %cst [1] : vector<64x8xf32> to vector<64xf32>
    %18 = vector.shape_cast %17 : vector<64xf32> to vector<64x1xf32>
    %cst_10 = arith.constant 1.000000e+00 : f32
    %19 = vector.broadcast %cst_10 : f32 to vector<64x1xf32>
    %20 = arith.maximumf %18, %19 : vector<64x1xf32>
    %21 = tpu.reciprocal %20 {approx = true} : vector<64x1xf32> -> vector<64x1xf32>
    %22 = vector.broadcast %12 : vector<1x64xf32> to vector<64x64xf32>
    %23 = arith.mulf %6, %22 : vector<64x64xf32>
    %24 = vector.broadcast %13 : vector<1x64xf32> to vector<64x64xf32>
    %25 = arith.addf %23, %24 : vector<64x64xf32>
    %26 = math.cos %25 : vector<64x64xf32>
    %27 = arith.mulf %26, %8 : vector<64x64xf32>
    %cst_11 = arith.constant dense<0.000000e+00> : vector<64x16xf32>
    %28 = tpu.matmul %2, %4, %cst_11 {dimension_numbers = #tpu.dot_dimension_numbers<[1], [0], [0], [1], [0, 0, 1, 1], [], []>} : vector<64x64xf32>, vector<64x16xf32>, vector<64x16xf32> -> vector<64x16xf32>
    %cst_12 = arith.constant dense<0.000000e+00> : vector<64x32xf32>
    %29 = tpu.matmul %28, %10, %cst_12 {dimension_numbers = #tpu.dot_dimension_numbers<[1], [0], [0], [1], [0, 0, 1, 1], [], []>} : vector<64x16xf32>, vector<16x32xf32>, vector<64x32xf32> -> vector<64x32xf32>
    %cst_13 = arith.constant dense<0.000000e+00> : vector<64x32xf32>
    %30 = tpu.matmul %27, %9, %cst_13 {dimension_numbers = #tpu.dot_dimension_numbers<[1], [0], [0], [1], [0, 0, 1, 1], [], []>} : vector<64x64xf32>, vector<64x32xf32>, vector<64x32xf32> -> vector<64x32xf32>
    %31 = arith.addf %29, %30 : vector<64x32xf32>
    %32 = vector.broadcast %21 : vector<64x1xf32> to vector<64x32xf32>
    %33 = arith.mulf %31, %32 : vector<64x32xf32>
    %34 = vector.extract_strided_slice %33 {offsets = [0, 0], sizes = [64, 16], strides = [1, 1]} : vector<64x32xf32> to vector<64x16xf32>
    %35 = vector.extract_strided_slice %33 {offsets = [0, 16], sizes = [64, 16], strides = [1, 1]} : vector<64x32xf32> to vector<64x16xf32>
    %cst_14 = arith.constant dense<0.000000e+00> : vector<64x8xf32>
    %36 = tpu.matmul %34, %11, %cst_14 {dimension_numbers = #tpu.dot_dimension_numbers<[1], [0], [0], [1], [0, 0, 1, 1], [], []>} : vector<64x16xf32>, vector<16x8xf32>, vector<64x8xf32> -> vector<64x8xf32>
    %37 = vector.extract_strided_slice %36 {offsets = [0, 4], sizes = [64, 4], strides = [1, 1]} : vector<64x8xf32> to vector<64x4xf32>
    %38 = tpu.transpose %36, [1, 0] : vector<64x8xf32> -> vector<8x64xf32>
    %39 = vector.extract_strided_slice %37 {offsets = [0, 0], sizes = [64, 1], strides = [1, 1]} : vector<64x4xf32> to vector<64x1xf32>
    %40 = vector.extract_strided_slice %38 {offsets = [0, 0], sizes = [1, 64], strides = [1, 1]} : vector<8x64xf32> to vector<1x64xf32>
    %41 = vector.broadcast %39 : vector<64x1xf32> to vector<64x64xf32>
    %42 = vector.broadcast %40 : vector<1x64xf32> to vector<64x64xf32>
    %43 = arith.addf %41, %42 : vector<64x64xf32>
    %cst_15 = arith.constant 0.000000e+00 : f32
    %44 = vector.broadcast %cst_15 : f32 to vector<64x64xf32>
    %45 = arith.cmpf ogt, %43, %44 : vector<64x64xf32>
    %cst_16 = arith.constant 2.000000e-01 : f32
    %46 = vector.broadcast %cst_16 : f32 to vector<64x64xf32>
    %47 = arith.mulf %46, %43 : vector<64x64xf32>
    %48 = arith.select %45, %43, %47 : vector<64x64xi1>, vector<64x64xf32>
    %cst_17 = arith.constant 0.000000e+00 : f32
    %49 = vector.broadcast %cst_17 : f32 to vector<64x64xf32>
    %50 = arith.cmpf ogt, %2, %49 : vector<64x64xf32>
    %cst_18 = arith.constant -1.000000e+30 : f32
    %51 = vector.broadcast %cst_18 : f32 to vector<64x64xf32>
    %52 = arith.select %50, %48, %51 : vector<64x64xi1>, vector<64x64xf32>
    %53 = vector.extract_strided_slice %37 {offsets = [0, 1], sizes = [64, 1], strides = [1, 1]} : vector<64x4xf32> to vector<64x1xf32>
    %54 = vector.extract_strided_slice %38 {offsets = [1, 0], sizes = [1, 64], strides = [1, 1]} : vector<8x64xf32> to vector<1x64xf32>
    %55 = vector.broadcast %53 : vector<64x1xf32> to vector<64x64xf32>
    %56 = vector.broadcast %54 : vector<1x64xf32> to vector<64x64xf32>
    %57 = arith.addf %55, %56 : vector<64x64xf32>
    %cst_19 = arith.constant 0.000000e+00 : f32
    %58 = vector.broadcast %cst_19 : f32 to vector<64x64xf32>
    %59 = arith.cmpf ogt, %57, %58 : vector<64x64xf32>
    %cst_20 = arith.constant 2.000000e-01 : f32
    %60 = vector.broadcast %cst_20 : f32 to vector<64x64xf32>
    %61 = arith.mulf %60, %57 : vector<64x64xf32>
    %62 = arith.select %59, %57, %61 : vector<64x64xi1>, vector<64x64xf32>
    %cst_21 = arith.constant 0.000000e+00 : f32
    %63 = vector.broadcast %cst_21 : f32 to vector<64x64xf32>
    %64 = arith.cmpf ogt, %2, %63 : vector<64x64xf32>
    %cst_22 = arith.constant -1.000000e+30 : f32
    %65 = vector.broadcast %cst_22 : f32 to vector<64x64xf32>
    %66 = arith.select %64, %62, %65 : vector<64x64xi1>, vector<64x64xf32>
    %67 = vector.extract_strided_slice %37 {offsets = [0, 2], sizes = [64, 1], strides = [1, 1]} : vector<64x4xf32> to vector<64x1xf32>
    %68 = vector.extract_strided_slice %38 {offsets = [2, 0], sizes = [1, 64], strides = [1, 1]} : vector<8x64xf32> to vector<1x64xf32>
    %69 = vector.broadcast %67 : vector<64x1xf32> to vector<64x64xf32>
    %70 = vector.broadcast %68 : vector<1x64xf32> to vector<64x64xf32>
    %71 = arith.addf %69, %70 : vector<64x64xf32>
    %cst_23 = arith.constant 0.000000e+00 : f32
    %72 = vector.broadcast %cst_23 : f32 to vector<64x64xf32>
    %73 = arith.cmpf ogt, %71, %72 : vector<64x64xf32>
    %cst_24 = arith.constant 2.000000e-01 : f32
    %74 = vector.broadcast %cst_24 : f32 to vector<64x64xf32>
    %75 = arith.mulf %74, %71 : vector<64x64xf32>
    %76 = arith.select %73, %71, %75 : vector<64x64xi1>, vector<64x64xf32>
    %cst_25 = arith.constant 0.000000e+00 : f32
    %77 = vector.broadcast %cst_25 : f32 to vector<64x64xf32>
    %78 = arith.cmpf ogt, %2, %77 : vector<64x64xf32>
    %cst_26 = arith.constant -1.000000e+30 : f32
    %79 = vector.broadcast %cst_26 : f32 to vector<64x64xf32>
    %80 = arith.select %78, %76, %79 : vector<64x64xi1>, vector<64x64xf32>
    %81 = vector.extract_strided_slice %37 {offsets = [0, 3], sizes = [64, 1], strides = [1, 1]} : vector<64x4xf32> to vector<64x1xf32>
    %82 = vector.extract_strided_slice %38 {offsets = [3, 0], sizes = [1, 64], strides = [1, 1]} : vector<8x64xf32> to vector<1x64xf32>
    %83 = vector.broadcast %81 : vector<64x1xf32> to vector<64x64xf32>
    %84 = vector.broadcast %82 : vector<1x64xf32> to vector<64x64xf32>
    %85 = arith.addf %83, %84 : vector<64x64xf32>
    %cst_27 = arith.constant 0.000000e+00 : f32
    %86 = vector.broadcast %cst_27 : f32 to vector<64x64xf32>
    %87 = arith.cmpf ogt, %85, %86 : vector<64x64xf32>
    %cst_28 = arith.constant 2.000000e-01 : f32
    %88 = vector.broadcast %cst_28 : f32 to vector<64x64xf32>
    %89 = arith.mulf %88, %85 : vector<64x64xf32>
    %90 = arith.select %87, %85, %89 : vector<64x64xi1>, vector<64x64xf32>
    %cst_29 = arith.constant 0.000000e+00 : f32
    %91 = vector.broadcast %cst_29 : f32 to vector<64x64xf32>
    %92 = arith.cmpf ogt, %2, %91 : vector<64x64xf32>
    %cst_30 = arith.constant -1.000000e+30 : f32
    %93 = vector.broadcast %cst_30 : f32 to vector<64x64xf32>
    %94 = arith.select %92, %90, %93 : vector<64x64xi1>, vector<64x64xf32>
    %95 = tpu.concatenate %52, %66, %80, %94 in 0 : vector<64x64xf32>, vector<64x64xf32>, vector<64x64xf32>, vector<64x64xf32> -> vector<256x64xf32>
    %cst_31 = arith.constant dense<0xFF800000> : vector<256xf32>
    %96 = vector.multi_reduction <maximumf>, %95, %cst_31 [1] : vector<256x64xf32> to vector<256xf32>
    %97 = vector.shape_cast %96 : vector<256xf32> to vector<256x1xf32>
    %cst_32 = arith.constant -5.000000e+29 : f32
    %98 = vector.broadcast %cst_32 : f32 to vector<256x64xf32>
    %99 = arith.cmpf ogt, %95, %98 : vector<256x64xf32>
    %100 = vector.broadcast %97 : vector<256x1xf32> to vector<256x64xf32>
    %101 = arith.subf %95, %100 : vector<256x64xf32>
    %102 = math.exp %101 : vector<256x64xf32>
    %cst_33 = arith.constant 0.000000e+00 : f32
    %103 = vector.broadcast %cst_33 : f32 to vector<256x64xf32>
    %104 = arith.select %99, %102, %103 : vector<256x64xi1>, vector<256x64xf32>
    %cst_34 = arith.constant dense<0.000000e+00> : vector<256xf32>
    %105 = vector.multi_reduction <add>, %104, %cst_34 [1] : vector<256x64xf32> to vector<256xf32>
    %106 = vector.shape_cast %105 : vector<256xf32> to vector<256x1xf32>
    %cst_35 = arith.constant 1.000000e+00 : f32
    %107 = vector.broadcast %cst_35 : f32 to vector<256x1xf32>
    %108 = arith.maximumf %106, %107 : vector<256x1xf32>
    %109 = tpu.reciprocal %108 {approx = true} : vector<256x1xf32> -> vector<256x1xf32>
    %110 = vector.broadcast %109 : vector<256x1xf32> to vector<256x64xf32>
    %111 = arith.mulf %104, %110 : vector<256x64xf32>
    %cst_36 = arith.constant dense<0.000000e+00> : vector<256x16xf32>
    %112 = tpu.matmul %111, %34, %cst_36 {dimension_numbers = #tpu.dot_dimension_numbers<[1], [0], [0], [1], [0, 0, 1, 1], [], []>} : vector<256x64xf32>, vector<64x16xf32>, vector<256x16xf32> -> vector<256x16xf32>
    %113 = vector.broadcast %14 : vector<1x16xf32> to vector<64x16xf32>
    %114 = arith.addf %35, %113 : vector<64x16xf32>
    %115 = vector.extract_strided_slice %112 {offsets = [0, 0], sizes = [64, 16], strides = [1, 1]} : vector<256x16xf32> to vector<64x16xf32>
    %116 = vector.extract_strided_slice %15 {offsets = [0, 0], sizes = [1, 16], strides = [1, 1]} : vector<4x16xf32> to vector<1x16xf32>
    %117 = vector.broadcast %116 : vector<1x16xf32> to vector<64x16xf32>
    %118 = arith.mulf %115, %117 : vector<64x16xf32>
    %119 = arith.addf %114, %118 : vector<64x16xf32>
    %120 = vector.extract_strided_slice %112 {offsets = [64, 0], sizes = [64, 16], strides = [1, 1]} : vector<256x16xf32> to vector<64x16xf32>
    %121 = vector.extract_strided_slice %15 {offsets = [1, 0], sizes = [1, 16], strides = [1, 1]} : vector<4x16xf32> to vector<1x16xf32>
    %122 = vector.broadcast %121 : vector<1x16xf32> to vector<64x16xf32>
    %123 = arith.mulf %120, %122 : vector<64x16xf32>
    %124 = arith.addf %119, %123 : vector<64x16xf32>
    %125 = vector.extract_strided_slice %112 {offsets = [128, 0], sizes = [64, 16], strides = [1, 1]} : vector<256x16xf32> to vector<64x16xf32>
    %126 = vector.extract_strided_slice %15 {offsets = [2, 0], sizes = [1, 16], strides = [1, 1]} : vector<4x16xf32> to vector<1x16xf32>
    %127 = vector.broadcast %126 : vector<1x16xf32> to vector<64x16xf32>
    %128 = arith.mulf %125, %127 : vector<64x16xf32>
    %129 = arith.addf %124, %128 : vector<64x16xf32>
    %130 = vector.extract_strided_slice %112 {offsets = [192, 0], sizes = [64, 16], strides = [1, 1]} : vector<256x16xf32> to vector<64x16xf32>
    %131 = vector.extract_strided_slice %15 {offsets = [3, 0], sizes = [1, 16], strides = [1, 1]} : vector<4x16xf32> to vector<1x16xf32>
    %132 = vector.broadcast %131 : vector<1x16xf32> to vector<64x16xf32>
    %133 = arith.mulf %130, %132 : vector<64x16xf32>
    %134 = arith.addf %129, %133 : vector<64x16xf32>
    %cst_37 = arith.constant 0.000000e+00 : f32
    %135 = vector.broadcast %cst_37 : f32 to vector<64x16xf32>
    %136 = arith.cmpf ogt, %134, %135 : vector<64x16xf32>
    %cst_38 = arith.constant 0.000000e+00 : f32
    %137 = vector.broadcast %cst_38 : f32 to vector<64x16xf32>
    %138 = arith.minimumf %134, %137 : vector<64x16xf32>
    %139 = math.exp %138 : vector<64x16xf32>
    %cst_39 = arith.constant 1.000000e+00 : f32
    %140 = vector.broadcast %cst_39 : f32 to vector<64x16xf32>
    %141 = arith.subf %139, %140 : vector<64x16xf32>
    %142 = arith.select %136, %134, %141 : vector<64x16xi1>, vector<64x16xf32>
    %143 = vector.extract_strided_slice %142 {offsets = [0, 0], sizes = [8, 16], strides = [1, 1]} : vector<64x16xf32> to vector<8x16xf32>
    %c0_40 = arith.constant 0 : index
    %c0_41 = arith.constant 0 : index
    %c0_42 = arith.constant 0 : index
    %144 = vector.load %arg3[%c0_40, %c0_41, %c0_42] : memref<1x8x128xf32, #tpu.memory_space<vmem>>, vector<1x8x16xf32>
    %145 = vector.shape_cast %144 : vector<1x8x16xf32> to vector<8x16xf32>
    %146 = vector.shape_cast %143 : vector<8x16xf32> to vector<1x8x16xf32>
    tpu.vector_store %arg3[%c0_40, %c0_41, %c0_42], %146 {strides = array<i32>} : memref<1x8x128xf32, #tpu.memory_space<vmem>>, vector<1x8x16xf32>,
    %147 = vector.extract_strided_slice %142 {offsets = [8, 0], sizes = [8, 16], strides = [1, 1]} : vector<64x16xf32> to vector<8x16xf32>
    %c0_43 = arith.constant 0 : index
    %c0_44 = arith.constant 0 : index
    %c16 = arith.constant 16 : index
    %148 = vector.load %arg3[%c0_43, %c0_44, %c16] : memref<1x8x128xf32, #tpu.memory_space<vmem>>, vector<1x8x16xf32>
    %149 = vector.shape_cast %148 : vector<1x8x16xf32> to vector<8x16xf32>
    %150 = vector.shape_cast %147 : vector<8x16xf32> to vector<1x8x16xf32>
    tpu.vector_store %arg3[%c0_43, %c0_44, %c16], %150 {strides = array<i32>} : memref<1x8x128xf32, #tpu.memory_space<vmem>>, vector<1x8x16xf32>,
    %151 = vector.extract_strided_slice %142 {offsets = [16, 0], sizes = [8, 16], strides = [1, 1]} : vector<64x16xf32> to vector<8x16xf32>
    %c0_45 = arith.constant 0 : index
    %c0_46 = arith.constant 0 : index
    %c32 = arith.constant 32 : index
    %152 = vector.load %arg3[%c0_45, %c0_46, %c32] : memref<1x8x128xf32, #tpu.memory_space<vmem>>, vector<1x8x16xf32>
    %153 = vector.shape_cast %152 : vector<1x8x16xf32> to vector<8x16xf32>
    %154 = vector.shape_cast %151 : vector<8x16xf32> to vector<1x8x16xf32>
    tpu.vector_store %arg3[%c0_45, %c0_46, %c32], %154 {strides = array<i32>} : memref<1x8x128xf32, #tpu.memory_space<vmem>>, vector<1x8x16xf32>,
    %155 = vector.extract_strided_slice %142 {offsets = [24, 0], sizes = [8, 16], strides = [1, 1]} : vector<64x16xf32> to vector<8x16xf32>
    %c0_47 = arith.constant 0 : index
    %c0_48 = arith.constant 0 : index
    %c48 = arith.constant 48 : index
    %156 = vector.load %arg3[%c0_47, %c0_48, %c48] : memref<1x8x128xf32, #tpu.memory_space<vmem>>, vector<1x8x16xf32>
    %157 = vector.shape_cast %156 : vector<1x8x16xf32> to vector<8x16xf32>
    %158 = vector.shape_cast %155 : vector<8x16xf32> to vector<1x8x16xf32>
    tpu.vector_store %arg3[%c0_47, %c0_48, %c48], %158 {strides = array<i32>} : memref<1x8x128xf32, #tpu.memory_space<vmem>>, vector<1x8x16xf32>,
    %159 = vector.extract_strided_slice %142 {offsets = [32, 0], sizes = [8, 16], strides = [1, 1]} : vector<64x16xf32> to vector<8x16xf32>
    %c0_49 = arith.constant 0 : index
    %c0_50 = arith.constant 0 : index
    %c64_51 = arith.constant 64 : index
    %160 = vector.load %arg3[%c0_49, %c0_50, %c64_51] : memref<1x8x128xf32, #tpu.memory_space<vmem>>, vector<1x8x16xf32>
    %161 = vector.shape_cast %160 : vector<1x8x16xf32> to vector<8x16xf32>
    %162 = vector.shape_cast %159 : vector<8x16xf32> to vector<1x8x16xf32>
    tpu.vector_store %arg3[%c0_49, %c0_50, %c64_51], %162 {strides = array<i32>} : memref<1x8x128xf32, #tpu.memory_space<vmem>>, vector<1x8x16xf32>,
    %163 = vector.extract_strided_slice %142 {offsets = [40, 0], sizes = [8, 16], strides = [1, 1]} : vector<64x16xf32> to vector<8x16xf32>
    %c0_52 = arith.constant 0 : index
    %c0_53 = arith.constant 0 : index
    %c80 = arith.constant 80 : index
    %164 = vector.load %arg3[%c0_52, %c0_53, %c80] : memref<1x8x128xf32, #tpu.memory_space<vmem>>, vector<1x8x16xf32>
    %165 = vector.shape_cast %164 : vector<1x8x16xf32> to vector<8x16xf32>
    %166 = vector.shape_cast %163 : vector<8x16xf32> to vector<1x8x16xf32>
    tpu.vector_store %arg3[%c0_52, %c0_53, %c80], %166 {strides = array<i32>} : memref<1x8x128xf32, #tpu.memory_space<vmem>>, vector<1x8x16xf32>,
    %167 = vector.extract_strided_slice %142 {offsets = [48, 0], sizes = [8, 16], strides = [1, 1]} : vector<64x16xf32> to vector<8x16xf32>
    %c0_54 = arith.constant 0 : index
    %c0_55 = arith.constant 0 : index
    %c96 = arith.constant 96 : index
    %168 = vector.load %arg3[%c0_54, %c0_55, %c96] : memref<1x8x128xf32, #tpu.memory_space<vmem>>, vector<1x8x16xf32>
    %169 = vector.shape_cast %168 : vector<1x8x16xf32> to vector<8x16xf32>
    %170 = vector.shape_cast %167 : vector<8x16xf32> to vector<1x8x16xf32>
    tpu.vector_store %arg3[%c0_54, %c0_55, %c96], %170 {strides = array<i32>} : memref<1x8x128xf32, #tpu.memory_space<vmem>>, vector<1x8x16xf32>,
    %171 = vector.extract_strided_slice %142 {offsets = [56, 0], sizes = [8, 16], strides = [1, 1]} : vector<64x16xf32> to vector<8x16xf32>
    %c0_56 = arith.constant 0 : index
    %c0_57 = arith.constant 0 : index
    %c112 = arith.constant 112 : index
    %172 = vector.load %arg3[%c0_56, %c0_57, %c112] : memref<1x8x128xf32, #tpu.memory_space<vmem>>, vector<1x8x16xf32>
    %173 = vector.shape_cast %172 : vector<1x8x16xf32> to vector<8x16xf32>
    %174 = vector.shape_cast %171 : vector<8x16xf32> to vector<1x8x16xf32>
    tpu.vector_store %arg3[%c0_56, %c0_57, %c112], %174 {strides = array<i32>} : memref<1x8x128xf32, #tpu.memory_space<vmem>>, vector<1x8x16xf32>,
    return
  }
  func.func @transform_0(%arg0: i32) -> (i32, i32, i32) {
    %c0_i32 = arith.constant 0 : i32
    %c0_i32_0 = arith.constant 0 : i32
    %c0_i32_1 = arith.constant 0 : i32
    return %arg0, %c0_i32, %c0_i32_0 : i32, i32, i32
  }
  func.func @transform_1(%arg0: i32) -> (i32, i32) {
    %c0_i32 = arith.constant 0 : i32
    %c0_i32_0 = arith.constant 0 : i32
    %c0_i32_1 = arith.constant 0 : i32
    return %c0_i32, %c0_i32_0 : i32, i32
  }
  func.func @transform_2(%arg0: i32) -> (i32, i32, i32) {
    %c0_i32 = arith.constant 0 : i32
    %c0_i32_0 = arith.constant 0 : i32
    %c0_i32_1 = arith.constant 0 : i32
    return %arg0, %c0_i32, %c0_i32_0 : i32, i32, i32
  }
}

</mosaic_0001>

<llo_original>
// kernel: temporal_gat_forward.1
$region0: #{temporal_gat_forward.1}
  #allocation0 [shape = 'u32[]', space=smem, size = 0x4, offset = 0x4, fixed_abs, tag = 'smem constant byte address 0x4 - core index']
  #allocation1 [shape = 'u32[144,128]{1,0:T(1,128)}', space=vmem, size = 0x12000, scoped, tag = 'internal scratch']
  %s0 = inlined_call_operand.vmem [shape: f32[2,64,256], index: 0, kind: input, shape index: {}]
  %s1 = inlined_call_operand.vmem [shape: f32[104,128], index: 1, kind: input, shape index: {}]
  %s2 = inlined_call_operand.vmem [shape: f32[2,8,128], index: 2, kind: output, shape index: {}]
  %s3 = sld [smem:[#allocation0]]
  $region41: #{temporal_gat_forward.1} parent=0
    _
  %s5 = ssub.s32 1, %s3
  %s6 = scalar_select 0, %s5, %s3
  loop: start=0, step=1, limit=4
  $region2: #{temporal_gat_forward.1} parent=0 // loop_pre_header
    _
  $region3: #{temporal_gat_forward.1} parent=0 // loop_header
    %s8 = sphi 0, %s12
    %p9 = scmp.ge.s32.totalorder %s8, 4
    %s18 = sphi 0, %s20
    %s21 = sphi 0, %s18
    %s22 = sphi 0, %s21
    %s38 = sphi 0, %s22
    %s42 = sphi 0, %s42
    %s44 = sphi 0, %s42
    %s45 = sphi 0, %s44
    %s59 = sphi 0, %s45
    %s65 = sphi 0, %s67
    %s68 = sphi 0, %s65
    %s69 = sphi 0, %s68
    %s85 = sphi 0, %s69
  $region4: #{temporal_gat_forward.1} parent=0 // loop_header_branch
    %11 = sbr.rel (%p9) target = $region8
  $region5: #{temporal_gat_forward.1} parent=0 // loop_body
    %s13 = ssub.s32 %s8, 1
    %s14 = ssub.s32 %s8, 2
    %s15 = sadd.s32 %s8, 1
    %s16 = ssub.s32 %s8, %s15
    %p17 = scmp.eq.s32.totalorder %s16, 0
    %s19 = sadd.s32 %s18, 1
    %s20 = scalar_select %p17, %s18, %s19
    %p23 = pneg %p17
    %p24 = scmp.eq.s32.totalorder %s8, 1
    %p25 = por %p23, %p24
    %p26 = scmp.ne.s32.totalorder %s18, %s21
    %p27 = scmp.eq.s32.totalorder %s8, 0
    %p28 = por %p26, %p27
    %p29 = scmp.ne.s32.totalorder %s18, %s21
    %p30 = scmp.eq.s32.totalorder %s13, 1
    %p31 = por %p29, %p30
    %p32 = scmp.ne.s32.totalorder %s21, %s22
    %p33 = scmp.eq.s32.totalorder %s13, 0
    %p34 = por %p32, %p33
    %p35 = scmp.ne.s32.totalorder %s21, %s22
    %p36 = scmp.eq.s32.totalorder %s14, 1
    %p37 = por %p35, %p36
    %p39 = scmp.ne.s32.totalorder %s22, %s38
    %p40 = scmp.eq.s32.totalorder %s14, 0
    %p41 = por %p39, %p40
    %s43 = sadd.s32 %s42, 1
    %p46 = scmp.eq.s32.totalorder %s8, 1
    %p47 = scmp.ne.s32.totalorder %s42, %s44
    %p48 = scmp.eq.s32.totalorder %s8, 0
    %p49 = por %p47, %p48
    %p50 = scmp.ne.s32.totalorder %s42, %s44
    %p51 = scmp.eq.s32.totalorder %s13, 1
    %p52 = por %p50, %p51
    %p53 = scmp.ne.s32.totalorder %s44, %s45
    %p54 = scmp.eq.s32.totalorder %s13, 0
    %p55 = por %p53, %p54
    %p56 = scmp.ne.s32.totalorder %s44, %s45
    %p57 = scmp.eq.s32.totalorder %s14, 1
    %p58 = por %p56, %p57
    %p60 = scmp.ne.s32.totalorder %s45, %s59
    %p61 = scmp.eq.s32.totalorder %s14, 0
    %p62 = por %p60, %p61
    %s63 = ssub.s32 %s8, %s15
    %p64 = scmp.eq.s32.totalorder %s63, 0
    %s66 = sadd.s32 %s65, 1
    %s67 = scalar_select %p64, %s65, %s66
    %p70 = pneg %p64
    %p71 = scmp.eq.s32.totalorder %s8, 1
    %p72 = por %p70, %p71
    %p73 = scmp.ne.s32.totalorder %s65, %s68
    %p74 = scmp.eq.s32.totalorder %s8, 0
    %p75 = por %p73, %p74
    %p76 = scmp.ne.s32.totalorder %s65, %s68
    %p77 = scmp.eq.s32.totalorder %s13, 1
    %p78 = por %p76, %p77
    %p79 = scmp.ne.s32.totalorder %s68, %s69
    %p80 = scmp.eq.s32.totalorder %s13, 0
    %p81 = por %p79, %p80
    %p82 = scmp.ne.s32.totalorder %s68, %s69
    %p83 = scmp.eq.s32.totalorder %s14, 1
    %p84 = por %p82, %p83
    %p86 = scmp.ne.s32.totalorder %s69, %s85
    %p87 = scmp.eq.s32.totalorder %s14, 0
    %p88 = por %p86, %p87
    %p89 = scmp.le.s32.totalorder 1, %s8
    %p90 = scmp.lt.s32.totalorder %s8, 3
    %p91 = pnand %p89, %p90
    %p92 = pneg %p91
    // Predicated region
    $region9: #{temporal_gat_forward.1} parent=5 // pred_check
      _
    $region10: #{temporal_gat_forward.1} parent=5 // pred_check_branch
      %94 = sbr.rel (%p91) target = $region12
    $region11: #{temporal_gat_forward.1} parent=5 // pred_region
      %s95 = ssub.s32 %s8, 1
      // Predicated region
      $region13: #{temporal_gat_forward.1} parent=11 // pred_check
        %p96 = pneg %p55
      $region14: #{temporal_gat_forward.1} parent=11 // pred_check_branch
        %98 = sbr.rel (%p96) target = $region16
      $region15: #{temporal_gat_forward.1} parent=11 // pred_region
        _
      $region16: #{temporal_gat_forward.1} parent=11 // pred_fallthru
        _
    $region12: #{temporal_gat_forward.1} parent=5 // pred_fallthru
      _
    %p99 = scmp.lt.s32.totalorder %s8, 2
    // Predicated region
    $region17: #{temporal_gat_forward.1} parent=5 // pred_check
      %p100 = pneg %p99
    $region18: #{temporal_gat_forward.1} parent=5 // pred_check_branch
      %102 = sbr.rel (%p100) target = $region20
    $region19: #{temporal_gat_forward.1} parent=5 // pred_region
      // Predicated region
      $region21: #{temporal_gat_forward.1} parent=19 // pred_check
        %p103 = pneg %p28
      $region22: #{temporal_gat_forward.1} parent=19 // pred_check_branch
        %105 = sbr.rel (%p103) target = $region24
      $region23: #{temporal_gat_forward.1} parent=19 // pred_region
        %p106 = scmp.lt.s32.totalorder %s8, 1
        %s107 = scalar_select %p106, %s8, 1
        %s108 = smul.addr %s107, 16
        %s109 = smul.addr %s108, 8
        %s110 = scalar_lea.vmem %s0, %s109
      $region24: #{temporal_gat_forward.1} parent=19 // pred_fallthru
        _
    $region20: #{temporal_gat_forward.1} parent=5 // pred_fallthru
      _
    %p111 = scmp.le.s32.totalorder 1, %s8
    %p112 = scmp.lt.s32.totalorder %s8, 3
    %p113 = pnand %p111, %p112
    %p114 = pneg %p113
    // Predicated region
    $region25: #{temporal_gat_forward.1} parent=5 // pred_check
      _
    $region26: #{temporal_gat_forward.1} parent=5 // pred_check_branch
      %116 = sbr.rel (%p113) target = $region28
    $region27: #{temporal_gat_forward.1} parent=5 // pred_region
      %s117 = ssub.s32 %s8, 1
      %p118 = scmp.lt.s32.totalorder %s13, 1
      %s119 = scalar_select %p118, %s13, 1
      %s120 = smul.addr %s119, 16
      %s121 = smul.addr %s120, 8
      %s122 = scalar_lea.vmem %s0, %s121
      %p123 = pneg %p34
      %p124 = pneg %p31
      %p125 = pneg %p55
      %p126 = pneg %p52
      %p127 = pneg %p81
      %p128 = pneg %p78
      %p129 = scmp.lt.s32.totalorder %s13, 1
      %s130 = scalar_select %p129, %s13, 1
      %s131 = smul.addr %s130, 8
      %s132 = scalar_lea.vmem %s2, %s131
      %p133 = scmp.lt.s32.totalorder %s13, 1
      %s134 = scalar_select %p133, %s13, 1
      %s135 = smul.addr %s134, 16
      %s136 = smul.addr %s135, 8
      %s137 = scalar_lea.vmem %s0, %s136
      %p138 = scmp.lt.s32.totalorder %s13, 1
      %s139 = scalar_select %p138, %s13, 1
      %s140 = smul.addr %s139, 8
      %s141 = scalar_lea.vmem %s2, %s140
      %v142 = vld [vmem:[%s1] sm:$0xff]
      %v143 = vld [vmem:[%s1 + $0x8] sm:$0xff]
      %v144 = vld [vmem:[%s1 + $0x10] sm:$0xff]
      %v145 = vld [vmem:[%s1 + $0x18] sm:$0xff]
      %v146 = vld [vmem:[%s1 + $0x20] sm:$0xff]
      %v147 = vld [vmem:[%s1 + $0x28] sm:$0xff]
      %v148 = vld [vmem:[%s1 + $0x30] sm:$0xff]
      %v149 = vld [vmem:[%s1 + $0x38] sm:$0xff]
      %v150 = vld [vmem:[%s1 + $0x40] sm:$0xff]
      %v151 = vld [vmem:[%s1 + $0x48] sm:$0xff]
      %v152 = vld [vmem:[%s1 + $0x50] sm:$0xff]
      %v153 = vld [vmem:[%s1 + $0x58] sm:$0xff]
      %v154 = vld [vmem:[%s1 + $0x60] sm:$0xff]
      %v155 = vld [vmem:[%s137] sm:$0xff]
      %v156 = vld [vmem:[%s137 + $0x10] sm:$0xff]
      %v157 = vld [vmem:[%s137 + $0x20] sm:$0xff]
      %v158 = vld [vmem:[%s137 + $0x30] sm:$0xff]
      %v159 = vld [vmem:[%s137 + $0x40] sm:$0xff]
      %v160 = vld [vmem:[%s137 + $0x50] sm:$0xff]
      %v161 = vld [vmem:[%s137 + $0x60] sm:$0xff]
      %v162 = vld [vmem:[%s137 + $0x70] sm:$0xff]
      %v163 = vld [vmem:[%s137 + $0x8] sm:$0xff]
      %v164 = vld [vmem:[%s137 + $0x18] sm:$0xff]
      %v165 = vld [vmem:[%s137 + $0x28] sm:$0xff]
      %v166 = vld [vmem:[%s137 + $0x38] sm:$0xff]
      %v167 = vld [vmem:[%s137 + $0x48] sm:$0xff]
      %v168 = vld [vmem:[%s137 + $0x58] sm:$0xff]
      %v169 = vld [vmem:[%s137 + $0x68] sm:$0xff]
      %v170 = vld [vmem:[%s137 + $0x78] sm:$0xff]
      %179 = vrot.lane.b32.xlu0 %v163, 64
      %v180 = vpop.permute.xlu0 %179
      %181 = vrot.lane.b32.xlu0 %v164, 64
      %v182 = vpop.permute.xlu0 %181
      %183 = vrot.lane.b32.xlu0 %v165, 64
      %v184 = vpop.permute.xlu0 %183
      %185 = vrot.lane.b32.xlu0 %v166, 64
      %v186 = vpop.permute.xlu0 %185
      %187 = vrot.lane.b32.xlu0 %v167, 64
      %v188 = vpop.permute.xlu0 %187
      %189 = vrot.lane.b32.xlu0 %v168, 64
      %v190 = vpop.permute.xlu0 %189
      %191 = vrot.lane.b32.xlu0 %v169, 64
      %v192 = vpop.permute.xlu0 %191
      %193 = vrot.lane.b32.xlu0 %v170, 64
      %v194 = vpop.permute.xlu0 %193
      %vm203 = vcmask 64512
      %v204 = vsel %vm203, %v180, 0.0
      %205 = vadd.xlane.f32.xlu0 %v204
      %v206 = vpop.xlane.xlu0 %205
      %v207 = vsel %vm203, %v182, 0.0
      %208 = vadd.xlane.f32.xlu0 %v207
      %v209 = vpop.xlane.xlu0 %208
      %v210 = vsel %vm203, %v184, 0.0
      %211 = vadd.xlane.f32.xlu0 %v210
      %v212 = vpop.xlane.xlu0 %211
      %v213 = vsel %vm203, %v186, 0.0
      %214 = vadd.xlane.f32.xlu0 %v213
      %v215 = vpop.xlane.xlu0 %214
      %v216 = vsel %vm203, %v188, 0.0
      %217 = vadd.xlane.f32.xlu0 %v216
      %v218 = vpop.xlane.xlu0 %217
      %v219 = vsel %vm203, %v190, 0.0
      %220 = vadd.xlane.f32.xlu0 %v219
      %v221 = vpop.xlane.xlu0 %220
      %v222 = vsel %vm203, %v192, 0.0
      %223 = vadd.xlane.f32.xlu0 %v222
      %v224 = vpop.xlane.xlu0 %223
      %v225 = vsel %vm203, %v194, 0.0
      %226 = vadd.xlane.f32.xlu0 %v225
      %v227 = vpop.xlane.xlu0 %226
      %v228 = vmax.f32 %v206, 1.0
      %v229 = vmax.f32 %v209, 1.0
      %v230 = vmax.f32 %v212, 1.0
      %v231 = vmax.f32 %v215, 1.0
      %v232 = vmax.f32 %v218, 1.0
      %v233 = vmax.f32 %v221, 1.0
      %v234 = vmax.f32 %v224, 1.0
      %v235 = vmax.f32 %v227, 1.0
      %v236 = vrcp.pop %v228
      %v237 = vrcp.pop %v229
      %v238 = vrcp.pop %v230
      %v239 = vrcp.pop %v231
      %v240 = vrcp.pop %v232
      %v241 = vrcp.pop %v233
      %v242 = vrcp.pop %v234
      %v243 = vrcp.pop %v235
      %v244 = vlaneseq
      %v245 = vshrl.u32 %v244, 7
      %v246 = vsub.s32 0, %v245
      %v247 = vrot.slane %v154, %v246
      %v248 = vmul.f32 %v163, %v247
      %v249 = vmul.f32 %v164, %v247
      %v250 = vmul.f32 %v165, %v247
      %v251 = vmul.f32 %v166, %v247
      %v252 = vmul.f32 %v167, %v247
      %v253 = vmul.f32 %v168, %v247
      %v254 = vmul.f32 %v169, %v247
      %v255 = vmul.f32 %v170, %v247
      %v256 = vlaneseq
      %v257 = vshrl.u32 %v256, 7
      %v258 = vsub.s32 1, %v257
      %v259 = vrot.slane %v154, %v258
      %v260 = vadd.f32 %v248, %v259
      %v261 = vadd.f32 %v249, %v259
      %v262 = vadd.f32 %v250, %v259
      %v263 = vadd.f32 %v251, %v259
      %v264 = vadd.f32 %v252, %v259
      %v265 = vadd.f32 %v253, %v259
      %v266 = vadd.f32 %v254, %v259
      %v267 = vadd.f32 %v255, %v259
      %v268 = vand.u32 2147483647, %v260
      %vm269 = vcmp.le.f32.partialorder %v268, 0.7853982
      %vm270 = vcmp.lt.s32.totalorder %v260, 0
      %v271 = vand.u32 %v260, 2139095040
      %v272 = vshrl.u32 %v271, 23
      %v273 = vsub.s32 %v272, 127
      %v274 = vand.u32 2147483647, %v260
      %v275 = vand.u32 %v274, 8388607
      %v276 = vor.u32 %v275, 8388608
      %v277 = vsub.s32 0, %v276
      %v278 = vadd.s32 %v273, 1
      %vm279 = vcmp.gt.s32.totalorder %v278, 0
      %v280 = vsel %vm279, %v278, 0
      %v281 = vshrl.u32 %v280, 5
      %v282 = vand.u32 %v280, 31
      %v283 = vsub.s32 32, %v282
      %v284 = vshrl.u32 683565275, %v283
      %v285 = vshll.u32 683565275, %v282
      %v286 = vshrl.u32 2475754826, %v283
      %v287 = vor.u32 %v285, %v286
      %v288 = vshll.u32 2475754826, %v282
      %v289 = vshrl.u32 2131351028, %v283
      %v290 = vor.u32 %v288, %v289
      %v291 = vshll.u32 2131351028, %v282
      %v292 = vshrl.u32 2102212464, %v283
      %v293 = vor.u32 %v291, %v292
      %v294 = vshll.u32 2102212464, %v282
      %v295 = vshrl.u32 920167782, %v283
      %v296 = vor.u32 %v294, %v295
      %v297 = vshll.u32 920167782, %v282
      %v298 = vshrl.u32 1326507024, %v283
      %v299 = vor.u32 %v297, %v298
      %vm300 = vcmp.lt.s32.totalorder %v281, 1
      %vm301 = vcmp.lt.s32.totalorder %v281, 2
      %vm302 = vcmp.lt.s32.totalorder %v281, 3
      %vm303 = vcmp.lt.s32.totalorder %v281, 4
      %v304 = vsel %vm300, %v284, %v287
      %v305 = vsel %vm303, %v293, 2102212464
      %v306 = vsel %vm302, %v290, %v305
      %v307 = vsel %vm301, %v304, %v306
      %v308 = vsel %vm300, %v287, %v290
      %v309 = vsel %vm303, %v296, 920167782
      %v310 = vsel %vm302, %v293, %v309
      %v311 = vsel %vm301, %v308, %v310
      %v312 = vsel %vm300, %v290, %v293
      %v313 = vsel %vm303, %v299, 1326507024
      %v314 = vsel %vm302, %v296, %v313
      %v315 = vsel %vm301, %v312, %v314
      %v316 = vshll.u32 %v276, 8
      %v317 = vmul.u32.u64.compose %v316, %v315
      %v318 = vextract.low.u32 %v317
      %v319 = vextract.high.u32 %v317
      %v320 = vmul.u32.u64.compose %v316, %v311
      %v321 = vextract.low.u32 %v320
      %v322 = vextract.high.u32 %v320
      %v323 = vmul.u32 %v316, %v307
      %v324 = vadd.s32 %v319, %v321
      %vm325 = vc.u32 %v319, %v321
      %v326 = vadd.s32 %v322, 1
      %v327 = vsel %vm325, %v326, %v322
      %v328 = vadd.s32 %v323, %v327
      %v329 = vadd.s32 %v328, 536870912
      %v330 = vshrl.u32 %v329, 30
      %v331 = vshll.u32 %v330, 30
      %v332 = vsub.s32 %v328, %v331
      %vm333 = vcmp.lt.s32.totalorder %v332, 0
      %v334 = vsub.s32 0, %v332
      %v335 = vsel %vm333, %v334, %v332
      %v336 = vclz %v335
      %v337 = vsub.s32 %v336, 2
      %vm338 = vcmp.gt.s32.totalorder 0, %v337
      %v339 = vsel %vm338, 0, %v337
      %v340 = vsub.s32 32, %v339
      %v341 = vshll.u32 %v332, %v339
      %v342 = vshrl.u32 %v324, %v340
      %v343 = vor.u32 %v341, %v342
      %v344 = vsub.s32 4294967266, %v339
      %v345 = vadd.s32 %v344, 127
      %v346 = vshll.u32 %v345, 23
      %v347 = vor.u32 4788187, %v346
      %v348 = vand.u32 2147483647, %v347
      %v350 = vcvt.s32.f32 %v343
      %v351 = vmul.f32 %v350, %v348
      %v352 = vxor.u32 %v351, 2147483648
      %v353 = vsel %vm270, %v352, %v351
      %v354 = vsub.s32 4, %v330
      %v355 = vsel %vm270, %v354, %v330
      %v356 = vsel %vm269, %v260, %v353
      %v357 = vsel %vm269, 0, %v355
      %v358 = vcosq.f32.pop %v356
      %v359 = vsinq.f32.pop %v356
      %vm360 = vweird.f32 %v260
      %v361 = vand.u32 %v357, 3
      %vm362 = vcmp.lt.s32.totalorder %v361, 2
      %vm363 = vcmp.eq.s32.totalorder %v361, 0
      %v364 = vxor.u32 %v359, 2147483648
      %v365 = vsel %vm363, %v358, %v364
      %vm366 = vcmp.eq.s32.totalorder %v361, 2
      %v367 = vxor.u32 %v358, 2147483648
      %v368 = vsel %vm366, %v367, %v359
      %v369 = vsel %vm362, %v365, %v368
      %v370 = vsel %vm360, nan, %v369
      %v371 = vand.u32 2147483647, %v261
      %vm372 = vcmp.le.f32.partialorder %v371, 0.7853982
      %vm373 = vcmp.lt.s32.totalorder %v261, 0
      %v374 = vand.u32 %v261, 2139095040
      %v375 = vshrl.u32 %v374, 23
      %v376 = vsub.s32 %v375, 127
      %v377 = vand.u32 2147483647, %v261
      %v378 = vand.u32 %v377, 8388607
      %v379 = vor.u32 %v378, 8388608
      %v380 = vsub.s32 0, %v379
      %v381 = vadd.s32 %v376, 1
      %vm382 = vcmp.gt.s32.totalorder %v381, 0
      %v383 = vsel %vm382, %v381, 0
      %v384 = vshrl.u32 %v383, 5
      %v385 = vand.u32 %v383, 31
      %v386 = vsub.s32 32, %v385
      %v387 = vshrl.u32 683565275, %v386
      %v388 = vshll.u32 683565275, %v385
      %v389 = vshrl.u32 2475754826, %v386
      %v390 = vor.u32 %v388, %v389
      %v391 = vshll.u32 2475754826, %v385
      %v392 = vshrl.u32 2131351028, %v386
      %v393 = vor.u32 %v391, %v392
      %v394 = vshll.u32 2131351028, %v385
      %v395 = vshrl.u32 2102212464, %v386
      %v396 = vor.u32 %v394, %v395
      %v397 = vshll.u32 2102212464, %v385
      %v398 = vshrl.u32 920167782, %v386
      %v399 = vor.u32 %v397, %v398
      %v400 = vshll.u32 920167782, %v385
      %v401 = vshrl.u32 1326507024, %v386
      %v402 = vor.u32 %v400, %v401
      %vm403 = vcmp.lt.s32.totalorder %v384, 1
      %vm404 = vcmp.lt.s32.totalorder %v384, 2
      %vm405 = vcmp.lt.s32.totalorder %v384, 3
      %vm406 = vcmp.lt.s32.totalorder %v384, 4
      %v407 = vsel %vm403, %v387, %v390
      %v408 = vsel %vm406, %v396, 2102212464
      %v409 = vsel %vm405, %v393, %v408
      %v410 = vsel %vm404, %v407, %v409
      %v411 = vsel %vm403, %v390, %v393
      %v412 = vsel %vm406, %v399, 920167782
      %v413 = vsel %vm405, %v396, %v412
      %v414 = vsel %vm404, %v411, %v413
      %v415 = vsel %vm403, %v393, %v396
      %v416 = vsel %vm406, %v402, 1326507024
      %v417 = vsel %vm405, %v399, %v416
      %v418 = vsel %vm404, %v415, %v417
      %v419 = vshll.u32 %v379, 8
      %v420 = vmul.u32.u64.compose %v419, %v418
      %v421 = vextract.low.u32 %v420
      %v422 = vextract.high.u32 %v420
      %v423 = vmul.u32.u64.compose %v419, %v414
      %v424 = vextract.low.u32 %v423
      %v425 = vextract.high.u32 %v423
      %v426 = vmul.u32 %v419, %v410
      %v427 = vadd.s32 %v422, %v424
      %vm428 = vc.u32 %v422, %v424
      %v429 = vadd.s32 %v425, 1
      %v430 = vsel %vm428, %v429, %v425
      %v431 = vadd.s32 %v426, %v430
      %v432 = vadd.s32 %v431, 536870912
      %v433 = vshrl.u32 %v432, 30
      %v434 = vshll.u32 %v433, 30
      %v435 = vsub.s32 %v431, %v434
      %vm436 = vcmp.lt.s32.totalorder %v435, 0
      %v437 = vsub.s32 0, %v435
      %v438 = vsel %vm436, %v437, %v435
      %v439 = vclz %v438
      %v440 = vsub.s32 %v439, 2
      %vm441 = vcmp.gt.s32.totalorder 0, %v440
      %v442 = vsel %vm441, 0, %v440
      %v443 = vsub.s32 32, %v442
      %v444 = vshll.u32 %v435, %v442
      %v445 = vshrl.u32 %v427, %v443
      %v446 = vor.u32 %v444, %v445
      %v447 = vsub.s32 4294967266, %v442
      %v448 = vadd.s32 %v447, 127
      %v449 = vshll.u32 %v448, 23
      %v450 = vor.u32 4788187, %v449
      %v451 = vand.u32 2147483647, %v450
      %v453 = vcvt.s32.f32 %v446
      %v454 = vmul.f32 %v453, %v451
      %v455 = vxor.u32 %v454, 2147483648
      %v456 = vsel %vm373, %v455, %v454
      %v457 = vsub.s32 4, %v433
      %v458 = vsel %vm373, %v457, %v433
      %v459 = vsel %vm372, %v261, %v456
      %v460 = vsel %vm372, 0, %v458
      %v461 = vcosq.f32.pop %v459
      %v462 = vsinq.f32.pop %v459
      %vm463 = vweird.f32 %v261
      %v464 = vand.u32 %v460, 3
      %vm465 = vcmp.lt.s32.totalorder %v464, 2
      %vm466 = vcmp.eq.s32.totalorder %v464, 0
      %v467 = vxor.u32 %v462, 2147483648
      %v468 = vsel %vm466, %v461, %v467
      %vm469 = vcmp.eq.s32.totalorder %v464, 2
      %v470 = vxor.u32 %v461, 2147483648
      %v471 = vsel %vm469, %v470, %v462
      %v472 = vsel %vm465, %v468, %v471
      %v473 = vsel %vm463, nan, %v472
      %v474 = vand.u32 2147483647, %v262
      %vm475 = vcmp.le.f32.partialorder %v474, 0.7853982
      %vm476 = vcmp.lt.s32.totalorder %v262, 0
      %v477 = vand.u32 %v262, 2139095040
      %v478 = vshrl.u32 %v477, 23
      %v479 = vsub.s32 %v478, 127
      %v480 = vand.u32 2147483647, %v262
      %v481 = vand.u32 %v480, 8388607
      %v482 = vor.u32 %v481, 8388608
      %v483 = vsub.s32 0, %v482
      %v484 = vadd.s32 %v479, 1
      %vm485 = vcmp.gt.s32.totalorder %v484, 0
      %v486 = vsel %vm485, %v484, 0
      %v487 = vshrl.u32 %v486, 5
      %v488 = vand.u32 %v486, 31
      %v489 = vsub.s32 32, %v488
      %v490 = vshrl.u32 683565275, %v489
      %v491 = vshll.u32 683565275, %v488
      %v492 = vshrl.u32 2475754826, %v489
      %v493 = vor.u32 %v491, %v492
      %v494 = vshll.u32 2475754826, %v488
      %v495 = vshrl.u32 2131351028, %v489
      %v496 = vor.u32 %v494, %v495
      %v497 = vshll.u32 2131351028, %v488
      %v498 = vshrl.u32 2102212464, %v489
      %v499 = vor.u32 %v497, %v498
      %v500 = vshll.u32 2102212464, %v488
      %v501 = vshrl.u32 920167782, %v489
      %v502 = vor.u32 %v500, %v501
      %v503 = vshll.u32 920167782, %v488
      %v504 = vshrl.u32 1326507024, %v489
      %v505 = vor.u32 %v503, %v504
      %vm506 = vcmp.lt.s32.totalorder %v487, 1
      %vm507 = vcmp.lt.s32.totalorder %v487, 2
      %vm508 = vcmp.lt.s32.totalorder %v487, 3
      %vm509 = vcmp.lt.s32.totalorder %v487, 4
      %v510 = vsel %vm506, %v490, %v493
      %v511 = vsel %vm509, %v499, 2102212464
      %v512 = vsel %vm508, %v496, %v511
      %v513 = vsel %vm507, %v510, %v512
      %v514 = vsel %vm506, %v493, %v496
      %v515 = vsel %vm509, %v502, 920167782
      %v516 = vsel %vm508, %v499, %v515
      %v517 = vsel %vm507, %v514, %v516
      %v518 = vsel %vm506, %v496, %v499
      %v519 = vsel %vm509, %v505, 1326507024
      %v520 = vsel %vm508, %v502, %v519
      %v521 = vsel %vm507, %v518, %v520
      %v522 = vshll.u32 %v482, 8
      %v523 = vmul.u32.u64.compose %v522, %v521
      %v524 = vextract.low.u32 %v523
      %v525 = vextract.high.u32 %v523
      %v526 = vmul.u32.u64.compose %v522, %v517
      %v527 = vextract.low.u32 %v526
      %v528 = vextract.high.u32 %v526
      %v529 = vmul.u32 %v522, %v513
      %v530 = vadd.s32 %v525, %v527
      %vm531 = vc.u32 %v525, %v527
      %v532 = vadd.s32 %v528, 1
      %v533 = vsel %vm531, %v532, %v528
      %v534 = vadd.s32 %v529, %v533
      %v535 = vadd.s32 %v534, 536870912
      %v536 = vshrl.u32 %v535, 30
      %v537 = vshll.u32 %v536, 30
      %v538 = vsub.s32 %v534, %v537
      %vm539 = vcmp.lt.s32.totalorder %v538, 0
      %v540 = vsub.s32 0, %v538
      %v541 = vsel %vm539, %v540, %v538
      %v542 = vclz %v541
      %v543 = vsub.s32 %v542, 2
      %vm544 = vcmp.gt.s32.totalorder 0, %v543
      %v545 = vsel %vm544, 0, %v543
      %v546 = vsub.s32 32, %v545
      %v547 = vshll.u32 %v538, %v545
      %v548 = vshrl.u32 %v530, %v546
      %v549 = vor.u32 %v547, %v548
      %v550 = vsub.s32 4294967266, %v545
      %v551 = vadd.s32 %v550, 127
      %v552 = vshll.u32 %v551, 23
      %v553 = vor.u32 4788187, %v552
      %v554 = vand.u32 2147483647, %v553
      %v556 = vcvt.s32.f32 %v549
      %v557 = vmul.f32 %v556, %v554
      %v558 = vxor.u32 %v557, 2147483648
      %v559 = vsel %vm476, %v558, %v557
      %v560 = vsub.s32 4, %v536
      %v561 = vsel %vm476, %v560, %v536
      %v562 = vsel %vm475, %v262, %v559
      %v563 = vsel %vm475, 0, %v561
      %v564 = vcosq.f32.pop %v562
      %v565 = vsinq.f32.pop %v562
      %vm566 = vweird.f32 %v262
      %v567 = vand.u32 %v563, 3
      %vm568 = vcmp.lt.s32.totalorder %v567, 2
      %vm569 = vcmp.eq.s32.totalorder %v567, 0
      %v570 = vxor.u32 %v565, 2147483648
      %v571 = vsel %vm569, %v564, %v570
      %vm572 = vcmp.eq.s32.totalorder %v567, 2
      %v573 = vxor.u32 %v564, 2147483648
      %v574 = vsel %vm572, %v573, %v565
      %v575 = vsel %vm568, %v571, %v574
      %v576 = vsel %vm566, nan, %v575
      %v577 = vand.u32 2147483647, %v263
      %vm578 = vcmp.le.f32.partialorder %v577, 0.7853982
      %vm579 = vcmp.lt.s32.totalorder %v263, 0
      %v580 = vand.u32 %v263, 2139095040
      %v581 = vshrl.u32 %v580, 23
      %v582 = vsub.s32 %v581, 127
      %v583 = vand.u32 2147483647, %v263
      %v584 = vand.u32 %v583, 8388607
      %v585 = vor.u32 %v584, 8388608
      %v586 = vsub.s32 0, %v585
      %v587 = vadd.s32 %v582, 1
      %vm588 = vcmp.gt.s32.totalorder %v587, 0
      %v589 = vsel %vm588, %v587, 0
      %v590 = vshrl.u32 %v589, 5
      %v591 = vand.u32 %v589, 31
      %v592 = vsub.s32 32, %v591
      %v593 = vshrl.u32 683565275, %v592
      %v594 = vshll.u32 683565275, %v591
      %v595 = vshrl.u32 2475754826, %v592
      %v596 = vor.u32 %v594, %v595
      %v597 = vshll.u32 2475754826, %v591
      %v598 = vshrl.u32 2131351028, %v592
      %v599 = vor.u32 %v597, %v598
      %v600 = vshll.u32 2131351028, %v591
      %v601 = vshrl.u32 2102212464, %v592
      %v602 = vor.u32 %v600, %v601
      %v603 = vshll.u32 2102212464, %v591
      %v604 = vshrl.u32 920167782, %v592
      %v605 = vor.u32 %v603, %v604
      %v606 = vshll.u32 920167782, %v591
      %v607 = vshrl.u32 1326507024, %v592
      %v608 = vor.u32 %v606, %v607
      %vm609 = vcmp.lt.s32.totalorder %v590, 1
      %vm610 = vcmp.lt.s32.totalorder %v590, 2
      %vm611 = vcmp.lt.s32.totalorder %v590, 3
      %vm612 = vcmp.lt.s32.totalorder %v590, 4
      %v613 = vsel %vm609, %v593, %v596
      %v614 = vsel %vm612, %v602, 2102212464
      %v615 = vsel %vm611, %v599, %v614
      %v616 = vsel %vm610, %v613, %v615
      %v617 = vsel %vm609, %v596, %v599
      %v618 = vsel %vm612, %v605, 920167782
      %v619 = vsel %vm611, %v602, %v618
      %v620 = vsel %vm610, %v617, %v619
      %v621 = vsel %vm609, %v599, %v602
      %v622 = vsel %vm612, %v608, 1326507024
      %v623 = vsel %vm611, %v605, %v622
      %v624 = vsel %vm610, %v621, %v623
      %v625 = vshll.u32 %v585, 8
      %v626 = vmul.u32.u64.compose %v625, %v624
      %v627 = vextract.low.u32 %v626
      %v628 = vextract.high.u32 %v626
      %v629 = vmul.u32.u64.compose %v625, %v620
      %v630 = vextract.low.u32 %v629
      %v631 = vextract.high.u32 %v629
      %v632 = vmul.u32 %v625, %v616
      %v633 = vadd.s32 %v628, %v630
      %vm634 = vc.u32 %v628, %v630
      %v635 = vadd.s32 %v631, 1
      %v636 = vsel %vm634, %v635, %v631
      %v637 = vadd.s32 %v632, %v636
      %v638 = vadd.s32 %v637, 536870912
      %v639 = vshrl.u32 %v638, 30
      %v640 = vshll.u32 %v639, 30
      %v641 = vsub.s32 %v637, %v640
      %vm642 = vcmp.lt.s32.totalorder %v641, 0
      %v643 = vsub.s32 0, %v641
      %v644 = vsel %vm642, %v643, %v641
      %v645 = vclz %v644
      %v646 = vsub.s32 %v645, 2
      %vm647 = vcmp.gt.s32.totalorder 0, %v646
      %v648 = vsel %vm647, 0, %v646
      %v649 = vsub.s32 32, %v648
      %v650 = vshll.u32 %v641, %v648
      %v651 = vshrl.u32 %v633, %v649
      %v652 = vor.u32 %v650, %v651
      %v653 = vsub.s32 4294967266, %v648
      %v654 = vadd.s32 %v653, 127
      %v655 = vshll.u32 %v654, 23
      %v656 = vor.u32 4788187, %v655
      %v657 = vand.u32 2147483647, %v656
      %v659 = vcvt.s32.f32 %v652
      %v660 = vmul.f32 %v659, %v657
      %v661 = vxor.u32 %v660, 2147483648
      %v662 = vsel %vm579, %v661, %v660
      %v663 = vsub.s32 4, %v639
      %v664 = vsel %vm579, %v663, %v639
      %v665 = vsel %vm578, %v263, %v662
      %v666 = vsel %vm578, 0, %v664
      %v667 = vcosq.f32.pop %v665
      %v668 = vsinq.f32.pop %v665
      %vm669 = vweird.f32 %v263
      %v670 = vand.u32 %v666, 3
      %vm671 = vcmp.lt.s32.totalorder %v670, 2
      %vm672 = vcmp.eq.s32.totalorder %v670, 0
      %v673 = vxor.u32 %v668, 2147483648
      %v674 = vsel %vm672, %v667, %v673
      %vm675 = vcmp.eq.s32.totalorder %v670, 2
      %v676 = vxor.u32 %v667, 2147483648
      %v677 = vsel %vm675, %v676, %v668
      %v678 = vsel %vm671, %v674, %v677
      %v679 = vsel %vm669, nan, %v678
      %v680 = vand.u32 2147483647, %v264
      %vm681 = vcmp.le.f32.partialorder %v680, 0.7853982
      %vm682 = vcmp.lt.s32.totalorder %v264, 0
      %v683 = vand.u32 %v264, 2139095040
      %v684 = vshrl.u32 %v683, 23
      %v685 = vsub.s32 %v684, 127
      %v686 = vand.u32 2147483647, %v264
      %v687 = vand.u32 %v686, 8388607
      %v688 = vor.u32 %v687, 8388608
      %v689 = vsub.s32 0, %v688
      %v690 = vadd.s32 %v685, 1
      %vm691 = vcmp.gt.s32.totalorder %v690, 0
      %v692 = vsel %vm691, %v690, 0
      %v693 = vshrl.u32 %v692, 5
      %v694 = vand.u32 %v692, 31
      %v695 = vsub.s32 32, %v694
      %v696 = vshrl.u32 683565275, %v695
      %v697 = vshll.u32 683565275, %v694
      %v698 = vshrl.u32 2475754826, %v695
      %v699 = vor.u32 %v697, %v698
      %v700 = vshll.u32 2475754826, %v694
      %v701 = vshrl.u32 2131351028, %v695
      %v702 = vor.u32 %v700, %v701
      %v703 = vshll.u32 2131351028, %v694
      %v704 = vshrl.u32 2102212464, %v695
      %v705 = vor.u32 %v703, %v704
      %v706 = vshll.u32 2102212464, %v694
      %v707 = vshrl.u32 920167782, %v695
      %v708 = vor.u32 %v706, %v707
      %v709 = vshll.u32 920167782, %v694
      %v710 = vshrl.u32 1326507024, %v695
      %v711 = vor.u32 %v709, %v710
      %vm712 = vcmp.lt.s32.totalorder %v693, 1
      %vm713 = vcmp.lt.s32.totalorder %v693, 2
      %vm714 = vcmp.lt.s32.totalorder %v693, 3
      %vm715 = vcmp.lt.s32.totalorder %v693, 4
      %v716 = vsel %vm712, %v696, %v699
      %v717 = vsel %vm715, %v705, 2102212464
      %v718 = vsel %vm714, %v702, %v717
      %v719 = vsel %vm713, %v716, %v718
      %v720 = vsel %vm712, %v699, %v702
      %v721 = vsel %vm715, %v708, 920167782
      %v722 = vsel %vm714, %v705, %v721
      %v723 = vsel %vm713, %v720, %v722
      %v724 = vsel %vm712, %v702, %v705
      %v725 = vsel %vm715, %v711, 1326507024
      %v726 = vsel %vm714, %v708, %v725
      %v727 = vsel %vm713, %v724, %v726
      %v728 = vshll.u32 %v688, 8
      %v729 = vmul.u32.u64.compose %v728, %v727
      %v730 = vextract.low.u32 %v729
      %v731 = vextract.high.u32 %v729
      %v732 = vmul.u32.u64.compose %v728, %v723
      %v733 = vextract.low.u32 %v732
      %v734 = vextract.high.u32 %v732
      %v735 = vmul.u32 %v728, %v719
      %v736 = vadd.s32 %v731, %v733
      %vm737 = vc.u32 %v731, %v733
      %v738 = vadd.s32 %v734, 1
      %v739 = vsel %vm737, %v738, %v734
      %v740 = vadd.s32 %v735, %v739
      %v741 = vadd.s32 %v740, 536870912
      %v742 = vshrl.u32 %v741, 30
      %v743 = vshll.u32 %v742, 30
      %v744 = vsub.s32 %v740, %v743
      %vm745 = vcmp.lt.s32.totalorder %v744, 0
      %v746 = vsub.s32 0, %v744
      %v747 = vsel %vm745, %v746, %v744
      %v748 = vclz %v747
      %v749 = vsub.s32 %v748, 2
      %vm750 = vcmp.gt.s32.totalorder 0, %v749
      %v751 = vsel %vm750, 0, %v749
      %v752 = vsub.s32 32, %v751
      %v753 = vshll.u32 %v744, %v751
      %v754 = vshrl.u32 %v736, %v752
      %v755 = vor.u32 %v753, %v754
      %v756 = vsub.s32 4294967266, %v751
      %v757 = vadd.s32 %v756, 127
      %v758 = vshll.u32 %v757, 23
      %v759 = vor.u32 4788187, %v758
      %v760 = vand.u32 2147483647, %v759
      %v762 = vcvt.s32.f32 %v755
      %v763 = vmul.f32 %v762, %v760
      %v764 = vxor.u32 %v763, 2147483648
      %v765 = vsel %vm682, %v764, %v763
      %v766 = vsub.s32 4, %v742
      %v767 = vsel %vm682, %v766, %v742
      %v768 = vsel %vm681, %v264, %v765
      %v769 = vsel %vm681, 0, %v767
      %v770 = vcosq.f32.pop %v768
      %v771 = vsinq.f32.pop %v768
      %vm772 = vweird.f32 %v264
      %v773 = vand.u32 %v769, 3
      %vm774 = vcmp.lt.s32.totalorder %v773, 2
      %vm775 = vcmp.eq.s32.totalorder %v773, 0
      %v776 = vxor.u32 %v771, 2147483648
      %v777 = vsel %vm775, %v770, %v776
      %vm778 = vcmp.eq.s32.totalorder %v773, 2
      %v779 = vxor.u32 %v770, 2147483648
      %v780 = vsel %vm778, %v779, %v771
      %v781 = vsel %vm774, %v777, %v780
      %v782 = vsel %vm772, nan, %v781
      %v783 = vand.u32 2147483647, %v265
      %vm784 = vcmp.le.f32.partialorder %v783, 0.7853982
      %vm785 = vcmp.lt.s32.totalorder %v265, 0
      %v786 = vand.u32 %v265, 2139095040
      %v787 = vshrl.u32 %v786, 23
      %v788 = vsub.s32 %v787, 127
      %v789 = vand.u32 2147483647, %v265
      %v790 = vand.u32 %v789, 8388607
      %v791 = vor.u32 %v790, 8388608
      %v792 = vsub.s32 0, %v791
      %v793 = vadd.s32 %v788, 1
      %vm794 = vcmp.gt.s32.totalorder %v793, 0
      %v795 = vsel %vm794, %v793, 0
      %v796 = vshrl.u32 %v795, 5
      %v797 = vand.u32 %v795, 31
      %v798 = vsub.s32 32, %v797
      %v799 = vshrl.u32 683565275, %v798
      %v800 = vshll.u32 683565275, %v797
      %v801 = vshrl.u32 2475754826, %v798
      %v802 = vor.u32 %v800, %v801
      %v803 = vshll.u32 2475754826, %v797
      %v804 = vshrl.u32 2131351028, %v798
      %v805 = vor.u32 %v803, %v804
      %v806 = vshll.u32 2131351028, %v797
      %v807 = vshrl.u32 2102212464, %v798
      %v808 = vor.u32 %v806, %v807
      %v809 = vshll.u32 2102212464, %v797
      %v810 = vshrl.u32 920167782, %v798
      %v811 = vor.u32 %v809, %v810
      %v812 = vshll.u32 920167782, %v797
      %v813 = vshrl.u32 1326507024, %v798
      %v814 = vor.u32 %v812, %v813
      %vm815 = vcmp.lt.s32.totalorder %v796, 1
      %vm816 = vcmp.lt.s32.totalorder %v796, 2
      %vm817 = vcmp.lt.s32.totalorder %v796, 3
      %vm818 = vcmp.lt.s32.totalorder %v796, 4
      %v819 = vsel %vm815, %v799, %v802
      %v820 = vsel %vm818, %v808, 2102212464
      %v821 = vsel %vm817, %v805, %v820
      %v822 = vsel %vm816, %v819, %v821
      %v823 = vsel %vm815, %v802, %v805
      %v824 = vsel %vm818, %v811, 920167782
      %v825 = vsel %vm817, %v808, %v824
      %v826 = vsel %vm816, %v823, %v825
      %v827 = vsel %vm815, %v805, %v808
      %v828 = vsel %vm818, %v814, 1326507024
      %v829 = vsel %vm817, %v811, %v828
      %v830 = vsel %vm816, %v827, %v829
      %v831 = vshll.u32 %v791, 8
      %v832 = vmul.u32.u64.compose %v831, %v830
      %v833 = vextract.low.u32 %v832
      %v834 = vextract.high.u32 %v832
      %v835 = vmul.u32.u64.compose %v831, %v826
      %v836 = vextract.low.u32 %v835
      %v837 = vextract.high.u32 %v835
      %v838 = vmul.u32 %v831, %v822
      %v839 = vadd.s32 %v834, %v836
      %vm840 = vc.u32 %v834, %v836
      %v841 = vadd.s32 %v837, 1
      %v842 = vsel %vm840, %v841, %v837
      %v843 = vadd.s32 %v838, %v842
      %v844 = vadd.s32 %v843, 536870912
      %v845 = vshrl.u32 %v844, 30
      %v846 = vshll.u32 %v845, 30
      %v847 = vsub.s32 %v843, %v846
      %vm848 = vcmp.lt.s32.totalorder %v847, 0
      %v849 = vsub.s32 0, %v847
      %v850 = vsel %vm848, %v849, %v847
      %v851 = vclz %v850
      %v852 = vsub.s32 %v851, 2
      %vm853 = vcmp.gt.s32.totalorder 0, %v852
      %v854 = vsel %vm853, 0, %v852
      %v855 = vsub.s32 32, %v854
      %v856 = vshll.u32 %v847, %v854
      %v857 = vshrl.u32 %v839, %v855
      %v858 = vor.u32 %v856, %v857
      %v859 = vsub.s32 4294967266, %v854
      %v860 = vadd.s32 %v859, 127
      %v861 = vshll.u32 %v860, 23
      %v862 = vor.u32 4788187, %v861
      %v863 = vand.u32 2147483647, %v862
      %v865 = vcvt.s32.f32 %v858
      %v866 = vmul.f32 %v865, %v863
      %v867 = vxor.u32 %v866, 2147483648
      %v868 = vsel %vm785, %v867, %v866
      %v869 = vsub.s32 4, %v845
      %v870 = vsel %vm785, %v869, %v845
      %v871 = vsel %vm784, %v265, %v868
      %v872 = vsel %vm784, 0, %v870
      %v873 = vcosq.f32.pop %v871
      %v874 = vsinq.f32.pop %v871
      %vm875 = vweird.f32 %v265
      %v876 = vand.u32 %v872, 3
      %vm877 = vcmp.lt.s32.totalorder %v876, 2
      %vm878 = vcmp.eq.s32.totalorder %v876, 0
      %v879 = vxor.u32 %v874, 2147483648
      %v880 = vsel %vm878, %v873, %v879
      %vm881 = vcmp.eq.s32.totalorder %v876, 2
      %v882 = vxor.u32 %v873, 2147483648
      %v883 = vsel %vm881, %v882, %v874
      %v884 = vsel %vm877, %v880, %v883
      %v885 = vsel %vm875, nan, %v884
      %v886 = vand.u32 2147483647, %v266
      %vm887 = vcmp.le.f32.partialorder %v886, 0.7853982
      %vm888 = vcmp.lt.s32.totalorder %v266, 0
      %v889 = vand.u32 %v266, 2139095040
      %v890 = vshrl.u32 %v889, 23
      %v891 = vsub.s32 %v890, 127
      %v892 = vand.u32 2147483647, %v266
      %v893 = vand.u32 %v892, 8388607
      %v894 = vor.u32 %v893, 8388608
      %v895 = vsub.s32 0, %v894
      %v896 = vadd.s32 %v891, 1
      %vm897 = vcmp.gt.s32.totalorder %v896, 0
      %v898 = vsel %vm897, %v896, 0
      %v899 = vshrl.u32 %v898, 5
      %v900 = vand.u32 %v898, 31
      %v901 = vsub.s32 32, %v900
      %v902 = vshrl.u32 683565275, %v901
      %v903 = vshll.u32 683565275, %v900
      %v904 = vshrl.u32 2475754826, %v901
      %v905 = vor.u32 %v903, %v904
      %v906 = vshll.u32 2475754826, %v900
      %v907 = vshrl.u32 2131351028, %v901
      %v908 = vor.u32 %v906, %v907
      %v909 = vshll.u32 2131351028, %v900
      %v910 = vshrl.u32 2102212464, %v901
      %v911 = vor.u32 %v909, %v910
      %v912 = vshll.u32 2102212464, %v900
      %v913 = vshrl.u32 920167782, %v901
      %v914 = vor.u32 %v912, %v913
      %v915 = vshll.u32 920167782, %v900
      %v916 = vshrl.u32 1326507024, %v901
      %v917 = vor.u32 %v915, %v916
      %vm918 = vcmp.lt.s32.totalorder %v899, 1
      %vm919 = vcmp.lt.s32.totalorder %v899, 2
      %vm920 = vcmp.lt.s32.totalorder %v899, 3
      %vm921 = vcmp.lt.s32.totalorder %v899, 4
      %v922 = vsel %vm918, %v902, %v905
      %v923 = vsel %vm921, %v911, 2102212464
      %v924 = vsel %vm920, %v908, %v923
      %v925 = vsel %vm919, %v922, %v924
      %v926 = vsel %vm918, %v905, %v908
      %v927 = vsel %vm921, %v914, 920167782
      %v928 = vsel %vm920, %v911, %v927
      %v929 = vsel %vm919, %v926, %v928
      %v930 = vsel %vm918, %v908, %v911
      %v931 = vsel %vm921, %v917, 1326507024
      %v932 = vsel %vm920, %v914, %v931
      %v933 = vsel %vm919, %v930, %v932
      %v934 = vshll.u32 %v894, 8
      %v935 = vmul.u32.u64.compose %v934, %v933
      %v936 = vextract.low.u32 %v935
      %v937 = vextract.high.u32 %v935
      %v938 = vmul.u32.u64.compose %v934, %v929
      %v939 = vextract.low.u32 %v938
      %v940 = vextract.high.u32 %v938
      %v941 = vmul.u32 %v934, %v925
      %v942 = vadd.s32 %v937, %v939
      %vm943 = vc.u32 %v937, %v939
      %v944 = vadd.s32 %v940, 1
      %v945 = vsel %vm943, %v944, %v940
      %v946 = vadd.s32 %v941, %v945
      %v947 = vadd.s32 %v946, 536870912
      %v948 = vshrl.u32 %v947, 30
      %v949 = vshll.u32 %v948, 30
      %v950 = vsub.s32 %v946, %v949
      %vm951 = vcmp.lt.s32.totalorder %v950, 0
      %v952 = vsub.s32 0, %v950
      %v953 = vsel %vm951, %v952, %v950
      %v954 = vclz %v953
      %v955 = vsub.s32 %v954, 2
      %vm956 = vcmp.gt.s32.totalorder 0, %v955
      %v957 = vsel %vm956, 0, %v955
      %v958 = vsub.s32 32, %v957
      %v959 = vshll.u32 %v950, %v957
      %v960 = vshrl.u32 %v942, %v958
      %v961 = vor.u32 %v959, %v960
      %v962 = vsub.s32 4294967266, %v957
      %v963 = vadd.s32 %v962, 127
      %v964 = vshll.u32 %v963, 23
      %v965 = vor.u32 4788187, %v964
      %v966 = vand.u32 2147483647, %v965
      %v968 = vcvt.s32.f32 %v961
      %v969 = vmul.f32 %v968, %v966
      %v970 = vxor.u32 %v969, 2147483648
      %v971 = vsel %vm888, %v970, %v969
      %v972 = vsub.s32 4, %v948
      %v973 = vsel %vm888, %v972, %v948
      %v974 = vsel %vm887, %v266, %v971
      %v975 = vsel %vm887, 0, %v973
      %v976 = vcosq.f32.pop %v974
      %v977 = vsinq.f32.pop %v974
      %vm978 = vweird.f32 %v266
      %v979 = vand.u32 %v975, 3
      %vm980 = vcmp.lt.s32.totalorder %v979, 2
      %vm981 = vcmp.eq.s32.totalorder %v979, 0
      %v982 = vxor.u32 %v977, 2147483648
      %v983 = vsel %vm981, %v976, %v982
      %vm984 = vcmp.eq.s32.totalorder %v979, 2
      %v985 = vxor.u32 %v976, 2147483648
      %v986 = vsel %vm984, %v985, %v977
      %v987 = vsel %vm980, %v983, %v986
      %v988 = vsel %vm978, nan, %v987
      %v989 = vand.u32 2147483647, %v267
      %vm990 = vcmp.le.f32.partialorder %v989, 0.7853982
      %vm991 = vcmp.lt.s32.totalorder %v267, 0
      %v992 = vand.u32 %v267, 2139095040
      %v993 = vshrl.u32 %v992, 23
      %v994 = vsub.s32 %v993, 127
      %v995 = vand.u32 2147483647, %v267
      %v996 = vand.u32 %v995, 8388607
      %v997 = vor.u32 %v996, 8388608
      %v998 = vsub.s32 0, %v997
      %v999 = vadd.s32 %v994, 1
      %vm1000 = vcmp.gt.s32.totalorder %v999, 0
      %v1001 = vsel %vm1000, %v999, 0
      %v1002 = vshrl.u32 %v1001, 5
      %v1003 = vand.u32 %v1001, 31
      %v1004 = vsub.s32 32, %v1003
      %v1005 = vshrl.u32 683565275, %v1004
      %v1006 = vshll.u32 683565275, %v1003
      %v1007 = vshrl.u32 2475754826, %v1004
      %v1008 = vor.u32 %v1006, %v1007
      %v1009 = vshll.u32 2475754826, %v1003
      %v1010 = vshrl.u32 2131351028, %v1004
      %v1011 = vor.u32 %v1009, %v1010
      %v1012 = vshll.u32 2131351028, %v1003
      %v1013 = vshrl.u32 2102212464, %v1004
      %v1014 = vor.u32 %v1012, %v1013
      %v1015 = vshll.u32 2102212464, %v1003
      %v1016 = vshrl.u32 920167782, %v1004
      %v1017 = vor.u32 %v1015, %v1016
      %v1018 = vshll.u32 920167782, %v1003
      %v1019 = vshrl.u32 1326507024, %v1004
      %v1020 = vor.u32 %v1018, %v1019
      %vm1021 = vcmp.lt.s32.totalorder %v1002, 1
      %vm1022 = vcmp.lt.s32.totalorder %v1002, 2
      %vm1023 = vcmp.lt.s32.totalorder %v1002, 3
      %vm1024 = vcmp.lt.s32.totalorder %v1002, 4
      %v1025 = vsel %vm1021, %v1005, %v1008
      %v1026 = vsel %vm1024, %v1014, 2102212464
      %v1027 = vsel %vm1023, %v1011, %v1026
      %v1028 = vsel %vm1022, %v1025, %v1027
      %v1029 = vsel %vm1021, %v1008, %v1011
      %v1030 = vsel %vm1024, %v1017, 920167782
      %v1031 = vsel %vm1023, %v1014, %v1030
      %v1032 = vsel %vm1022, %v1029, %v1031
      %v1033 = vsel %vm1021, %v1011, %v1014
      %v1034 = vsel %vm1024, %v1020, 1326507024
      %v1035 = vsel %vm1023, %v1017, %v1034
      %v1036 = vsel %vm1022, %v1033, %v1035
      %v1037 = vshll.u32 %v997, 8
      %v1038 = vmul.u32.u64.compose %v1037, %v1036
      %v1039 = vextract.low.u32 %v1038
      %v1040 = vextract.high.u32 %v1038
      %v1041 = vmul.u32.u64.compose %v1037, %v1032
      %v1042 = vextract.low.u32 %v1041
      %v1043 = vextract.high.u32 %v1041
      %v1044 = vmul.u32 %v1037, %v1028
      %v1045 = vadd.s32 %v1040, %v1042
      %vm1046 = vc.u32 %v1040, %v1042
      %v1047 = vadd.s32 %v1043, 1
      %v1048 = vsel %vm1046, %v1047, %v1043
      %v1049 = vadd.s32 %v1044, %v1048
      %v1050 = vadd.s32 %v1049, 536870912
      %v1051 = vshrl.u32 %v1050, 30
      %v1052 = vshll.u32 %v1051, 30
      %v1053 = vsub.s32 %v1049, %v1052
      %vm1054 = vcmp.lt.s32.totalorder %v1053, 0
      %v1055 = vsub.s32 0, %v1053
      %v1056 = vsel %vm1054, %v1055, %v1053
      %v1057 = vclz %v1056
      %v1058 = vsub.s32 %v1057, 2
      %vm1059 = vcmp.gt.s32.totalorder 0, %v1058
      %v1060 = vsel %vm1059, 0, %v1058
      %v1061 = vsub.s32 32, %v1060
      %v1062 = vshll.u32 %v1053, %v1060
      %v1063 = vshrl.u32 %v1045, %v1061
      %v1064 = vor.u32 %v1062, %v1063
      %v1065 = vsub.s32 4294967266, %v1060
      %v1066 = vadd.s32 %v1065, 127
      %v1067 = vshll.u32 %v1066, 23
      %v1068 = vor.u32 4788187, %v1067
      %v1069 = vand.u32 2147483647, %v1068
      %v1071 = vcvt.s32.f32 %v1064
      %v1072 = vmul.f32 %v1071, %v1069
      %v1073 = vxor.u32 %v1072, 2147483648
      %v1074 = vsel %vm991, %v1073, %v1072
      %v1075 = vsub.s32 4, %v1051
      %v1076 = vsel %vm991, %v1075, %v1051
      %v1077 = vsel %vm990, %v267, %v1074
      %v1078 = vsel %vm990, 0, %v1076
      %v1079 = vcosq.f32.pop %v1077
      %v1080 = vsinq.f32.pop %v1077
      %vm1081 = vweird.f32 %v267
      %v1082 = vand.u32 %v1078, 3
      %vm1083 = vcmp.lt.s32.totalorder %v1082, 2
      %vm1084 = vcmp.eq.s32.totalorder %v1082, 0
      %v1085 = vxor.u32 %v1080, 2147483648
      %v1086 = vsel %vm1084, %v1079, %v1085
      %vm1087 = vcmp.eq.s32.totalorder %v1082, 2
      %v1088 = vxor.u32 %v1079, 2147483648
      %v1089 = vsel %vm1087, %v1088, %v1080
      %v1090 = vsel %vm1083, %v1086, %v1089
      %v1091 = vsel %vm1081, nan, %v1090
      %v1092 = vmul.f32 %v370, %v180
      %v1093 = vmul.f32 %v473, %v182
      %v1094 = vmul.f32 %v576, %v184
      %v1095 = vmul.f32 %v679, %v186
      %v1096 = vmul.f32 %v782, %v188
      %v1097 = vmul.f32 %v885, %v190
      %v1098 = vmul.f32 %v988, %v192
      %v1099 = vmul.f32 %v1091, %v194
      %1108 = vrot.lane.b32.xlu0 %v155, 64
      %v1109 = vpop.permute.xlu0 %1108
      %1110 = vrot.lane.b32.xlu0 %v156, 64
      %v1111 = vpop.permute.xlu0 %1110
      %1112 = vrot.lane.b32.xlu0 %v157, 64
      %v1113 = vpop.permute.xlu0 %1112
      %1114 = vrot.lane.b32.xlu0 %v158, 64
      %v1115 = vpop.permute.xlu0 %1114
      %1116 = vrot.lane.b32.xlu0 %v159, 64
      %v1117 = vpop.permute.xlu0 %1116
      %1118 = vrot.lane.b32.xlu0 %v160, 64
      %v1119 = vpop.permute.xlu0 %1118
      %1120 = vrot.lane.b32.xlu0 %v161, 64
      %v1121 = vpop.permute.xlu0 %1120
      %1122 = vrot.lane.b32.xlu0 %v162, 64
      %v1123 = vpop.permute.xlu0 %1122
      %vm1132 = vcmask 523264
      %v1133 = vsel %vm1132, %v155, 0
      %v1135 = vsel %vm1132, %v156, 0
      %v1137 = vsel %vm1132, %v157, 0
      %v1139 = vsel %vm1132, %v158, 0
      %v1141 = vsel %vm1132, %v159, 0
      %v1143 = vsel %vm1132, %v160, 0
      %v1145 = vsel %vm1132, %v161, 0
      %v1147 = vsel %vm1132, %v162, 0
      %1149 = vmatprep.subr.mxu0 0.0
      %1150 = vmatpush1.msra.mxu0 %v1109
      %1151 = vmatprep.subr.mxu0 0.0
      %1152 = vmatpush1.msra.mxu0 %v1111
      %1153 = vmatprep.subr.mxu0 0.0
      %1154 = vmatpush1.msra.mxu0 %v1113
      %1155 = vmatprep.subr.mxu0 0.0
      %1156 = vmatpush1.msra.mxu0 %v1115
      %1157 = vmatprep.subr.mxu0 0.0
      %1158 = vmatpush1.msra.mxu0 %v1117
      %1159 = vmatprep.subr.mxu0 0.0
      %1160 = vmatpush1.msra.mxu0 %v1119
      %1161 = vmatprep.subr.mxu0 0.0
      %1162 = vmatpush1.msra.mxu0 %v1121
      %1163 = vmatprep.subr.mxu0 0.0
      %1164 = vmatpush1.msra.mxu0 %v1123
      %1165 = vmatprep.subr.mxu0 0.0
      %1166 = vmatpush1.msra.mxu0 0.0
      %1167 = vmatprep.subr.mxu0 0.0
      %1168 = vmatpush1.msra.mxu0 0.0
      %1169 = vmatprep.subr.mxu0 0.0
      %1170 = vmatpush1.msra.mxu0 0.0
      %1171 = vmatprep.subr.mxu0 0.0
      %1172 = vmatpush1.msra.mxu0 0.0
      %1173 = vmatprep.subr.mxu0 0.0
      %1174 = vmatpush1.msra.mxu0 0.0
      %1175 = vmatprep.subr.mxu0 0.0
      %1176 = vmatpush1.msra.mxu0 0.0
      %1177 = vmatprep.subr.mxu0 0.0
      %1178 = vmatpush1.msra.mxu0 0.0
      %1179 = vmatprep.subr.mxu0 0.0
      %1180 = vmatpush1.msra.mxu0 0.0
      %1181 = vmatprep.subr.mxu0 0.0
      %1182 = vmatpush1.msra.mxu0 0.0
      %1183 = vmatprep.subr.mxu0 0.0
      %1184 = vmatpush1.msra.mxu0 0.0
      %1185 = vmatprep.subr.mxu0 0.0
      %1186 = vmatpush1.msra.mxu0 0.0
      %1187 = vmatprep.subr.mxu0 0.0
      %1188 = vmatpush1.msra.mxu0 0.0
      %1189 = vmatprep.subr.mxu0 0.0
      %1190 = vmatpush1.msra.mxu0 0.0
      %1191 = vmatprep.subr.mxu0 0.0
      %1192 = vmatpush1.msra.mxu0 0.0
      %1193 = vmatprep.subr.mxu0 0.0
      %1194 = vmatpush1.msra.mxu0 0.0
      %1195 = vmatprep.subr.mxu0 0.0
      %1196 = vmatpush1.msra.mxu0 0.0
      %1197 = vmatprep.subr.mxu0 0.0
      %1198 = vmatpush1.msra.mxu0 0.0
      %1199 = vmatprep.subr.mxu0 0.0
      %1200 = vmatpush1.msra.mxu0 0.0
      %1201 = vmatprep.subr.mxu0 0.0
      %1202 = vmatpush1.msra.mxu0 0.0
      %1203 = vmatprep.subr.mxu0 0.0
      %1204 = vmatpush1.msra.mxu0 0.0
      %1205 = vmatprep.subr.mxu0 0.0
      %1206 = vmatpush1.msra.mxu0 0.0
      %1207 = vmatprep.subr.mxu0 0.0
      %1208 = vmatpush1.msra.mxu0 0.0
      %1209 = vmatprep.subr.mxu0 0.0
      %1210 = vmatpush1.msra.mxu0 0.0
      %1211 = vmatprep.subr.mxu0 0.0
      %1212 = vmatpush1.msra.mxu0 0.0
      %1213 = vmatprep.mubr.f32.mxu0 0.0
      %1214 = vmatmul.mubr.f32.gmra.mrb[0].mxu0 %v1133
      %v1215 = vpop.f32.mrb[0].mxu0
      %v1216 = vadd.f32 0.0, %v1215
      %v1217 = vpop.f32.mrb[0].mxu0
      %1218 = vmatprep.mubr.f32.mxu0 0.0
      %1219 = vmatmul.mubr.f32.gmra.mrb[0].mxu0 %v1135
      %v1220 = vpop.f32.mrb[0].mxu0
      %v1221 = vadd.f32 0.0, %v1220
      %v1222 = vpop.f32.mrb[0].mxu0
      %1223 = vmatprep.mubr.f32.mxu0 0.0
      %1224 = vmatmul.mubr.f32.gmra.mrb[0].mxu0 %v1137
      %v1225 = vpop.f32.mrb[0].mxu0
      %v1226 = vadd.f32 0.0, %v1225
      %v1227 = vpop.f32.mrb[0].mxu0
      %1228 = vmatprep.mubr.f32.mxu0 0.0
      %1229 = vmatmul.mubr.f32.gmra.mrb[0].mxu0 %v1139
      %v1230 = vpop.f32.mrb[0].mxu0
      %v1231 = vadd.f32 0.0, %v1230
      %v1232 = vpop.f32.mrb[0].mxu0
      %1233 = vmatprep.mubr.f32.mxu0 0.0
      %1234 = vmatmul.mubr.f32.gmra.mrb[0].mxu0 %v1141
      %v1235 = vpop.f32.mrb[0].mxu0
      %v1236 = vadd.f32 0.0, %v1235
      %v1237 = vpop.f32.mrb[0].mxu0
      %1238 = vmatprep.mubr.f32.mxu0 0.0
      %1239 = vmatmul.mubr.f32.gmra.mrb[0].mxu0 %v1143
      %v1240 = vpop.f32.mrb[0].mxu0
      %v1241 = vadd.f32 0.0, %v1240
      %v1242 = vpop.f32.mrb[0].mxu0
      %1243 = vmatprep.mubr.f32.mxu0 0.0
      %1244 = vmatmul.mubr.f32.gmra.mrb[0].mxu0 %v1145
      %v1245 = vpop.f32.mrb[0].mxu0
      %v1246 = vadd.f32 0.0, %v1245
      %v1247 = vpop.f32.mrb[0].mxu0
      %1248 = vmatprep.mubr.f32.mxu0 0.0
      %1249 = vmatmul.mubr.f32.gmra.mrb[0].mxu0 %v1147
      %v1250 = vpop.f32.mrb[0].mxu0
      %v1251 = vadd.f32 0.0, %v1250
      %v1252 = vpop.f32.mrb[0].mxu0
      %1253 = vdwg.mxu0
      %v1255 = vsel %vm1132, %v1092, 0
      %v1258 = vsel %vm1132, %v1093, 0
      %v1261 = vsel %vm1132, %v1094, 0
      %v1264 = vsel %vm1132, %v1095, 0
      %v1267 = vsel %vm1132, %v1096, 0
      %v1270 = vsel %vm1132, %v1097, 0
      %v1273 = vsel %vm1132, %v1098, 0
      %v1276 = vsel %vm1132, %v1099, 0
      %1278 = vmatprep.subr.mxu0 0.0
      %1279 = vmatpush1.msra.mxu0 %v142
      %1280 = vmatprep.subr.mxu0 0.0
      %1281 = vmatpush1.msra.mxu0 %v143
      %1282 = vmatprep.subr.mxu0 0.0
      %1283 = vmatpush1.msra.mxu0 %v144
      %1284 = vmatprep.subr.mxu0 0.0
      %1285 = vmatpush1.msra.mxu0 %v145
      %1286 = vmatprep.subr.mxu0 0.0
      %1287 = vmatpush1.msra.mxu0 %v146
      %1288 = vmatprep.subr.mxu0 0.0
      %1289 = vmatpush1.msra.mxu0 %v147
      %1290 = vmatprep.subr.mxu0 0.0
      %1291 = vmatpush1.msra.mxu0 %v148
      %1292 = vmatprep.subr.mxu0 0.0
      %1293 = vmatpush1.msra.mxu0 %v149
      %1294 = vmatprep.subr.mxu0 0.0
      %1295 = vmatpush1.msra.mxu0 0.0
      %1296 = vmatprep.subr.mxu0 0.0
      %1297 = vmatpush1.msra.mxu0 0.0
      %1298 = vmatprep.subr.mxu0 0.0
      %1299 = vmatpush1.msra.mxu0 0.0
      %1300 = vmatprep.subr.mxu0 0.0
      %1301 = vmatpush1.msra.mxu0 0.0
      %1302 = vmatprep.subr.mxu0 0.0
      %1303 = vmatpush1.msra.mxu0 0.0
      %1304 = vmatprep.subr.mxu0 0.0
      %1305 = vmatpush1.msra.mxu0 0.0
      %1306 = vmatprep.subr.mxu0 0.0
      %1307 = vmatpush1.msra.mxu0 0.0
      %1308 = vmatprep.subr.mxu0 0.0
      %1309 = vmatpush1.msra.mxu0 0.0
      %1310 = vmatprep.subr.mxu0 0.0
      %1311 = vmatpush1.msra.mxu0 0.0
      %1312 = vmatprep.subr.mxu0 0.0
      %1313 = vmatpush1.msra.mxu0 0.0
      %1314 = vmatprep.subr.mxu0 0.0
      %1315 = vmatpush1.msra.mxu0 0.0
      %1316 = vmatprep.subr.mxu0 0.0
      %1317 = vmatpush1.msra.mxu0 0.0
      %1318 = vmatprep.subr.mxu0 0.0
      %1319 = vmatpush1.msra.mxu0 0.0
      %1320 = vmatprep.subr.mxu0 0.0
      %1321 = vmatpush1.msra.mxu0 0.0
      %1322 = vmatprep.subr.mxu0 0.0
      %1323 = vmatpush1.msra.mxu0 0.0
      %1324 = vmatprep.subr.mxu0 0.0
      %1325 = vmatpush1.msra.mxu0 0.0
      %1326 = vmatprep.subr.mxu0 0.0
      %1327 = vmatpush1.msra.mxu0 0.0
      %1328 = vmatprep.subr.mxu0 0.0
      %1329 = vmatpush1.msra.mxu0 0.0
      %1330 = vmatprep.subr.mxu0 0.0
      %1331 = vmatpush1.msra.mxu0 0.0
      %1332 = vmatprep.subr.mxu0 0.0
      %1333 = vmatpush1.msra.mxu0 0.0
      %1334 = vmatprep.subr.mxu0 0.0
      %1335 = vmatpush1.msra.mxu0 0.0
      %1336 = vmatprep.subr.mxu0 0.0
      %1337 = vmatpush1.msra.mxu0 0.0
      %1338 = vmatprep.subr.mxu0 0.0
      %1339 = vmatpush1.msra.mxu0 0.0
      %1340 = vmatprep.subr.mxu0 0.0
      %1341 = vmatpush1.msra.mxu0 0.0
      %1342 = vmatprep.mubr.f32.mxu0 0.0
      %1343 = vmatmul.mubr.f32.gmra.mrb[0].mxu0 %v1255
      %v1344 = vpop.f32.mrb[0].mxu0
      %v1345 = vadd.f32 0.0, %v1344
      %v1346 = vpop.f32.mrb[0].mxu0
      %1347 = vmatprep.mubr.f32.mxu0 0.0
      %1348 = vmatmul.mubr.f32.gmra.mrb[0].mxu0 %v1258
      %v1349 = vpop.f32.mrb[0].mxu0
      %v1350 = vadd.f32 0.0, %v1349
      %v1351 = vpop.f32.mrb[0].mxu0
      %1352 = vmatprep.mubr.f32.mxu0 0.0
      %1353 = vmatmul.mubr.f32.gmra.mrb[0].mxu0 %v1261
      %v1354 = vpop.f32.mrb[0].mxu0
      %v1355 = vadd.f32 0.0, %v1354
      %v1356 = vpop.f32.mrb[0].mxu0
      %1357 = vmatprep.mubr.f32.mxu0 0.0
      %1358 = vmatmul.mubr.f32.gmra.mrb[0].mxu0 %v1264
      %v1359 = vpop.f32.mrb[0].mxu0
      %v1360 = vadd.f32 0.0, %v1359
      %v1361 = vpop.f32.mrb[0].mxu0
      %1362 = vmatprep.mubr.f32.mxu0 0.0
      %1363 = vmatmul.mubr.f32.gmra.mrb[0].mxu0 %v1267
      %v1364 = vpop.f32.mrb[0].mxu0
      %v1365 = vadd.f32 0.0, %v1364
      %v1366 = vpop.f32.mrb[0].mxu0
      %1367 = vmatprep.mubr.f32.mxu0 0.0
      %1368 = vmatmul.mubr.f32.gmra.mrb[0].mxu0 %v1270
      %v1369 = vpop.f32.mrb[0].mxu0
      %v1370 = vadd.f32 0.0, %v1369
      %v1371 = vpop.f32.mrb[0].mxu0
      %1372 = vmatprep.mubr.f32.mxu0 0.0
      %1373 = vmatmul.mubr.f32.gmra.mrb[0].mxu0 %v1273
      %v1374 = vpop.f32.mrb[0].mxu0
      %v1375 = vadd.f32 0.0, %v1374
      %v1376 = vpop.f32.mrb[0].mxu0
      %1377 = vmatprep.mubr.f32.mxu0 0.0
      %1378 = vmatmul.mubr.f32.gmra.mrb[0].mxu0 %v1276
      %v1379 = vpop.f32.mrb[0].mxu0
      %v1380 = vadd.f32 0.0, %v1379
      %v1381 = vpop.f32.mrb[0].mxu0
      %1382 = vdwg.mxu0
      %vm1383 = vcmask 130048
      %v1385 = vsel %vm1383, %v1216, 0
      %v1388 = vsel %vm1383, %v1221, 0
      %v1391 = vsel %vm1383, %v1226, 0
      %v1394 = vsel %vm1383, %v1231, 0
      %v1397 = vsel %vm1383, %v1236, 0
      %v1400 = vsel %vm1383, %v1241, 0
      %v1403 = vsel %vm1383, %v1246, 0
      %v1406 = vsel %vm1383, %v1251, 0
      %1408 = vmatprep.subr.mxu0 0.0
      %1409 = vmatpush1.msra.mxu0 %v150
      %1410 = vmatprep.subr.mxu0 0.0
      %1411 = vmatpush1.msra.mxu0 %v151
      %1412 = vmatprep.subr.mxu0 0.0
      %1413 = vmatpush1.msra.mxu0 0.0
      %1414 = vmatprep.subr.mxu0 0.0
      %1415 = vmatpush1.msra.mxu0 0.0
      %1416 = vmatprep.subr.mxu0 0.0
      %1417 = vmatpush1.msra.mxu0 0.0
      %1418 = vmatprep.subr.mxu0 0.0
      %1419 = vmatpush1.msra.mxu0 0.0
      %1420 = vmatprep.subr.mxu0 0.0
      %1421 = vmatpush1.msra.mxu0 0.0
      %1422 = vmatprep.subr.mxu0 0.0
      %1423 = vmatpush1.msra.mxu0 0.0
      %1424 = vmatprep.subr.mxu0 0.0
      %1425 = vmatpush1.msra.mxu0 0.0
      %1426 = vmatprep.subr.mxu0 0.0
      %1427 = vmatpush1.msra.mxu0 0.0
      %1428 = vmatprep.subr.mxu0 0.0
      %1429 = vmatpush1.msra.mxu0 0.0
      %1430 = vmatprep.subr.mxu0 0.0
      %1431 = vmatpush1.msra.mxu0 0.0
      %1432 = vmatprep.subr.mxu0 0.0
      %1433 = vmatpush1.msra.mxu0 0.0
      %1434 = vmatprep.subr.mxu0 0.0
      %1435 = vmatpush1.msra.mxu0 0.0
      %1436 = vmatprep.subr.mxu0 0.0
      %1437 = vmatpush1.msra.mxu0 0.0
      %1438 = vmatprep.subr.mxu0 0.0
      %1439 = vmatpush1.msra.mxu0 0.0
      %1440 = vmatprep.subr.mxu0 0.0
      %1441 = vmatpush1.msra.mxu0 0.0
      %1442 = vmatprep.subr.mxu0 0.0
      %1443 = vmatpush1.msra.mxu0 0.0
      %1444 = vmatprep.subr.mxu0 0.0
      %1445 = vmatpush1.msra.mxu0 0.0
      %1446 = vmatprep.subr.mxu0 0.0
      %1447 = vmatpush1.msra.mxu0 0.0
      %1448 = vmatprep.subr.mxu0 0.0
      %1449 = vmatpush1.msra.mxu0 0.0
      %1450 = vmatprep.subr.mxu0 0.0
      %1451 = vmatpush1.msra.mxu0 0.0
      %1452 = vmatprep.subr.mxu0 0.0
      %1453 = vmatpush1.msra.mxu0 0.0
      %1454 = vmatprep.subr.mxu0 0.0
      %1455 = vmatpush1.msra.mxu0 0.0
      %1456 = vmatprep.subr.mxu0 0.0
      %1457 = vmatpush1.msra.mxu0 0.0
      %1458 = vmatprep.subr.mxu0 0.0
      %1459 = vmatpush1.msra.mxu0 0.0
      %1460 = vmatprep.subr.mxu0 0.0
      %1461 = vmatpush1.msra.mxu0 0.0
      %1462 = vmatprep.subr.mxu0 0.0
      %1463 = vmatpush1.msra.mxu0 0.0
      %1464 = vmatprep.subr.mxu0 0.0
      %1465 = vmatpush1.msra.mxu0 0.0
      %1466 = vmatprep.subr.mxu0 0.0
      %1467 = vmatpush1.msra.mxu0 0.0
      %1468 = vmatprep.subr.mxu0 0.0
      %1469 = vmatpush1.msra.mxu0 0.0
      %1470 = vmatprep.subr.mxu0 0.0
      %1471 = vmatpush1.msra.mxu0 0.0
      %1472 = vmatprep.mubr.f32.mxu0 0.0
      %1473 = vmatmul.mubr.f32.gmra.mrb[0].mxu0 %v1385
      %v1474 = vpop.f32.mrb[0].mxu0
      %v1475 = vadd.f32 %v1345, %v1474
      %v1476 = vpop.f32.mrb[0].mxu0
      %1477 = vmatprep.mubr.f32.mxu0 0.0
      %1478 = vmatmul.mubr.f32.gmra.mrb[0].mxu0 %v1388
      %v1479 = vpop.f32.mrb[0].mxu0
      %v1480 = vadd.f32 %v1350, %v1479
      %v1481 = vpop.f32.mrb[0].mxu0
      %1482 = vmatprep.mubr.f32.mxu0 0.0
      %1483 = vmatmul.mubr.f32.gmra.mrb[0].mxu0 %v1391
      %v1484 = vpop.f32.mrb[0].mxu0
      %v1485 = vadd.f32 %v1355, %v1484
      %v1486 = vpop.f32.mrb[0].mxu0
      %1487 = vmatprep.mubr.f32.mxu0 0.0
      %1488 = vmatmul.mubr.f32.gmra.mrb[0].mxu0 %v1394
      %v1489 = vpop.f32.mrb[0].mxu0
      %v1490 = vadd.f32 %v1360, %v1489
      %v1491 = vpop.f32.mrb[0].mxu0
      %1492 = vmatprep.mubr.f32.mxu0 0.0
      %1493 = vmatmul.mubr.f32.gmra.mrb[0].mxu0 %v1397
      %v1494 = vpop.f32.mrb[0].mxu0
      %v1495 = vadd.f32 %v1365, %v1494
      %v1496 = vpop.f32.mrb[0].mxu0
      %1497 = vmatprep.mubr.f32.mxu0 0.0
      %1498 = vmatmul.mubr.f32.gmra.mrb[0].mxu0 %v1400
      %v1499 = vpop.f32.mrb[0].mxu0
      %v1500 = vadd.f32 %v1370, %v1499
      %v1501 = vpop.f32.mrb[0].mxu0
      %1502 = vmatprep.mubr.f32.mxu0 0.0
      %1503 = vmatmul.mubr.f32.gmra.mrb[0].mxu0 %v1403
      %v1504 = vpop.f32.mrb[0].mxu0
      %v1505 = vadd.f32 %v1375, %v1504
      %v1506 = vpop.f32.mrb[0].mxu0
      %1507 = vmatprep.mubr.f32.mxu0 0.0
      %1508 = vmatmul.mubr.f32.gmra.mrb[0].mxu0 %v1406
      %v1509 = vpop.f32.mrb[0].mxu0
      %v1510 = vadd.f32 %v1380, %v1509
      %v1511 = vpop.f32.mrb[0].mxu0
      %1512 = vdwg.mxu0
      %v1513 = vmul.f32 %v1475, %v236
      %v1514 = vmul.f32 %v1480, %v237
      %v1515 = vmul.f32 %v1485, %v238
      %v1516 = vmul.f32 %v1490, %v239
      %v1517 = vmul.f32 %v1495, %v240
      %v1518 = vmul.f32 %v1500, %v241
      %v1519 = vmul.f32 %v1505, %v242
      %v1520 = vmul.f32 %v1510, %v243
      %v1522 = vsel %vm1383, %v1513, 0
      %v1525 = vsel %vm1383, %v1514, 0
      %v1528 = vsel %vm1383, %v1515, 0
      %v1531 = vsel %vm1383, %v1516, 0
      %v1534 = vsel %vm1383, %v1517, 0
      %v1537 = vsel %vm1383, %v1518, 0
      %v1540 = vsel %vm1383, %v1519, 0
      %v1543 = vsel %vm1383, %v1520, 0
      %1545 = vmatprep.subr.mxu0 0.0
      %1546 = vmatpush1.msra.mxu0 %v152
      %1547 = vmatprep.subr.mxu0 0.0
      %1548 = vmatpush1.msra.mxu0 %v153
      %1549 = vmatprep.subr.mxu0 0.0
      %1550 = vmatpush1.msra.mxu0 0.0
      %1551 = vmatprep.subr.mxu0 0.0
      %1552 = vmatpush1.msra.mxu0 0.0
      %1553 = vmatprep.subr.mxu0 0.0
      %1554 = vmatpush1.msra.mxu0 0.0
      %1555 = vmatprep.subr.mxu0 0.0
      %1556 = vmatpush1.msra.mxu0 0.0
      %1557 = vmatprep.subr.mxu0 0.0
      %1558 = vmatpush1.msra.mxu0 0.0
      %1559 = vmatprep.subr.mxu0 0.0
      %1560 = vmatpush1.msra.mxu0 0.0
      %1561 = vmatprep.subr.mxu0 0.0
      %1562 = vmatpush1.msra.mxu0 0.0
      %1563 = vmatprep.subr.mxu0 0.0
      %1564 = vmatpush1.msra.mxu0 0.0
      %1565 = vmatprep.subr.mxu0 0.0
      %1566 = vmatpush1.msra.mxu0 0.0
      %1567 = vmatprep.subr.mxu0 0.0
      %1568 = vmatpush1.msra.mxu0 0.0
      %1569 = vmatprep.subr.mxu0 0.0
      %1570 = vmatpush1.msra.mxu0 0.0
      %1571 = vmatprep.subr.mxu0 0.0
      %1572 = vmatpush1.msra.mxu0 0.0
      %1573 = vmatprep.subr.mxu0 0.0
      %1574 = vmatpush1.msra.mxu0 0.0
      %1575 = vmatprep.subr.mxu0 0.0
      %1576 = vmatpush1.msra.mxu0 0.0
      %1577 = vmatprep.subr.mxu0 0.0
      %1578 = vmatpush1.msra.mxu0 0.0
      %1579 = vmatprep.subr.mxu0 0.0
      %1580 = vmatpush1.msra.mxu0 0.0
      %1581 = vmatprep.subr.mxu0 0.0
      %1582 = vmatpush1.msra.mxu0 0.0
      %1583 = vmatprep.subr.mxu0 0.0
      %1584 = vmatpush1.msra.mxu0 0.0
      %1585 = vmatprep.subr.mxu0 0.0
      %1586 = vmatpush1.msra.mxu0 0.0
      %1587 = vmatprep.subr.mxu0 0.0
      %1588 = vmatpush1.msra.mxu0 0.0
      %1589 = vmatprep.subr.mxu0 0.0
      %1590 = vmatpush1.msra.mxu0 0.0
      %1591 = vmatprep.subr.mxu0 0.0
      %1592 = vmatpush1.msra.mxu0 0.0
      %1593 = vmatprep.subr.mxu0 0.0
      %1594 = vmatpush1.msra.mxu0 0.0
      %1595 = vmatprep.subr.mxu0 0.0
      %1596 = vmatpush1.msra.mxu0 0.0
      %1597 = vmatprep.subr.mxu0 0.0
      %1598 = vmatpush1.msra.mxu0 0.0
      %1599 = vmatprep.subr.mxu0 0.0
      %1600 = vmatpush1.msra.mxu0 0.0
      %1601 = vmatprep.subr.mxu0 0.0
      %1602 = vmatpush1.msra.mxu0 0.0
      %1603 = vmatprep.subr.mxu0 0.0
      %1604 = vmatpush1.msra.mxu0 0.0
      %1605 = vmatprep.subr.mxu0 0.0
      %1606 = vmatpush1.msra.mxu0 0.0
      %1607 = vmatprep.subr.mxu0 0.0
      %1608 = vmatpush1.msra.mxu0 0.0
      %1609 = vmatprep.mubr.f32.mxu0 0.0
      %1610 = vmatmul.mubr.f32.gmra.mrb[0].mxu0 %v1522
      %v1611 = vpop.f32.mrb[0].mxu0
      %v1612 = vadd.f32 0.0, %v1611
      %v1613 = vpop.f32.mrb[0].mxu0
      %1614 = vmatprep.mubr.f32.mxu0 0.0
      %1615 = vmatmul.mubr.f32.gmra.mrb[0].mxu0 %v1525
      %v1616 = vpop.f32.mrb[0].mxu0
      %v1617 = vadd.f32 0.0, %v1616
      %v1618 = vpop.f32.mrb[0].mxu0
      %1619 = vmatprep.mubr.f32.mxu0 0.0
      %1620 = vmatmul.mubr.f32.gmra.mrb[0].mxu0 %v1528
      %v1621 = vpop.f32.mrb[0].mxu0
      %v1622 = vadd.f32 0.0, %v1621
      %v1623 = vpop.f32.mrb[0].mxu0
      %1624 = vmatprep.mubr.f32.mxu0 0.0
      %1625 = vmatmul.mubr.f32.gmra.mrb[0].mxu0 %v1531
      %v1626 = vpop.f32.mrb[0].mxu0
      %v1627 = vadd.f32 0.0, %v1626
      %v1628 = vpop.f32.mrb[0].mxu0
      %1629 = vmatprep.mubr.f32.mxu0 0.0
      %1630 = vmatmul.mubr.f32.gmra.mrb[0].mxu0 %v1534
      %v1631 = vpop.f32.mrb[0].mxu0
      %v1632 = vadd.f32 0.0, %v1631
      %v1633 = vpop.f32.mrb[0].mxu0
      %1634 = vmatprep.mubr.f32.mxu0 0.0
      %1635 = vmatmul.mubr.f32.gmra.mrb[0].mxu0 %v1537
      %v1636 = vpop.f32.mrb[0].mxu0
      %v1637 = vadd.f32 0.0, %v1636
      %v1638 = vpop.f32.mrb[0].mxu0
      %1639 = vmatprep.mubr.f32.mxu0 0.0
      %1640 = vmatmul.mubr.f32.gmra.mrb[0].mxu0 %v1540
      %v1641 = vpop.f32.mrb[0].mxu0
      %v1642 = vadd.f32 0.0, %v1641
      %v1643 = vpop.f32.mrb[0].mxu0
      %1644 = vmatprep.mubr.f32.mxu0 0.0
      %1645 = vmatmul.mubr.f32.gmra.mrb[0].mxu0 %v1543
      %v1646 = vpop.f32.mrb[0].mxu0
      %v1647 = vadd.f32 0.0, %v1646
      %v1648 = vpop.f32.mrb[0].mxu0
      %1649 = vdwg.mxu0
      %1650 = vxpose.xlu0.b32.start [1/16] %v1612, 128
      %1651 = vxpose.xlu0.b32.cont [2/16] %v1617, 128
      %1652 = vxpose.xlu0.b32.cont [3/16] %v1622, 128
      %1653 = vxpose.xlu0.b32.cont [4/16] %v1627, 128
      %1654 = vxpose.xlu0.b32.cont [5/16] %v1632, 128
      %1655 = vxpose.xlu0.b32.cont [6/16] %v1637, 128
      %1656 = vxpose.xlu0.b32.cont [7/16] %v1642, 128
      %1657 = vxpose.xlu0.b32.cont [8/16] %v1647, 128
      %1658 = vxpose.xlu0.b32.cont [9/16] 0.0, 128
      %1659 = vxpose.xlu0.b32.cont [10/16] 0.0, 128
      %1660 = vxpose.xlu0.b32.cont [11/16] 0.0, 128
      %1661 = vxpose.xlu0.b32.cont [12/16] 0.0, 128
      %1662 = vxpose.xlu0.b32.cont [13/16] 0.0, 128
      %1663 = vxpose.xlu0.b32.cont [14/16] 0.0, 128
      %1664 = vxpose.xlu0.b32.cont [15/16] 0.0, 128
      %1665 = vxpose.xlu0.b32.end [16/16] 0.0, 128
      %v1666 = vpop.trf.xlu0
      %v1667 = vpop.trf.xlu0
      %v1668 = vpop.trf.xlu0
      %v1669 = vpop.trf.xlu0
      %v1670 = vpop.trf.xlu0
      %v1671 = vpop.trf.xlu0
      %v1672 = vpop.trf.xlu0
      %v1673 = vpop.trf.xlu0
      %v1674 = vpop.trf.xlu0
      %v1675 = vpop.trf.xlu0
      %v1676 = vpop.trf.xlu0
      %v1677 = vpop.trf.xlu0
      %v1678 = vpop.trf.xlu0
      %v1679 = vpop.trf.xlu0
      %v1680 = vpop.trf.xlu0
      %v1681 = vpop.trf.xlu0
      %1683 = vset.pattern.permute.xlu0 4
      %1684 = vperm.xlu0 %1683, %v1612
      %v1685 = vpop.permute.xlu0 %1684
      %1688 = vset.pattern.permute.xlu0 4
      %1689 = vperm.xlu0 %1688, %v1617
      %v1690 = vpop.permute.xlu0 %1689
      %1693 = vset.pattern.permute.xlu0 4
      %1694 = vperm.xlu0 %1693, %v1622
      %v1695 = vpop.permute.xlu0 %1694
      %1698 = vset.pattern.permute.xlu0 4
      %1699 = vperm.xlu0 %1698, %v1627
      %v1700 = vpop.permute.xlu0 %1699
      %1703 = vset.pattern.permute.xlu0 4
      %1704 = vperm.xlu0 %1703, %v1632
      %v1705 = vpop.permute.xlu0 %1704
      %1708 = vset.pattern.permute.xlu0 4
      %1709 = vperm.xlu0 %1708, %v1637
      %v1710 = vpop.permute.xlu0 %1709
      %1713 = vset.pattern.permute.xlu0 4
      %1714 = vperm.xlu0 %1713, %v1642
      %v1715 = vpop.permute.xlu0 %1714
      %1718 = vset.pattern.permute.xlu0 4
      %1719 = vperm.xlu0 %1718, %v1647
      %v1720 = vpop.permute.xlu0 %1719
      %v1722 = vlaneseq
      %v1723 = vshrl.u32 %v1722, 7
      %v1724 = vsub.s32 0, %v1723
      %v1725 = vrot.slane %v1666, %v1724
      %v1726 = vadd.f32 %v1685, %v1725
      %v1727 = vadd.f32 %v1690, %v1725
      %v1728 = vadd.f32 %v1695, %v1725
      %v1729 = vadd.f32 %v1700, %v1725
      %v1730 = vadd.f32 %v1705, %v1725
      %v1731 = vadd.f32 %v1710, %v1725
      %v1732 = vadd.f32 %v1715, %v1725
      %v1733 = vadd.f32 %v1720, %v1725
      %vm1734 = vcmp.gt.f32.partialorder %v1726, 0.0
      %vm1735 = vcmp.gt.f32.partialorder %v1727, 0.0
      %vm1736 = vcmp.gt.f32.partialorder %v1728, 0.0
      %vm1737 = vcmp.gt.f32.partialorder %v1729, 0.0
      %vm1738 = vcmp.gt.f32.partialorder %v1730, 0.0
      %vm1739 = vcmp.gt.f32.partialorder %v1731, 0.0
      %vm1740 = vcmp.gt.f32.partialorder %v1732, 0.0
      %vm1741 = vcmp.gt.f32.partialorder %v1733, 0.0
      %v1742 = vmul.f32 %v1726, 0.2
      %v1743 = vmul.f32 %v1727, 0.2
      %v1744 = vmul.f32 %v1728, 0.2
      %v1745 = vmul.f32 %v1729, 0.2
      %v1746 = vmul.f32 %v1730, 0.2
      %v1747 = vmul.f32 %v1731, 0.2
      %v1748 = vmul.f32 %v1732, 0.2
      %v1749 = vmul.f32 %v1733, 0.2
      %v1750 = vsel %vm1734, %v1726, %v1742
      %v1751 = vsel %vm1735, %v1727, %v1743
      %v1752 = vsel %vm1736, %v1728, %v1744
      %v1753 = vsel %vm1737, %v1729, %v1745
      %v1754 = vsel %vm1738, %v1730, %v1746
      %v1755 = vsel %vm1739, %v1731, %v1747
      %v1756 = vsel %vm1740, %v1732, %v1748
      %v1757 = vsel %vm1741, %v1733, %v1749
      %vm1758 = vcmp.gt.f32.partialorder %v155, 0.0
      %vm1759 = vcmp.gt.f32.partialorder %v156, 0.0
      %vm1760 = vcmp.gt.f32.partialorder %v157, 0.0
      %vm1761 = vcmp.gt.f32.partialorder %v158, 0.0
      %vm1762 = vcmp.gt.f32.partialorder %v159, 0.0
      %vm1763 = vcmp.gt.f32.partialorder %v160, 0.0
      %vm1764 = vcmp.gt.f32.partialorder %v161, 0.0
      %vm1765 = vcmp.gt.f32.partialorder %v162, 0.0
      %v1766 = vsel %vm1758, %v1750, -1e+30
      %v1767 = vsel %vm1759, %v1751, -1e+30
      %v1768 = vsel %vm1760, %v1752, -1e+30
      %v1769 = vsel %vm1761, %v1753, -1e+30
      %v1770 = vsel %vm1762, %v1754, -1e+30
      %v1771 = vsel %vm1763, %v1755, -1e+30
      %v1772 = vsel %vm1764, %v1756, -1e+30
      %v1773 = vsel %vm1765, %v1757, -1e+30
      %1774 = vset.pattern.permute.xlu0 5
      %1775 = vperm.xlu0 %1774, %v1612
      %v1776 = vpop.permute.xlu0 %1775
      %1778 = vset.pattern.permute.xlu0 5
      %1779 = vperm.xlu0 %1778, %v1617
      %v1780 = vpop.permute.xlu0 %1779
      %1782 = vset.pattern.permute.xlu0 5
      %1783 = vperm.xlu0 %1782, %v1622
      %v1784 = vpop.permute.xlu0 %1783
      %1786 = vset.pattern.permute.xlu0 5
      %1787 = vperm.xlu0 %1786, %v1627
      %v1788 = vpop.permute.xlu0 %1787
      %1790 = vset.pattern.permute.xlu0 5
      %1791 = vperm.xlu0 %1790, %v1632
      %v1792 = vpop.permute.xlu0 %1791
      %1794 = vset.pattern.permute.xlu0 5
      %1795 = vperm.xlu0 %1794, %v1637
      %v1796 = vpop.permute.xlu0 %1795
      %1798 = vset.pattern.permute.xlu0 5
      %1799 = vperm.xlu0 %1798, %v1642
      %v1800 = vpop.permute.xlu0 %1799
      %1802 = vset.pattern.permute.xlu0 5
      %1803 = vperm.xlu0 %1802, %v1647
      %v1804 = vpop.permute.xlu0 %1803
      %v1806 = vlaneseq
      %v1807 = vshrl.u32 %v1806, 7
      %v1808 = vsub.s32 1, %v1807
      %v1809 = vrot.slane %v1666, %v1808
      %v1810 = vadd.f32 %v1776, %v1809
      %v1811 = vadd.f32 %v1780, %v1809
      %v1812 = vadd.f32 %v1784, %v1809
      %v1813 = vadd.f32 %v1788, %v1809
      %v1814 = vadd.f32 %v1792, %v1809
      %v1815 = vadd.f32 %v1796, %v1809
      %v1816 = vadd.f32 %v1800, %v1809
      %v1817 = vadd.f32 %v1804, %v1809
      %vm1818 = vcmp.gt.f32.partialorder %v1810, 0.0
      %vm1819 = vcmp.gt.f32.partialorder %v1811, 0.0
      %vm1820 = vcmp.gt.f32.partialorder %v1812, 0.0
      %vm1821 = vcmp.gt.f32.partialorder %v1813, 0.0
      %vm1822 = vcmp.gt.f32.partialorder %v1814, 0.0
      %vm1823 = vcmp.gt.f32.partialorder %v1815, 0.0
      %vm1824 = vcmp.gt.f32.partialorder %v1816, 0.0
      %vm1825 = vcmp.gt.f32.partialorder %v1817, 0.0
      %v1826 = vmul.f32 %v1810, 0.2
      %v1827 = vmul.f32 %v1811, 0.2
      %v1828 = vmul.f32 %v1812, 0.2
      %v1829 = vmul.f32 %v1813, 0.2
      %v1830 = vmul.f32 %v1814, 0.2
      %v1831 = vmul.f32 %v1815, 0.2
      %v1832 = vmul.f32 %v1816, 0.2
      %v1833 = vmul.f32 %v1817, 0.2
      %v1834 = vsel %vm1818, %v1810, %v1826
      %v1835 = vsel %vm1819, %v1811, %v1827
      %v1836 = vsel %vm1820, %v1812, %v1828
      %v1837 = vsel %vm1821, %v1813, %v1829
      %v1838 = vsel %vm1822, %v1814, %v1830
      %v1839 = vsel %vm1823, %v1815, %v1831
      %v1840 = vsel %vm1824, %v1816, %v1832
      %v1841 = vsel %vm1825, %v1817, %v1833
      %v1842 = vsel %vm1758, %v1834, -1e+30
      %v1843 = vsel %vm1759, %v1835, -1e+30
      %v1844 = vsel %vm1760, %v1836, -1e+30
      %v1845 = vsel %vm1761, %v1837, -1e+30
      %v1846 = vsel %vm1762, %v1838, -1e+30
      %v1847 = vsel %vm1763, %v1839, -1e+30
      %v1848 = vsel %vm1764, %v1840, -1e+30
      %v1849 = vsel %vm1765, %v1841, -1e+30
      %1850 = vset.pattern.permute.xlu0 6
      %1851 = vperm.xlu0 %1850, %v1612
      %v1852 = vpop.permute.xlu0 %1851
      %1854 = vset.pattern.permute.xlu0 6
      %1855 = vperm.xlu0 %1854, %v1617
      %v1856 = vpop.permute.xlu0 %1855
      %1858 = vset.pattern.permute.xlu0 6
      %1859 = vperm.xlu0 %1858, %v1622
      %v1860 = vpop.permute.xlu0 %1859
      %1862 = vset.pattern.permute.xlu0 6
      %1863 = vperm.xlu0 %1862, %v1627
      %v1864 = vpop.permute.xlu0 %1863
      %1866 = vset.pattern.permute.xlu0 6
      %1867 = vperm.xlu0 %1866, %v1632
      %v1868 = vpop.permute.xlu0 %1867
      %1870 = vset.pattern.permute.xlu0 6
      %1871 = vperm.xlu0 %1870, %v1637
      %v1872 = vpop.permute.xlu0 %1871
      %1874 = vset.pattern.permute.xlu0 6
      %1875 = vperm.xlu0 %1874, %v1642
      %v1876 = vpop.permute.xlu0 %1875
      %1878 = vset.pattern.permute.xlu0 6
      %1879 = vperm.xlu0 %1878, %v1647
      %v1880 = vpop.permute.xlu0 %1879
      %v1882 = vlaneseq
      %v1883 = vshrl.u32 %v1882, 7
      %v1884 = vsub.s32 2, %v1883
      %v1885 = vrot.slane %v1666, %v1884
      %v1886 = vadd.f32 %v1852, %v1885
      %v1887 = vadd.f32 %v1856, %v1885
      %v1888 = vadd.f32 %v1860, %v1885
      %v1889 = vadd.f32 %v1864, %v1885
      %v1890 = vadd.f32 %v1868, %v1885
      %v1891 = vadd.f32 %v1872, %v1885
      %v1892 = vadd.f32 %v1876, %v1885
      %v1893 = vadd.f32 %v1880, %v1885
      %vm1894 = vcmp.gt.f32.partialorder %v1886, 0.0
      %vm1895 = vcmp.gt.f32.partialorder %v1887, 0.0
      %vm1896 = vcmp.gt.f32.partialorder %v1888, 0.0
      %vm1897 = vcmp.gt.f32.partialorder %v1889, 0.0
      %vm1898 = vcmp.gt.f32.partialorder %v1890, 0.0
      %vm1899 = vcmp.gt.f32.partialorder %v1891, 0.0
      %vm1900 = vcmp.gt.f32.partialorder %v1892, 0.0
      %vm1901 = vcmp.gt.f32.partialorder %v1893, 0.0
      %v1902 = vmul.f32 %v1886, 0.2
      %v1903 = vmul.f32 %v1887, 0.2
      %v1904 = vmul.f32 %v1888, 0.2
      %v1905 = vmul.f32 %v1889, 0.2
      %v1906 = vmul.f32 %v1890, 0.2
      %v1907 = vmul.f32 %v1891, 0.2
      %v1908 = vmul.f32 %v1892, 0.2
      %v1909 = vmul.f32 %v1893, 0.2
      %v1910 = vsel %vm1894, %v1886, %v1902
      %v1911 = vsel %vm1895, %v1887, %v1903
      %v1912 = vsel %vm1896, %v1888, %v1904
      %v1913 = vsel %vm1897, %v1889, %v1905
      %v1914 = vsel %vm1898, %v1890, %v1906
      %v1915 = vsel %vm1899, %v1891, %v1907
      %v1916 = vsel %vm1900, %v1892, %v1908
      %v1917 = vsel %vm1901, %v1893, %v1909
      %v1918 = vsel %vm1758, %v1910, -1e+30
      %v1919 = vsel %vm1759, %v1911, -1e+30
      %v1920 = vsel %vm1760, %v1912, -1e+30
      %v1921 = vsel %vm1761, %v1913, -1e+30
      %v1922 = vsel %vm1762, %v1914, -1e+30
      %v1923 = vsel %vm1763, %v1915, -1e+30
      %v1924 = vsel %vm1764, %v1916, -1e+30
      %v1925 = vsel %vm1765, %v1917, -1e+30
      %1926 = vset.pattern.permute.xlu0 7
      %1927 = vperm.xlu0 %1926, %v1612
      %v1928 = vpop.permute.xlu0 %1927
      %1930 = vset.pattern.permute.xlu0 7
      %1931 = vperm.xlu0 %1930, %v1617
      %v1932 = vpop.permute.xlu0 %1931
      %1934 = vset.pattern.permute.xlu0 7
      %1935 = vperm.xlu0 %1934, %v1622
      %v1936 = vpop.permute.xlu0 %1935
      %1938 = vset.pattern.permute.xlu0 7
      %1939 = vperm.xlu0 %1938, %v1627
      %v1940 = vpop.permute.xlu0 %1939
      %1942 = vset.pattern.permute.xlu0 7
      %1943 = vperm.xlu0 %1942, %v1632
      %v1944 = vpop.permute.xlu0 %1943
      %1946 = vset.pattern.permute.xlu0 7
      %1947 = vperm.xlu0 %1946, %v1637
      %v1948 = vpop.permute.xlu0 %1947
      %1950 = vset.pattern.permute.xlu0 7
      %1951 = vperm.xlu0 %1950, %v1642
      %v1952 = vpop.permute.xlu0 %1951
      %1954 = vset.pattern.permute.xlu0 7
      %1955 = vperm.xlu0 %1954, %v1647
      %v1956 = vpop.permute.xlu0 %1955
      %v1958 = vlaneseq
      %v1959 = vshrl.u32 %v1958, 7
      %v1960 = vsub.s32 3, %v1959
      %v1961 = vrot.slane %v1666, %v1960
      %v1962 = vadd.f32 %v1928, %v1961
      %v1963 = vadd.f32 %v1932, %v1961
      %v1964 = vadd.f32 %v1936, %v1961
      %v1965 = vadd.f32 %v1940, %v1961
      %v1966 = vadd.f32 %v1944, %v1961
      %v1967 = vadd.f32 %v1948, %v1961
      %v1968 = vadd.f32 %v1952, %v1961
      %v1969 = vadd.f32 %v1956, %v1961
      %vm1970 = vcmp.gt.f32.partialorder %v1962, 0.0
      %vm1971 = vcmp.gt.f32.partialorder %v1963, 0.0
      %vm1972 = vcmp.gt.f32.partialorder %v1964, 0.0
      %vm1973 = vcmp.gt.f32.partialorder %v1965, 0.0
      %vm1974 = vcmp.gt.f32.partialorder %v1966, 0.0
      %vm1975 = vcmp.gt.f32.partialorder %v1967, 0.0
      %vm1976 = vcmp.gt.f32.partialorder %v1968, 0.0
      %vm1977 = vcmp.gt.f32.partialorder %v1969, 0.0
      %v1978 = vmul.f32 %v1962, 0.2
      %v1979 = vmul.f32 %v1963, 0.2
      %v1980 = vmul.f32 %v1964, 0.2
      %v1981 = vmul.f32 %v1965, 0.2
      %v1982 = vmul.f32 %v1966, 0.2
      %v1983 = vmul.f32 %v1967, 0.2
      %v1984 = vmul.f32 %v1968, 0.2
      %v1985 = vmul.f32 %v1969, 0.2
      %v1986 = vsel %vm1970, %v1962, %v1978
      %v1987 = vsel %vm1971, %v1963, %v1979
      %v1988 = vsel %vm1972, %v1964, %v1980
      %v1989 = vsel %vm1973, %v1965, %v1981
      %v1990 = vsel %vm1974, %v1966, %v1982
      %v1991 = vsel %vm1975, %v1967, %v1983
      %v1992 = vsel %vm1976, %v1968, %v1984
      %v1993 = vsel %vm1977, %v1969, %v1985
      %v1994 = vsel %vm1758, %v1986, -1e+30
      %v1995 = vsel %vm1759, %v1987, -1e+30
      %v1996 = vsel %vm1760, %v1988, -1e+30
      %v1997 = vsel %vm1761, %v1989, -1e+30
      %v1998 = vsel %vm1762, %v1990, -1e+30
      %v1999 = vsel %vm1763, %v1991, -1e+30
      %v2000 = vsel %vm1764, %v1992, -1e+30
      %v2001 = vsel %vm1765, %v1993, -1e+30
      %v2002 = vsel %vm1132, %v1766, -inf
      %2003 = vmax.xlane.f32.xlu0 %v2002
      %v2004 = vpop.xlane.xlu0 %2003
      %v2005 = vsel %vm1132, %v1767, -inf
      %2006 = vmax.xlane.f32.xlu0 %v2005
      %v2007 = vpop.xlane.xlu0 %2006
      %v2008 = vsel %vm1132, %v1768, -inf
      %2009 = vmax.xlane.f32.xlu0 %v2008
      %v2010 = vpop.xlane.xlu0 %2009
      %v2011 = vsel %vm1132, %v1769, -inf
      %2012 = vmax.xlane.f32.xlu0 %v2011
      %v2013 = vpop.xlane.xlu0 %2012
      %v2014 = vsel %vm1132, %v1770, -inf
      %2015 = vmax.xlane.f32.xlu0 %v2014
      %v2016 = vpop.xlane.xlu0 %2015
      %v2017 = vsel %vm1132, %v1771, -inf
      %2018 = vmax.xlane.f32.xlu0 %v2017
      %v2019 = vpop.xlane.xlu0 %2018
      %v2020 = vsel %vm1132, %v1772, -inf
      %2021 = vmax.xlane.f32.xlu0 %v2020
      %v2022 = vpop.xlane.xlu0 %2021
      %v2023 = vsel %vm1132, %v1773, -inf
      %2024 = vmax.xlane.f32.xlu0 %v2023
      %v2025 = vpop.xlane.xlu0 %2024
      %v2026 = vsel %vm1132, %v1842, -inf
      %2027 = vmax.xlane.f32.xlu0 %v2026
      %v2028 = vpop.xlane.xlu0 %2027
      %v2029 = vsel %vm1132, %v1843, -inf
      %2030 = vmax.xlane.f32.xlu0 %v2029
      %v2031 = vpop.xlane.xlu0 %2030
      %v2032 = vsel %vm1132, %v1844, -inf
      %2033 = vmax.xlane.f32.xlu0 %v2032
      %v2034 = vpop.xlane.xlu0 %2033
      %v2035 = vsel %vm1132, %v1845, -inf
      %2036 = vmax.xlane.f32.xlu0 %v2035
      %v2037 = vpop.xlane.xlu0 %2036
      %v2038 = vsel %vm1132, %v1846, -inf
      %2039 = vmax.xlane.f32.xlu0 %v2038
      %v2040 = vpop.xlane.xlu0 %2039
      %v2041 = vsel %vm1132, %v1847, -inf
      %2042 = vmax.xlane.f32.xlu0 %v2041
      %v2043 = vpop.xlane.xlu0 %2042
      %v2044 = vsel %vm1132, %v1848, -inf
      %2045 = vmax.xlane.f32.xlu0 %v2044
      %v2046 = vpop.xlane.xlu0 %2045
      %v2047 = vsel %vm1132, %v1849, -inf
      %2048 = vmax.xlane.f32.xlu0 %v2047
      %v2049 = vpop.xlane.xlu0 %2048
      %v2050 = vsel %vm1132, %v1918, -inf
      %2051 = vmax.xlane.f32.xlu0 %v2050
      %v2052 = vpop.xlane.xlu0 %2051
      %v2053 = vsel %vm1132, %v1919, -inf
      %2054 = vmax.xlane.f32.xlu0 %v2053
      %v2055 = vpop.xlane.xlu0 %2054
      %v2056 = vsel %vm1132, %v1920, -inf
      %2057 = vmax.xlane.f32.xlu0 %v2056
      %v2058 = vpop.xlane.xlu0 %2057
      %v2059 = vsel %vm1132, %v1921, -inf
      %2060 = vmax.xlane.f32.xlu0 %v2059
      %v2061 = vpop.xlane.xlu0 %2060
      %v2062 = vsel %vm1132, %v1922, -inf
      %2063 = vmax.xlane.f32.xlu0 %v2062
      %v2064 = vpop.xlane.xlu0 %2063
      %v2065 = vsel %vm1132, %v1923, -inf
      %2066 = vmax.xlane.f32.xlu0 %v2065
      %v2067 = vpop.xlane.xlu0 %2066
      %v2068 = vsel %vm1132, %v1924, -inf
      %2069 = vmax.xlane.f32.xlu0 %v2068
      %v2070 = vpop.xlane.xlu0 %2069
      %v2071 = vsel %vm1132, %v1925, -inf
      %2072 = vmax.xlane.f32.xlu0 %v2071
      %v2073 = vpop.xlane.xlu0 %2072
      %v2074 = vsel %vm1132, %v1994, -inf
      %2075 = vmax.xlane.f32.xlu0 %v2074
      %v2076 = vpop.xlane.xlu0 %2075
      %v2077 = vsel %vm1132, %v1995, -inf
      %2078 = vmax.xlane.f32.xlu0 %v2077
      %v2079 = vpop.xlane.xlu0 %2078
      %v2080 = vsel %vm1132, %v1996, -inf
      %2081 = vmax.xlane.f32.xlu0 %v2080
      %v2082 = vpop.xlane.xlu0 %2081
      %v2083 = vsel %vm1132, %v1997, -inf
      %2084 = vmax.xlane.f32.xlu0 %v2083
      %v2085 = vpop.xlane.xlu0 %2084
      %v2086 = vsel %vm1132, %v1998, -inf
      %2087 = vmax.xlane.f32.xlu0 %v2086
      %v2088 = vpop.xlane.xlu0 %2087
      %v2089 = vsel %vm1132, %v1999, -inf
      %2090 = vmax.xlane.f32.xlu0 %v2089
      %v2091 = vpop.xlane.xlu0 %2090
      %v2092 = vsel %vm1132, %v2000, -inf
      %2093 = vmax.xlane.f32.xlu0 %v2092
      %v2094 = vpop.xlane.xlu0 %2093
      %v2095 = vsel %vm1132, %v2001, -inf
      %2096 = vmax.xlane.f32.xlu0 %v2095
      %v2097 = vpop.xlane.xlu0 %2096
      %vm2098 = vcmp.gt.f32.partialorder %v1766, -5e+29
      %vm2099 = vcmp.gt.f32.partialorder %v1767, -5e+29
      %vm2100 = vcmp.gt.f32.partialorder %v1768, -5e+29
      %vm2101 = vcmp.gt.f32.partialorder %v1769, -5e+29
      %vm2102 = vcmp.gt.f32.partialorder %v1770, -5e+29
      %vm2103 = vcmp.gt.f32.partialorder %v1771, -5e+29
      %vm2104 = vcmp.gt.f32.partialorder %v1772, -5e+29
      %vm2105 = vcmp.gt.f32.partialorder %v1773, -5e+29
      %vm2106 = vcmp.gt.f32.partialorder %v1842, -5e+29
      %vm2107 = vcmp.gt.f32.partialorder %v1843, -5e+29
      %vm2108 = vcmp.gt.f32.partialorder %v1844, -5e+29
      %vm2109 = vcmp.gt.f32.partialorder %v1845, -5e+29
      %vm2110 = vcmp.gt.f32.partialorder %v1846, -5e+29
      %vm2111 = vcmp.gt.f32.partialorder %v1847, -5e+29
      %vm2112 = vcmp.gt.f32.partialorder %v1848, -5e+29
      %vm2113 = vcmp.gt.f32.partialorder %v1849, -5e+29
      %vm2114 = vcmp.gt.f32.partialorder %v1918, -5e+29
      %vm2115 = vcmp.gt.f32.partialorder %v1919, -5e+29
      %vm2116 = vcmp.gt.f32.partialorder %v1920, -5e+29
      %vm2117 = vcmp.gt.f32.partialorder %v1921, -5e+29
      %vm2118 = vcmp.gt.f32.partialorder %v1922, -5e+29
      %vm2119 = vcmp.gt.f32.partialorder %v1923, -5e+29
      %vm2120 = vcmp.gt.f32.partialorder %v1924, -5e+29
      %vm2121 = vcmp.gt.f32.partialorder %v1925, -5e+29
      %vm2122 = vcmp.gt.f32.partialorder %v1994, -5e+29
      %vm2123 = vcmp.gt.f32.partialorder %v1995, -5e+29
      %vm2124 = vcmp.gt.f32.partialorder %v1996, -5e+29
      %vm2125 = vcmp.gt.f32.partialorder %v1997, -5e+29
      %vm2126 = vcmp.gt.f32.partialorder %v1998, -5e+29
      %vm2127 = vcmp.gt.f32.partialorder %v1999, -5e+29
      %vm2128 = vcmp.gt.f32.partialorder %v2000, -5e+29
      %vm2129 = vcmp.gt.f32.partialorder %v2001, -5e+29
      %v2130 = vsub.f32 %v1766, %v2004
      %v2131 = vsub.f32 %v1767, %v2007
      %v2132 = vsub.f32 %v1768, %v2010
      %v2133 = vsub.f32 %v1769, %v2013
      %v2134 = vsub.f32 %v1770, %v2016
      %v2135 = vsub.f32 %v1771, %v2019
      %v2136 = vsub.f32 %v1772, %v2022
      %v2137 = vsub.f32 %v1773, %v2025
      %v2138 = vsub.f32 %v1842, %v2028
      %v2139 = vsub.f32 %v1843, %v2031
      %v2140 = vsub.f32 %v1844, %v2034
      %v2141 = vsub.f32 %v1845, %v2037
      %v2142 = vsub.f32 %v1846, %v2040
      %v2143 = vsub.f32 %v1847, %v2043
      %v2144 = vsub.f32 %v1848, %v2046
      %v2145 = vsub.f32 %v1849, %v2049
      %v2146 = vsub.f32 %v1918, %v2052
      %v2147 = vsub.f32 %v1919, %v2055
      %v2148 = vsub.f32 %v1920, %v2058
      %v2149 = vsub.f32 %v1921, %v2061
      %v2150 = vsub.f32 %v1922, %v2064
      %v2151 = vsub.f32 %v1923, %v2067
      %v2152 = vsub.f32 %v1924, %v2070
      %v2153 = vsub.f32 %v1925, %v2073
      %v2154 = vsub.f32 %v1994, %v2076
      %v2155 = vsub.f32 %v1995, %v2079
      %v2156 = vsub.f32 %v1996, %v2082
      %v2157 = vsub.f32 %v1997, %v2085
      %v2158 = vsub.f32 %v1998, %v2088
      %v2159 = vsub.f32 %v1999, %v2091
      %v2160 = vsub.f32 %v2000, %v2094
      %v2161 = vsub.f32 %v2001, %v2097
      %v2162 = vmul.f32 %v2130, 1.442695
      %v2163 = vpow.pop %v2162
      %v2164 = vmul.f32 %v2131, 1.442695
      %v2165 = vpow.pop %v2164
      %v2166 = vmul.f32 %v2132, 1.442695
      %v2167 = vpow.pop %v2166
      %v2168 = vmul.f32 %v2133, 1.442695
      %v2169 = vpow.pop %v2168
      %v2170 = vmul.f32 %v2134, 1.442695
      %v2171 = vpow.pop %v2170
      %v2172 = vmul.f32 %v2135, 1.442695
      %v2173 = vpow.pop %v2172
      %v2174 = vmul.f32 %v2136, 1.442695
      %v2175 = vpow.pop %v2174
      %v2176 = vmul.f32 %v2137, 1.442695
      %v2177 = vpow.pop %v2176
      %v2178 = vmul.f32 %v2138, 1.442695
      %v2179 = vpow.pop %v2178
      %v2180 = vmul.f32 %v2139, 1.442695
      %v2181 = vpow.pop %v2180
      %v2182 = vmul.f32 %v2140, 1.442695
      %v2183 = vpow.pop %v2182
      %v2184 = vmul.f32 %v2141, 1.442695
      %v2185 = vpow.pop %v2184
      %v2186 = vmul.f32 %v2142, 1.442695
      %v2187 = vpow.pop %v2186
      %v2188 = vmul.f32 %v2143, 1.442695
      %v2189 = vpow.pop %v2188
      %v2190 = vmul.f32 %v2144, 1.442695
      %v2191 = vpow.pop %v2190
      %v2192 = vmul.f32 %v2145, 1.442695
      %v2193 = vpow.pop %v2192
      %v2194 = vmul.f32 %v2146, 1.442695
      %v2195 = vpow.pop %v2194
      %v2196 = vmul.f32 %v2147, 1.442695
      %v2197 = vpow.pop %v2196
      %v2198 = vmul.f32 %v2148, 1.442695
      %v2199 = vpow.pop %v2198
      %v2200 = vmul.f32 %v2149, 1.442695
      %v2201 = vpow.pop %v2200
      %v2202 = vmul.f32 %v2150, 1.442695
      %v2203 = vpow.pop %v2202
      %v2204 = vmul.f32 %v2151, 1.442695
      %v2205 = vpow.pop %v2204
      %v2206 = vmul.f32 %v2152, 1.442695
      %v2207 = vpow.pop %v2206
      %v2208 = vmul.f32 %v2153, 1.442695
      %v2209 = vpow.pop %v2208
      %v2210 = vmul.f32 %v2154, 1.442695
      %v2211 = vpow.pop %v2210
      %v2212 = vmul.f32 %v2155, 1.442695
      %v2213 = vpow.pop %v2212
      %v2214 = vmul.f32 %v2156, 1.442695
      %v2215 = vpow.pop %v2214
      %v2216 = vmul.f32 %v2157, 1.442695
      %v2217 = vpow.pop %v2216
      %v2218 = vmul.f32 %v2158, 1.442695
      %v2219 = vpow.pop %v2218
      %v2220 = vmul.f32 %v2159, 1.442695
      %v2221 = vpow.pop %v2220
      %v2222 = vmul.f32 %v2160, 1.442695
      %v2223 = vpow.pop %v2222
      %v2224 = vmul.f32 %v2161, 1.442695
      %v2225 = vpow.pop %v2224
      %v2226 = vsel %vm2098, %v2163, 0.0
      %v2227 = vsel %vm2099, %v2165, 0.0
      %v2228 = vsel %vm2100, %v2167, 0.0
      %v2229 = vsel %vm2101, %v2169, 0.0
      %v2230 = vsel %vm2102, %v2171, 0.0
      %v2231 = vsel %vm2103, %v2173, 0.0
      %v2232 = vsel %vm2104, %v2175, 0.0
      %v2233 = vsel %vm2105, %v2177, 0.0
      %v2234 = vsel %vm2106, %v2179, 0.0
      %v2235 = vsel %vm2107, %v2181, 0.0
      %v2236 = vsel %vm2108, %v2183, 0.0
      %v2237 = vsel %vm2109, %v2185, 0.0
      %v2238 = vsel %vm2110, %v2187, 0.0
      %v2239 = vsel %vm2111, %v2189, 0.0
      %v2240 = vsel %vm2112, %v2191, 0.0
      %v2241 = vsel %vm2113, %v2193, 0.0
      %v2242 = vsel %vm2114, %v2195, 0.0
      %v2243 = vsel %vm2115, %v2197, 0.0
      %v2244 = vsel %vm2116, %v2199, 0.0
      %v2245 = vsel %vm2117, %v2201, 0.0
      %v2246 = vsel %vm2118, %v2203, 0.0
      %v2247 = vsel %vm2119, %v2205, 0.0
      %v2248 = vsel %vm2120, %v2207, 0.0
      %v2249 = vsel %vm2121, %v2209, 0.0
      %v2250 = vsel %vm2122, %v2211, 0.0
      %v2251 = vsel %vm2123, %v2213, 0.0
      %v2252 = vsel %vm2124, %v2215, 0.0
      %v2253 = vsel %vm2125, %v2217, 0.0
      %v2254 = vsel %vm2126, %v2219, 0.0
      %v2255 = vsel %vm2127, %v2221, 0.0
      %v2256 = vsel %vm2128, %v2223, 0.0
      %v2257 = vsel %vm2129, %v2225, 0.0
      %v2258 = vsel %vm1132, %v2226, 0.0
      %2259 = vadd.xlane.f32.xlu0 %v2258
      %v2260 = vpop.xlane.xlu0 %2259
      %v2261 = vsel %vm1132, %v2227, 0.0
      %2262 = vadd.xlane.f32.xlu0 %v2261
      %v2263 = vpop.xlane.xlu0 %2262
      %v2264 = vsel %vm1132, %v2228, 0.0
      %2265 = vadd.xlane.f32.xlu0 %v2264
      %v2266 = vpop.xlane.xlu0 %2265
      %v2267 = vsel %vm1132, %v2229, 0.0
      %2268 = vadd.xlane.f32.xlu0 %v2267
      %v2269 = vpop.xlane.xlu0 %2268
      %v2270 = vsel %vm1132, %v2230, 0.0
      %2271 = vadd.xlane.f32.xlu0 %v2270
      %v2272 = vpop.xlane.xlu0 %2271
      %v2273 = vsel %vm1132, %v2231, 0.0
      %2274 = vadd.xlane.f32.xlu0 %v2273
      %v2275 = vpop.xlane.xlu0 %2274
      %v2276 = vsel %vm1132, %v2232, 0.0
      %2277 = vadd.xlane.f32.xlu0 %v2276
      %v2278 = vpop.xlane.xlu0 %2277
      %v2279 = vsel %vm1132, %v2233, 0.0
      %2280 = vadd.xlane.f32.xlu0 %v2279
      %v2281 = vpop.xlane.xlu0 %2280
      %v2282 = vsel %vm1132, %v2234, 0.0
      %2283 = vadd.xlane.f32.xlu0 %v2282
      %v2284 = vpop.xlane.xlu0 %2283
      %v2285 = vsel %vm1132, %v2235, 0.0
      %2286 = vadd.xlane.f32.xlu0 %v2285
      %v2287 = vpop.xlane.xlu0 %2286
      %v2288 = vsel %vm1132, %v2236, 0.0
      %2289 = vadd.xlane.f32.xlu0 %v2288
      %v2290 = vpop.xlane.xlu0 %2289
      %v2291 = vsel %vm1132, %v2237, 0.0
      %2292 = vadd.xlane.f32.xlu0 %v2291
      %v2293 = vpop.xlane.xlu0 %2292
      %v2294 = vsel %vm1132, %v2238, 0.0
      %2295 = vadd.xlane.f32.xlu0 %v2294
      %v2296 = vpop.xlane.xlu0 %2295
      %v2297 = vsel %vm1132, %v2239, 0.0
      %2298 = vadd.xlane.f32.xlu0 %v2297
      %v2299 = vpop.xlane.xlu0 %2298
      %v2300 = vsel %vm1132, %v2240, 0.0
      %2301 = vadd.xlane.f32.xlu0 %v2300
      %v2302 = vpop.xlane.xlu0 %2301
      %v2303 = vsel %vm1132, %v2241, 0.0
      %2304 = vadd.xlane.f32.xlu0 %v2303
      %v2305 = vpop.xlane.xlu0 %2304
      %v2306 = vsel %vm1132, %v2242, 0.0
      %2307 = vadd.xlane.f32.xlu0 %v2306
      %v2308 = vpop.xlane.xlu0 %2307
      %v2309 = vsel %vm1132, %v2243, 0.0
      %2310 = vadd.xlane.f32.xlu0 %v2309
      %v2311 = vpop.xlane.xlu0 %2310
      %v2312 = vsel %vm1132, %v2244, 0.0
      %2313 = vadd.xlane.f32.xlu0 %v2312
      %v2314 = vpop.xlane.xlu0 %2313
      %v2315 = vsel %vm1132, %v2245, 0.0
      %2316 = vadd.xlane.f32.xlu0 %v2315
      %v2317 = vpop.xlane.xlu0 %2316
      %v2318 = vsel %vm1132, %v2246, 0.0
      %2319 = vadd.xlane.f32.xlu0 %v2318
      %v2320 = vpop.xlane.xlu0 %2319
      %v2321 = vsel %vm1132, %v2247, 0.0
      %2322 = vadd.xlane.f32.xlu0 %v2321
      %v2323 = vpop.xlane.xlu0 %2322
      %v2324 = vsel %vm1132, %v2248, 0.0
      %2325 = vadd.xlane.f32.xlu0 %v2324
      %v2326 = vpop.xlane.xlu0 %2325
      %v2327 = vsel %vm1132, %v2249, 0.0
      %2328 = vadd.xlane.f32.xlu0 %v2327
      %v2329 = vpop.xlane.xlu0 %2328
      %v2330 = vsel %vm1132, %v2250, 0.0
      %2331 = vadd.xlane.f32.xlu0 %v2330
      %v2332 = vpop.xlane.xlu0 %2331
      %v2333 = vsel %vm1132, %v2251, 0.0
      %2334 = vadd.xlane.f32.xlu0 %v2333
      %v2335 = vpop.xlane.xlu0 %2334
      %v2336 = vsel %vm1132, %v2252, 0.0
      %2337 = vadd.xlane.f32.xlu0 %v2336
      %v2338 = vpop.xlane.xlu0 %2337
      %v2339 = vsel %vm1132, %v2253, 0.0
      %2340 = vadd.xlane.f32.xlu0 %v2339
      %v2341 = vpop.xlane.xlu0 %2340
      %v2342 = vsel %vm1132, %v2254, 0.0
      %2343 = vadd.xlane.f32.xlu0 %v2342
      %v2344 = vpop.xlane.xlu0 %2343
      %v2345 = vsel %vm1132, %v2255, 0.0
      %2346 = vadd.xlane.f32.xlu0 %v2345
      %v2347 = vpop.xlane.xlu0 %2346
      %v2348 = vsel %vm1132, %v2256, 0.0
      %2349 = vadd.xlane.f32.xlu0 %v2348
      %v2350 = vpop.xlane.xlu0 %2349
      %v2351 = vsel %vm1132, %v2257, 0.0
      %2352 = vadd.xlane.f32.xlu0 %v2351
      %v2353 = vpop.xlane.xlu0 %2352
      %v2354 = vmax.f32 %v2260, 1.0
      %v2355 = vmax.f32 %v2263, 1.0
      %v2356 = vmax.f32 %v2266, 1.0
      %v2357 = vmax.f32 %v2269, 1.0
      %v2358 = vmax.f32 %v2272, 1.0
      %v2359 = vmax.f32 %v2275, 1.0
      %v2360 = vmax.f32 %v2278, 1.0
      %v2361 = vmax.f32 %v2281, 1.0
      %v2362 = vmax.f32 %v2284, 1.0
      %v2363 = vmax.f32 %v2287, 1.0
      %v2364 = vmax.f32 %v2290, 1.0
      %v2365 = vmax.f32 %v2293, 1.0
      %v2366 = vmax.f32 %v2296, 1.0
      %v2367 = vmax.f32 %v2299, 1.0
      %v2368 = vmax.f32 %v2302, 1.0
      %v2369 = vmax.f32 %v2305, 1.0
      %v2370 = vmax.f32 %v2308, 1.0
      %v2371 = vmax.f32 %v2311, 1.0
      %v2372 = vmax.f32 %v2314, 1.0
      %v2373 = vmax.f32 %v2317, 1.0
      %v2374 = vmax.f32 %v2320, 1.0
      %v2375 = vmax.f32 %v2323, 1.0
      %v2376 = vmax.f32 %v2326, 1.0
      %v2377 = vmax.f32 %v2329, 1.0
      %v2378 = vmax.f32 %v2332, 1.0
      %v2379 = vmax.f32 %v2335, 1.0
      %v2380 = vmax.f32 %v2338, 1.0
      %v2381 = vmax.f32 %v2341, 1.0
      %v2382 = vmax.f32 %v2344, 1.0
      %v2383 = vmax.f32 %v2347, 1.0
      %v2384 = vmax.f32 %v2350, 1.0
      %v2385 = vmax.f32 %v2353, 1.0
      %v2386 = vrcp.pop %v2354
      %v2387 = vrcp.pop %v2355
      %v2388 = vrcp.pop %v2356
      %v2389 = vrcp.pop %v2357
      %v2390 = vrcp.pop %v2358
      %v2391 = vrcp.pop %v2359
      %v2392 = vrcp.pop %v2360
      %v2393 = vrcp.pop %v2361
      %v2394 = vrcp.pop %v2362
      %v2395 = vrcp.pop %v2363
      %v2396 = vrcp.pop %v2364
      %v2397 = vrcp.pop %v2365
      %v2398 = vrcp.pop %v2366
      %v2399 = vrcp.pop %v2367
      %v2400 = vrcp.pop %v2368
      %v2401 = vrcp.pop %v2369
      %v2402 = vrcp.pop %v2370
      %v2403 = vrcp.pop %v2371
      %v2404 = vrcp.pop %v2372
      %v2405 = vrcp.pop %v2373
      %v2406 = vrcp.pop %v2374
      %v2407 = vrcp.pop %v2375
      %v2408 = vrcp.pop %v2376
      %v2409 = vrcp.pop %v2377
      %v2410 = vrcp.pop %v2378
      %v2411 = vrcp.pop %v2379
      %v2412 = vrcp.pop %v2380
      %v2413 = vrcp.pop %v2381
      %v2414 = vrcp.pop %v2382
      %v2415 = vrcp.pop %v2383
      %v2416 = vrcp.pop %v2384
      %v2417 = vrcp.pop %v2385
      %v2418 = vmul.f32 %v2226, %v2386
      %v2419 = vmul.f32 %v2227, %v2387
      %v2420 = vmul.f32 %v2228, %v2388
      %v2421 = vmul.f32 %v2229, %v2389
      %v2422 = vmul.f32 %v2230, %v2390
      %v2423 = vmul.f32 %v2231, %v2391
      %v2424 = vmul.f32 %v2232, %v2392
      %v2425 = vmul.f32 %v2233, %v2393
      %v2426 = vmul.f32 %v2234, %v2394
      %v2427 = vmul.f32 %v2235, %v2395
      %v2428 = vmul.f32 %v2236, %v2396
      %v2429 = vmul.f32 %v2237, %v2397
      %v2430 = vmul.f32 %v2238, %v2398
      %v2431 = vmul.f32 %v2239, %v2399
      %v2432 = vmul.f32 %v2240, %v2400
      %v2433 = vmul.f32 %v2241, %v2401
      %v2434 = vmul.f32 %v2242, %v2402
      %v2435 = vmul.f32 %v2243, %v2403
      %v2436 = vmul.f32 %v2244, %v2404
      %v2437 = vmul.f32 %v2245, %v2405
      %v2438 = vmul.f32 %v2246, %v2406
      %v2439 = vmul.f32 %v2247, %v2407
      %v2440 = vmul.f32 %v2248, %v2408
      %v2441 = vmul.f32 %v2249, %v2409
      %v2442 = vmul.f32 %v2250, %v2410
      %v2443 = vmul.f32 %v2251, %v2411
      %v2444 = vmul.f32 %v2252, %v2412
      %v2445 = vmul.f32 %v2253, %v2413
      %v2446 = vmul.f32 %v2254, %v2414
      %v2447 = vmul.f32 %v2255, %v2415
      %v2448 = vmul.f32 %v2256, %v2416
      %v2449 = vmul.f32 %v2257, %v2417
      %v2451 = vsel %vm1132, %v2418, 0
      %v2454 = vsel %vm1132, %v2419, 0
      %v2457 = vsel %vm1132, %v2420, 0
      %v2460 = vsel %vm1132, %v2421, 0
      %v2463 = vsel %vm1132, %v2422, 0
      %v2466 = vsel %vm1132, %v2423, 0
      %v2469 = vsel %vm1132, %v2424, 0
      %v2472 = vsel %vm1132, %v2425, 0
      %v2475 = vsel %vm1132, %v2426, 0
      %v2478 = vsel %vm1132, %v2427, 0
      %v2481 = vsel %vm1132, %v2428, 0
      %v2484 = vsel %vm1132, %v2429, 0
      %v2487 = vsel %vm1132, %v2430, 0
      %v2490 = vsel %vm1132, %v2431, 0
      %v2493 = vsel %vm1132, %v2432, 0
      %v2496 = vsel %vm1132, %v2433, 0
      %v2499 = vsel %vm1132, %v2434, 0
      %v2502 = vsel %vm1132, %v2435, 0
      %v2505 = vsel %vm1132, %v2436, 0
      %v2508 = vsel %vm1132, %v2437, 0
      %v2511 = vsel %vm1132, %v2438, 0
      %v2514 = vsel %vm1132, %v2439, 0
      %v2517 = vsel %vm1132, %v2440, 0
      %v2520 = vsel %vm1132, %v2441, 0
      %v2523 = vsel %vm1132, %v2442, 0
      %v2526 = vsel %vm1132, %v2443, 0
      %v2529 = vsel %vm1132, %v2444, 0
      %v2532 = vsel %vm1132, %v2445, 0
      %v2535 = vsel %vm1132, %v2446, 0
      %v2538 = vsel %vm1132, %v2447, 0
      %v2541 = vsel %vm1132, %v2448, 0
      %v2544 = vsel %vm1132, %v2449, 0
      %2546 = vmatprep.subr.mxu0 0.0
      %2547 = vmatpush1.msra.mxu0 %v1513
      %2548 = vmatprep.subr.mxu0 0.0
      %2549 = vmatpush1.msra.mxu0 %v1514
      %2550 = vmatprep.subr.mxu0 0.0
      %2551 = vmatpush1.msra.mxu0 %v1515
      %2552 = vmatprep.subr.mxu0 0.0
      %2553 = vmatpush1.msra.mxu0 %v1516
      %2554 = vmatprep.subr.mxu0 0.0
      %2555 = vmatpush1.msra.mxu0 %v1517
      %2556 = vmatprep.subr.mxu0 0.0
      %2557 = vmatpush1.msra.mxu0 %v1518
      %2558 = vmatprep.subr.mxu0 0.0
      %2559 = vmatpush1.msra.mxu0 %v1519
      %2560 = vmatprep.subr.mxu0 0.0
      %2561 = vmatpush1.msra.mxu0 %v1520
      %2562 = vmatprep.subr.mxu0 0.0
      %2563 = vmatpush1.msra.mxu0 0.0
      %2564 = vmatprep.subr.mxu0 0.0
      %2565 = vmatpush1.msra.mxu0 0.0
      %2566 = vmatprep.subr.mxu0 0.0
      %2567 = vmatpush1.msra.mxu0 0.0
      %2568 = vmatprep.subr.mxu0 0.0
      %2569 = vmatpush1.msra.mxu0 0.0
      %2570 = vmatprep.subr.mxu0 0.0
      %2571 = vmatpush1.msra.mxu0 0.0
      %2572 = vmatprep.subr.mxu0 0.0
      %2573 = vmatpush1.msra.mxu0 0.0
      %2574 = vmatprep.subr.mxu0 0.0
      %2575 = vmatpush1.msra.mxu0 0.0
      %2576 = vmatprep.subr.mxu0 0.0
      %2577 = vmatpush1.msra.mxu0 0.0
      %2578 = vmatprep.subr.mxu0 0.0
      %2579 = vmatpush1.msra.mxu0 0.0
      %2580 = vmatprep.subr.mxu0 0.0
      %2581 = vmatpush1.msra.mxu0 0.0
      %2582 = vmatprep.subr.mxu0 0.0
      %2583 = vmatpush1.msra.mxu0 0.0
      %2584 = vmatprep.subr.mxu0 0.0
      %2585 = vmatpush1.msra.mxu0 0.0
      %2586 = vmatprep.subr.mxu0 0.0
      %2587 = vmatpush1.msra.mxu0 0.0
      %2588 = vmatprep.subr.mxu0 0.0
      %2589 = vmatpush1.msra.mxu0 0.0
      %2590 = vmatprep.subr.mxu0 0.0
      %2591 = vmatpush1.msra.mxu0 0.0
      %2592 = vmatprep.subr.mxu0 0.0
      %2593 = vmatpush1.msra.mxu0 0.0
      %2594 = vmatprep.subr.mxu0 0.0
      %2595 = vmatpush1.msra.mxu0 0.0
      %2596 = vmatprep.subr.mxu0 0.0
      %2597 = vmatpush1.msra.mxu0 0.0
      %2598 = vmatprep.subr.mxu0 0.0
      %2599 = vmatpush1.msra.mxu0 0.0
      %2600 = vmatprep.subr.mxu0 0.0
      %2601 = vmatpush1.msra.mxu0 0.0
      %2602 = vmatprep.subr.mxu0 0.0
      %2603 = vmatpush1.msra.mxu0 0.0
      %2604 = vmatprep.subr.mxu0 0.0
      %2605 = vmatpush1.msra.mxu0 0.0
      %2606 = vmatprep.subr.mxu0 0.0
      %2607 = vmatpush1.msra.mxu0 0.0
      %2608 = vmatprep.subr.mxu0 0.0
      %2609 = vmatpush1.msra.mxu0 0.0
      %2610 = vmatprep.mubr.f32.mxu0 0.0
      %2611 = vmatmul.mubr.f32.gmra.mrb[0].mxu0 %v2451
      %v2612 = vpop.f32.mrb[0].mxu0
      %v2613 = vadd.f32 0.0, %v2612
      %v2614 = vpop.f32.mrb[0].mxu0
      %2615 = vmatprep.mubr.f32.mxu0 0.0
      %2616 = vmatmul.mubr.f32.gmra.mrb[0].mxu0 %v2454
      %v2617 = vpop.f32.mrb[0].mxu0
      %v2618 = vadd.f32 0.0, %v2617
      %v2619 = vpop.f32.mrb[0].mxu0
      %2620 = vmatprep.mubr.f32.mxu0 0.0
      %2621 = vmatmul.mubr.f32.gmra.mrb[0].mxu0 %v2457
      %v2622 = vpop.f32.mrb[0].mxu0
      %v2623 = vadd.f32 0.0, %v2622
      %v2624 = vpop.f32.mrb[0].mxu0
      %2625 = vmatprep.mubr.f32.mxu0 0.0
      %2626 = vmatmul.mubr.f32.gmra.mrb[0].mxu0 %v2460
      %v2627 = vpop.f32.mrb[0].mxu0
      %v2628 = vadd.f32 0.0, %v2627
      %v2629 = vpop.f32.mrb[0].mxu0
      %2630 = vmatprep.mubr.f32.mxu0 0.0
      %2631 = vmatmul.mubr.f32.gmra.mrb[0].mxu0 %v2463
      %v2632 = vpop.f32.mrb[0].mxu0
      %v2633 = vadd.f32 0.0, %v2632
      %v2634 = vpop.f32.mrb[0].mxu0
      %2635 = vmatprep.mubr.f32.mxu0 0.0
      %2636 = vmatmul.mubr.f32.gmra.mrb[0].mxu0 %v2466
      %v2637 = vpop.f32.mrb[0].mxu0
      %v2638 = vadd.f32 0.0, %v2637
      %v2639 = vpop.f32.mrb[0].mxu0
      %2640 = vmatprep.mubr.f32.mxu0 0.0
      %2641 = vmatmul.mubr.f32.gmra.mrb[0].mxu0 %v2469
      %v2642 = vpop.f32.mrb[0].mxu0
      %v2643 = vadd.f32 0.0, %v2642
      %v2644 = vpop.f32.mrb[0].mxu0
      %2645 = vmatprep.mubr.f32.mxu0 0.0
      %2646 = vmatmul.mubr.f32.gmra.mrb[0].mxu0 %v2472
      %v2647 = vpop.f32.mrb[0].mxu0
      %v2648 = vadd.f32 0.0, %v2647
      %v2649 = vpop.f32.mrb[0].mxu0
      %2650 = vmatprep.mubr.f32.mxu0 0.0
      %2651 = vmatmul.mubr.f32.gmra.mrb[0].mxu0 %v2475
      %v2652 = vpop.f32.mrb[0].mxu0
      %v2653 = vadd.f32 0.0, %v2652
      %v2654 = vpop.f32.mrb[0].mxu0
      %2655 = vmatprep.mubr.f32.mxu0 0.0
      %2656 = vmatmul.mubr.f32.gmra.mrb[0].mxu0 %v2478
      %v2657 = vpop.f32.mrb[0].mxu0
      %v2658 = vadd.f32 0.0, %v2657
      %v2659 = vpop.f32.mrb[0].mxu0
      %2660 = vmatprep.mubr.f32.mxu0 0.0
      %2661 = vmatmul.mubr.f32.gmra.mrb[0].mxu0 %v2481
      %v2662 = vpop.f32.mrb[0].mxu0
      %v2663 = vadd.f32 0.0, %v2662
      %v2664 = vpop.f32.mrb[0].mxu0
      %2665 = vmatprep.mubr.f32.mxu0 0.0
      %2666 = vmatmul.mubr.f32.gmra.mrb[0].mxu0 %v2484
      %v2667 = vpop.f32.mrb[0].mxu0
      %v2668 = vadd.f32 0.0, %v2667
      %v2669 = vpop.f32.mrb[0].mxu0
      %2670 = vmatprep.mubr.f32.mxu0 0.0
      %2671 = vmatmul.mubr.f32.gmra.mrb[0].mxu0 %v2487
      %v2672 = vpop.f32.mrb[0].mxu0
      %v2673 = vadd.f32 0.0, %v2672
      %v2674 = vpop.f32.mrb[0].mxu0
      %2675 = vmatprep.mubr.f32.mxu0 0.0
      %2676 = vmatmul.mubr.f32.gmra.mrb[0].mxu0 %v2490
      %v2677 = vpop.f32.mrb[0].mxu0
      %v2678 = vadd.f32 0.0, %v2677
      %v2679 = vpop.f32.mrb[0].mxu0
      %2680 = vmatprep.mubr.f32.mxu0 0.0
      %2681 = vmatmul.mubr.f32.gmra.mrb[0].mxu0 %v2493
      %v2682 = vpop.f32.mrb[0].mxu0
      %v2683 = vadd.f32 0.0, %v2682
      %v2684 = vpop.f32.mrb[0].mxu0
      %2685 = vmatprep.mubr.f32.mxu0 0.0
      %2686 = vmatmul.mubr.f32.gmra.mrb[0].mxu0 %v2496
      %v2687 = vpop.f32.mrb[0].mxu0
      %v2688 = vadd.f32 0.0, %v2687
      %v2689 = vpop.f32.mrb[0].mxu0
      %2690 = vmatprep.mubr.f32.mxu0 0.0
      %2691 = vmatmul.mubr.f32.gmra.mrb[0].mxu0 %v2499
      %v2692 = vpop.f32.mrb[0].mxu0
      %v2693 = vadd.f32 0.0, %v2692
      %v2694 = vpop.f32.mrb[0].mxu0
      %2695 = vmatprep.mubr.f32.mxu0 0.0
      %2696 = vmatmul.mubr.f32.gmra.mrb[0].mxu0 %v2502
      %v2697 = vpop.f32.mrb[0].mxu0
      %v2698 = vadd.f32 0.0, %v2697
      %v2699 = vpop.f32.mrb[0].mxu0
      %2700 = vmatprep.mubr.f32.mxu0 0.0
      %2701 = vmatmul.mubr.f32.gmra.mrb[0].mxu0 %v2505
      %v2702 = vpop.f32.mrb[0].mxu0
      %v2703 = vadd.f32 0.0, %v2702
      %v2704 = vpop.f32.mrb[0].mxu0
      %2705 = vmatprep.mubr.f32.mxu0 0.0
      %2706 = vmatmul.mubr.f32.gmra.mrb[0].mxu0 %v2508
      %v2707 = vpop.f32.mrb[0].mxu0
      %v2708 = vadd.f32 0.0, %v2707
      %v2709 = vpop.f32.mrb[0].mxu0
      %2710 = vmatprep.mubr.f32.mxu0 0.0
      %2711 = vmatmul.mubr.f32.gmra.mrb[0].mxu0 %v2511
      %v2712 = vpop.f32.mrb[0].mxu0
      %v2713 = vadd.f32 0.0, %v2712
      %v2714 = vpop.f32.mrb[0].mxu0
      %2715 = vmatprep.mubr.f32.mxu0 0.0
      %2716 = vmatmul.mubr.f32.gmra.mrb[0].mxu0 %v2514
      %v2717 = vpop.f32.mrb[0].mxu0
      %v2718 = vadd.f32 0.0, %v2717
      %v2719 = vpop.f32.mrb[0].mxu0
      %2720 = vmatprep.mubr.f32.mxu0 0.0
      %2721 = vmatmul.mubr.f32.gmra.mrb[0].mxu0 %v2517
      %v2722 = vpop.f32.mrb[0].mxu0
      %v2723 = vadd.f32 0.0, %v2722
      %v2724 = vpop.f32.mrb[0].mxu0
      %2725 = vmatprep.mubr.f32.mxu0 0.0
      %2726 = vmatmul.mubr.f32.gmra.mrb[0].mxu0 %v2520
      %v2727 = vpop.f32.mrb[0].mxu0
      %v2728 = vadd.f32 0.0, %v2727
      %v2729 = vpop.f32.mrb[0].mxu0
      %2730 = vmatprep.mubr.f32.mxu0 0.0
      %2731 = vmatmul.mubr.f32.gmra.mrb[0].mxu0 %v2523
      %v2732 = vpop.f32.mrb[0].mxu0
      %v2733 = vadd.f32 0.0, %v2732
      %v2734 = vpop.f32.mrb[0].mxu0
      %2735 = vmatprep.mubr.f32.mxu0 0.0
      %2736 = vmatmul.mubr.f32.gmra.mrb[0].mxu0 %v2526
      %v2737 = vpop.f32.mrb[0].mxu0
      %v2738 = vadd.f32 0.0, %v2737
      %v2739 = vpop.f32.mrb[0].mxu0
      %2740 = vmatprep.mubr.f32.mxu0 0.0
      %2741 = vmatmul.mubr.f32.gmra.mrb[0].mxu0 %v2529
      %v2742 = vpop.f32.mrb[0].mxu0
      %v2743 = vadd.f32 0.0, %v2742
      %v2744 = vpop.f32.mrb[0].mxu0
      %2745 = vmatprep.mubr.f32.mxu0 0.0
      %2746 = vmatmul.mubr.f32.gmra.mrb[0].mxu0 %v2532
      %v2747 = vpop.f32.mrb[0].mxu0
      %v2748 = vadd.f32 0.0, %v2747
      %v2749 = vpop.f32.mrb[0].mxu0
      %2750 = vmatprep.mubr.f32.mxu0 0.0
      %2751 = vmatmul.mubr.f32.gmra.mrb[0].mxu0 %v2535
      %v2752 = vpop.f32.mrb[0].mxu0
      %v2753 = vadd.f32 0.0, %v2752
      %v2754 = vpop.f32.mrb[0].mxu0
      %2755 = vmatprep.mubr.f32.mxu0 0.0
      %2756 = vmatmul.mubr.f32.gmra.mrb[0].mxu0 %v2538
      %v2757 = vpop.f32.mrb[0].mxu0
      %v2758 = vadd.f32 0.0, %v2757
      %v2759 = vpop.f32.mrb[0].mxu0
      %2760 = vmatprep.mubr.f32.mxu0 0.0
      %2761 = vmatmul.mubr.f32.gmra.mrb[0].mxu0 %v2541
      %v2762 = vpop.f32.mrb[0].mxu0
      %v2763 = vadd.f32 0.0, %v2762
      %v2764 = vpop.f32.mrb[0].mxu0
      %2765 = vmatprep.mubr.f32.mxu0 0.0
      %2766 = vmatmul.mubr.f32.gmra.mrb[0].mxu0 %v2544
      %v2767 = vpop.f32.mrb[0].mxu0
      %v2768 = vadd.f32 0.0, %v2767
      %v2769 = vpop.f32.mrb[0].mxu0
      %2770 = vdwg.mxu0
      %v2771 = vlaneseq
      %v2772 = vshrl.u32 %v2771, 7
      %v2773 = vsub.s32 2, %v2772
      %v2774 = vrot.slane %v154, %v2773
      %2776 = vrot.lane.b32.xlu0 %v2774, 16
      %v2777 = vpop.permute.xlu0 %2776
      %v2779 = vadd.f32 %v1513, %v2777
      %v2780 = vadd.f32 %v1514, %v2777
      %v2781 = vadd.f32 %v1515, %v2777
      %v2782 = vadd.f32 %v1516, %v2777
      %v2783 = vadd.f32 %v1517, %v2777
      %v2784 = vadd.f32 %v1518, %v2777
      %v2785 = vadd.f32 %v1519, %v2777
      %v2786 = vadd.f32 %v1520, %v2777
      %v2787 = vlaneseq
      %v2788 = vshrl.u32 %v2787, 7
      %v2789 = vsub.s32 3, %v2788
      %v2790 = vrot.slane %v154, %v2789
      %v2791 = vmul.f32 %v2613, %v2790
      %v2792 = vmul.f32 %v2618, %v2790
      %v2793 = vmul.f32 %v2623, %v2790
      %v2794 = vmul.f32 %v2628, %v2790
      %v2795 = vmul.f32 %v2633, %v2790
      %v2796 = vmul.f32 %v2638, %v2790
      %v2797 = vmul.f32 %v2643, %v2790
      %v2798 = vmul.f32 %v2648, %v2790
      %2807 = vrot.lane.b32.xlu0 %v2791, 16
      %v2808 = vpop.permute.xlu0 %2807
      %2809 = vrot.lane.b32.xlu0 %v2792, 16
      %v2810 = vpop.permute.xlu0 %2809
      %2811 = vrot.lane.b32.xlu0 %v2793, 16
      %v2812 = vpop.permute.xlu0 %2811
      %2813 = vrot.lane.b32.xlu0 %v2794, 16
      %v2814 = vpop.permute.xlu0 %2813
      %2815 = vrot.lane.b32.xlu0 %v2795, 16
      %v2816 = vpop.permute.xlu0 %2815
      %2817 = vrot.lane.b32.xlu0 %v2796, 16
      %v2818 = vpop.permute.xlu0 %2817
      %2819 = vrot.lane.b32.xlu0 %v2797, 16
      %v2820 = vpop.permute.xlu0 %2819
      %2821 = vrot.lane.b32.xlu0 %v2798, 16
      %v2822 = vpop.permute.xlu0 %2821
      %v2831 = vadd.f32 %v2779, %v2808
      %v2832 = vadd.f32 %v2780, %v2810
      %v2833 = vadd.f32 %v2781, %v2812
      %v2834 = vadd.f32 %v2782, %v2814
      %v2835 = vadd.f32 %v2783, %v2816
      %v2836 = vadd.f32 %v2784, %v2818
      %v2837 = vadd.f32 %v2785, %v2820
      %v2838 = vadd.f32 %v2786, %v2822
      %v2839 = vlaneseq
      %v2840 = vshrl.u32 %v2839, 7
      %v2841 = vsub.s32 4, %v2840
      %v2842 = vrot.slane %v154, %v2841
      %v2843 = vmul.f32 %v2653, %v2842
      %v2844 = vmul.f32 %v2658, %v2842
      %v2845 = vmul.f32 %v2663, %v2842
      %v2846 = vmul.f32 %v2668, %v2842
      %v2847 = vmul.f32 %v2673, %v2842
      %v2848 = vmul.f32 %v2678, %v2842
      %v2849 = vmul.f32 %v2683, %v2842
      %v2850 = vmul.f32 %v2688, %v2842
      %2859 = vrot.lane.b32.xlu0 %v2843, 16
      %v2860 = vpop.permute.xlu0 %2859
      %2861 = vrot.lane.b32.xlu0 %v2844, 16
      %v2862 = vpop.permute.xlu0 %2861
      %2863 = vrot.lane.b32.xlu0 %v2845, 16
      %v2864 = vpop.permute.xlu0 %2863
      %2865 = vrot.lane.b32.xlu0 %v2846, 16
      %v2866 = vpop.permute.xlu0 %2865
      %2867 = vrot.lane.b32.xlu0 %v2847, 16
      %v2868 = vpop.permute.xlu0 %2867
      %2869 = vrot.lane.b32.xlu0 %v2848, 16
      %v2870 = vpop.permute.xlu0 %2869
      %2871 = vrot.lane.b32.xlu0 %v2849, 16
      %v2872 = vpop.permute.xlu0 %2871
      %2873 = vrot.lane.b32.xlu0 %v2850, 16
      %v2874 = vpop.permute.xlu0 %2873
      %v2883 = vadd.f32 %v2831, %v2860
      %v2884 = vadd.f32 %v2832, %v2862
      %v2885 = vadd.f32 %v2833, %v2864
      %v2886 = vadd.f32 %v2834, %v2866
      %v2887 = vadd.f32 %v2835, %v2868
      %v2888 = vadd.f32 %v2836, %v2870
      %v2889 = vadd.f32 %v2837, %v2872
      %v2890 = vadd.f32 %v2838, %v2874
      %v2891 = vlaneseq
      %v2892 = vshrl.u32 %v2891, 7
      %v2893 = vsub.s32 5, %v2892
      %v2894 = vrot.slane %v154, %v2893
      %v2895 = vmul.f32 %v2693, %v2894
      %v2896 = vmul.f32 %v2698, %v2894
      %v2897 = vmul.f32 %v2703, %v2894
      %v2898 = vmul.f32 %v2708, %v2894
      %v2899 = vmul.f32 %v2713, %v2894
      %v2900 = vmul.f32 %v2718, %v2894
      %v2901 = vmul.f32 %v2723, %v2894
      %v2902 = vmul.f32 %v2728, %v2894
      %2911 = vrot.lane.b32.xlu0 %v2895, 16
      %v2912 = vpop.permute.xlu0 %2911
      %2913 = vrot.lane.b32.xlu0 %v2896, 16
      %v2914 = vpop.permute.xlu0 %2913
      %2915 = vrot.lane.b32.xlu0 %v2897, 16
      %v2916 = vpop.permute.xlu0 %2915
      %2917 = vrot.lane.b32.xlu0 %v2898, 16
      %v2918 = vpop.permute.xlu0 %2917
      %2919 = vrot.lane.b32.xlu0 %v2899, 16
      %v2920 = vpop.permute.xlu0 %2919
      %2921 = vrot.lane.b32.xlu0 %v2900, 16
      %v2922 = vpop.permute.xlu0 %2921
      %2923 = vrot.lane.b32.xlu0 %v2901, 16
      %v2924 = vpop.permute.xlu0 %2923
      %2925 = vrot.lane.b32.xlu0 %v2902, 16
      %v2926 = vpop.permute.xlu0 %2925
      %v2935 = vadd.f32 %v2883, %v2912
      %v2936 = vadd.f32 %v2884, %v2914
      %v2937 = vadd.f32 %v2885, %v2916
      %v2938 = vadd.f32 %v2886, %v2918
      %v2939 = vadd.f32 %v2887, %v2920
      %v2940 = vadd.f32 %v2888, %v2922
      %v2941 = vadd.f32 %v2889, %v2924
      %v2942 = vadd.f32 %v2890, %v2926
      %v2943 = vlaneseq
      %v2944 = vshrl.u32 %v2943, 7
      %v2945 = vsub.s32 6, %v2944
      %v2946 = vrot.slane %v154, %v2945
      %v2947 = vmul.f32 %v2733, %v2946
      %v2948 = vmul.f32 %v2738, %v2946
      %v2949 = vmul.f32 %v2743, %v2946
      %v2950 = vmul.f32 %v2748, %v2946
      %v2951 = vmul.f32 %v2753, %v2946
      %v2952 = vmul.f32 %v2758, %v2946
      %v2953 = vmul.f32 %v2763, %v2946
      %v2954 = vmul.f32 %v2768, %v2946
      %2963 = vrot.lane.b32.xlu0 %v2947, 16
      %v2964 = vpop.permute.xlu0 %2963
      %2965 = vrot.lane.b32.xlu0 %v2948, 16
      %v2966 = vpop.permute.xlu0 %2965
      %2967 = vrot.lane.b32.xlu0 %v2949, 16
      %v2968 = vpop.permute.xlu0 %2967
      %2969 = vrot.lane.b32.xlu0 %v2950, 16
      %v2970 = vpop.permute.xlu0 %2969
      %2971 = vrot.lane.b32.xlu0 %v2951, 16
      %v2972 = vpop.permute.xlu0 %2971
      %2973 = vrot.lane.b32.xlu0 %v2952, 16
      %v2974 = vpop.permute.xlu0 %2973
      %2975 = vrot.lane.b32.xlu0 %v2953, 16
      %v2976 = vpop.permute.xlu0 %2975
      %2977 = vrot.lane.b32.xlu0 %v2954, 16
      %v2978 = vpop.permute.xlu0 %2977
      %v2987 = vadd.f32 %v2935, %v2964
      %v2988 = vadd.f32 %v2936, %v2966
      %v2989 = vadd.f32 %v2937, %v2968
      %v2990 = vadd.f32 %v2938, %v2970
      %v2991 = vadd.f32 %v2939, %v2972
      %v2992 = vadd.f32 %v2940, %v2974
      %v2993 = vadd.f32 %v2941, %v2976
      %v2994 = vadd.f32 %v2942, %v2978
      %vm2995 = vcmp.gt.f32.partialorder %v2987, 0.0
      %vm2996 = vcmp.gt.f32.partialorder %v2988, 0.0
      %vm2997 = vcmp.gt.f32.partialorder %v2989, 0.0
      %vm2998 = vcmp.gt.f32.partialorder %v2990, 0.0
      %vm2999 = vcmp.gt.f32.partialorder %v2991, 0.0
      %vm3000 = vcmp.gt.f32.partialorder %v2992, 0.0
      %vm3001 = vcmp.gt.f32.partialorder %v2993, 0.0
      %vm3002 = vcmp.gt.f32.partialorder %v2994, 0.0
      %v3003 = vmin.f32 %v2987, 0.0
      %v3004 = vmin.f32 %v2988, 0.0
      %v3005 = vmin.f32 %v2989, 0.0
      %v3006 = vmin.f32 %v2990, 0.0
      %v3007 = vmin.f32 %v2991, 0.0
      %v3008 = vmin.f32 %v2992, 0.0
      %v3009 = vmin.f32 %v2993, 0.0
      %v3010 = vmin.f32 %v2994, 0.0
      %v3011 = vmul.f32 %v3003, 1.442695
      %v3012 = vpow.pop %v3011
      %v3013 = vmul.f32 %v3004, 1.442695
      %v3014 = vpow.pop %v3013
      %v3015 = vmul.f32 %v3005, 1.442695
      %v3016 = vpow.pop %v3015
      %v3017 = vmul.f32 %v3006, 1.442695
      %v3018 = vpow.pop %v3017
      %v3019 = vmul.f32 %v3007, 1.442695
      %v3020 = vpow.pop %v3019
      %v3021 = vmul.f32 %v3008, 1.442695
      %v3022 = vpow.pop %v3021
      %v3023 = vmul.f32 %v3009, 1.442695
      %v3024 = vpow.pop %v3023
      %v3025 = vmul.f32 %v3010, 1.442695
      %v3026 = vpow.pop %v3025
      %v3027 = vsub.f32 %v3012, 1.0
      %v3028 = vsub.f32 %v3014, 1.0
      %v3029 = vsub.f32 %v3016, 1.0
      %v3030 = vsub.f32 %v3018, 1.0
      %v3031 = vsub.f32 %v3020, 1.0
      %v3032 = vsub.f32 %v3022, 1.0
      %v3033 = vsub.f32 %v3024, 1.0
      %v3034 = vsub.f32 %v3026, 1.0
      %v3035 = vsel %vm2995, %v2987, %v3027
      %v3036 = vsel %vm2996, %v2988, %v3028
      %v3037 = vsel %vm2997, %v2989, %v3029
      %v3038 = vsel %vm2998, %v2990, %v3030
      %v3039 = vsel %vm2999, %v2991, %v3031
      %v3040 = vsel %vm3000, %v2992, %v3032
      %v3041 = vsel %vm3001, %v2993, %v3033
      %v3042 = vsel %vm3002, %v2994, %v3034
      %3044 = vrot.lane.b32.xlu0 %v3035, 112
      %v3045 = vpop.permute.xlu0 %3044
      %3047 = vst.msk [vmem:[%s141] sm:$0xff] %vm1383, %v3045
      %vm3048 = vcmask 261248
      %3049 = vst.msk [vmem:[%s141] sm:$0xff] %vm3048, %v3036
      %3051 = vrot.lane.b32.xlu0 %v3037, 16
      %v3052 = vpop.permute.xlu0 %3051
      %vm3054 = vcmask 392448
      %3055 = vst.msk [vmem:[%s141] sm:$0xff] %vm3054, %v3052
      %3057 = vrot.lane.b32.xlu0 %v3038, 32
      %v3058 = vpop.permute.xlu0 %3057
      %vm3060 = vcmask 523648
      %3061 = vst.msk [vmem:[%s141] sm:$0xff] %vm3060, %v3058
      %3063 = vrot.lane.b32.xlu0 %v3039, 48
      %v3064 = vpop.permute.xlu0 %3063
      %vm3066 = vcmask 654848
      %3067 = vst.msk [vmem:[%s141] sm:$0xff] %vm3066, %v3064
      %3069 = vrot.lane.b32.xlu0 %v3040, 64
      %v3070 = vpop.permute.xlu0 %3069
      %vm3072 = vcmask 786048
      %3073 = vst.msk [vmem:[%s141] sm:$0xff] %vm3072, %v3070
      %3075 = vrot.lane.b32.xlu0 %v3041, 80
      %v3076 = vpop.permute.xlu0 %3075
      %vm3078 = vcmask 917248
      %3079 = vst.msk [vmem:[%s141] sm:$0xff] %vm3078, %v3076
      %3081 = vrot.lane.b32.xlu0 %v3042, 96
      %v3082 = vpop.permute.xlu0 %3081
      %vm3084 = vcmask 1048448
      %3085 = vst.msk [vmem:[%s141] sm:$0xff] %vm3084, %v3082
      %p3086 = scmp.lt.s32.totalorder %s13, 1
      %s3087 = scalar_select %p3086, %s13, 1
      %s3088 = smul.addr %s3087, 8
      %s3089 = scalar_lea.vmem %s2, %s3088
      // Predicated region
      $region29: #{temporal_gat_forward.1} parent=27 // pred_check
        %p3090 = pneg %p78
      $region30: #{temporal_gat_forward.1} parent=27 // pred_check_branch
        %3092 = sbr.rel (%p3090) target = $region32
      $region31: #{temporal_gat_forward.1} parent=27 // pred_region
        _
      $region32: #{temporal_gat_forward.1} parent=27 // pred_fallthru
        _
    $region28: #{temporal_gat_forward.1} parent=5 // pred_fallthru
      _
    %p3093 = scmp.le.s32.totalorder 2, %s8
    // Predicated region
    $region33: #{temporal_gat_forward.1} parent=5 // pred_check
      %p3094 = pneg %p3093
    $region34: #{temporal_gat_forward.1} parent=5 // pred_check_branch
      %3096 = sbr.rel (%p3094) target = $region36
    $region35: #{temporal_gat_forward.1} parent=5 // pred_region
      %s3097 = ssub.s32 %s8, 2
      // Predicated region
      $region37: #{temporal_gat_forward.1} parent=35 // pred_check
        %p3098 = pneg %p84
      $region38: #{temporal_gat_forward.1} parent=35 // pred_check_branch
        %3100 = sbr.rel (%p3098) target = $region40
      $region39: #{temporal_gat_forward.1} parent=35 // pred_region
        %p3101 = scmp.lt.s32.totalorder %s14, 1
        %s3102 = scalar_select %p3101, %s14, 1
        %s3103 = smul.addr %s3102, 8
        %s3104 = scalar_lea.vmem %s2, %s3103
      $region40: #{temporal_gat_forward.1} parent=35 // pred_fallthru
        _
    $region36: #{temporal_gat_forward.1} parent=5 // pred_fallthru
      _
  $region6: #{temporal_gat_forward.1} parent=0 // loop_footer
    %s12 = sadd.s32 1, %s8
  $region7: #{temporal_gat_forward.1} parent=0 // loop_footer_branch
    %7 = sbr.rel target = $region3
  $region8: #{temporal_gat_forward.1} parent=0 // loop_exit
    _

</llo_original>
